<compile_context>
chip_gen: v7x
topology: tpu7x:2x2x1
jax: 0.10.0
libtpu: 0.0.40
codegen_flags: <defaults>
</compile_context>

<pallas_src>
import functools

import numpy as np
import jax
import jax.numpy as jnp
from jax.experimental import pallas as pl
from jax.experimental.pallas import tpu as pltpu

# ----- module hyperparameters (match the PyTorch __init__ defaults) -----------
D = 8                    # number of hidden layers
W_HID = 256              # hidden width
INPUT_CH = 6             # 3 + 3
INPUT_CH_TIME = 1
SKIPS = (4,)             # skip connection after hidden layer index 4
OUT_CH = 3               # net_final = Linear(W, 3)

# ----- padded / tiled sizes ----------------------------------------------------
IN_PAD = 8               # cat([x, ts]) padded 7 -> 8 (last input lane is zero)
OUT_PAD = 128            # lane-aligned output width (3 real channels)
_TM_BUCKETS = (128, 256, 512, 1024)   # static row-tile buckets (avoid recompiles)

# ----- device-dependent static choices (made at import time) -------------------
try:
    _DEVICE_KIND = jax.devices()[0].device_kind.lower()
except Exception:  # pragma: no cover - defensive; default to the safe f32 path
    _DEVICE_KIND = ""
# bf16 VALU exists on v6e/v7x; v5e (and older) keep the f32 epilogue.
_BF16_EPILOGUE = ("v6" in _DEVICE_KIND) or ("v7" in _DEVICE_KIND)
# v7x has 2 TensorCores per chip; pick the row tile per-core so grid >= 2.
_NUM_TC = 2 if "v7" in _DEVICE_KIND else 1


# ------------------------------------------------------------------------------
# Parameter init (deterministic, PyTorch-Linear-style uniform init).
# Weights are stored as (fan_in, fan_out) so the math is x @ W + b.
# ------------------------------------------------------------------------------
def _init_linear(key, fan_in, fan_out):
    kw, kb = jax.random.split(key)
    bound = 1.0 / float(fan_in) ** 0.5
    w = jax.random.uniform(kw, (fan_in, fan_out), jnp.float32, -bound, bound)
    b = jax.random.uniform(kb, (fan_out,), jnp.float32, -bound, bound)
    return w, b


def init_time_net(key):
    keys = jax.random.split(key, D + 1)
    params = [_init_linear(keys[0], INPUT_CH + INPUT_CH_TIME, W_HID)]
    for i in range(D - 1):
        fan_in = W_HID + (INPUT_CH if i in SKIPS else 0)
        params.append(_init_linear(keys[i + 1], fan_in, W_HID))
    final = _init_linear(keys[D], W_HID, OUT_CH)
    return params, final


def pack_params(params, final):
    """Pack / pad weights into a consolidated, kernel-friendly layout.

    Returns dict:
      w_in_skip (IN_PAD, 2W)   bf16  cols [0,W): layer-0 weight (rows 0:6 pts,
                                     row 6 ts, row 7 zero); cols [W,2W): x-rows
                                     of the skip layer (ts/pad rows zero)
      w_hid     (D-1, W, W)    bf16  h-part weights of hidden layers 1..7
      b_all     (D, W)         f32   biases of layers 0..7
      w_fin     (W, OUT_PAD)   bf16  final weight, cols 0:3 real
      b_fin     (1, OUT_PAD)   f32   final bias, cols 0:3 real
    """
    w0, b0 = params[0]
    w_in = jnp.zeros((IN_PAD, W_HID), jnp.float32).at[: w0.shape[0]].set(w0)
    w_skip = jnp.zeros((IN_PAD, W_HID), jnp.float32)
    w_hid = []
    b_all = [b0]
    for i in range(1, D):
        w, b = params[i]
        if w.shape[0] == W_HID:
            w_hid.append(w)
        else:
            # PyTorch skip layer consumes cat([new_pts, h]) (ts NOT included);
            # split into x-part (first INPUT_CH rows) and h-part (last W rows).
            w_skip = w_skip.at[:INPUT_CH].set(w[:INPUT_CH])
            w_hid.append(w[INPUT_CH:])
        b_all.append(b)
    wf, bf = final
    w_fin = jnp.zeros((W_HID, OUT_PAD), jnp.float32).at[:, :OUT_CH].set(wf)
    b_fin = jnp.zeros((1, OUT_PAD), jnp.float32).at[:, :OUT_CH].set(bf)
    return dict(
        w_in_skip=jnp.concatenate([w_in, w_skip], axis=1).astype(jnp.bfloat16),
        w_hid=jnp.stack(w_hid).astype(jnp.bfloat16),
        b_all=jnp.stack(b_all).astype(jnp.float32),
        w_fin=w_fin.astype(jnp.bfloat16),
        b_fin=b_fin.astype(jnp.float32),
    )


# ------------------------------------------------------------------------------
# Pallas kernel: full time-MLP for one row-tile of points.
# ------------------------------------------------------------------------------
def _time_net_kernel(x_ref, w_is_ref, w_hid_ref, b_ref, w_fin_ref, b_fin_ref,
                     out_ref, *, bf16_epilogue):
    # Single tiny-K (K=8) MXU pass covering both x-consuming weights:
    #   cols [0,W)  -> layer-0 pre-activation
    #   cols [W,2W) -> skip-layer x-contribution (added at hidden layer 5)
    xw = jnp.dot(x_ref[...], w_is_ref[...], preferred_element_type=jnp.float32)
    x_skip = xw[:, W_HID:]                                    # (TM, 256) f32

    def act(pre_f32, layer):
        """bias-add + ReLU; h is carried in bf16 (the matmul LHS dtype)."""
        if bf16_epilogue:                                     # v6e / v7x: bf16 VALU
            return jnp.maximum(
                pre_f32.astype(jnp.bfloat16)
                + b_ref[layer:layer + 1, :].astype(jnp.bfloat16), 0)
        h = jnp.maximum(pre_f32 + b_ref[layer:layer + 1, :], 0.0)
        return h.astype(jnp.bfloat16)                         # v5e: f32 VPU epilogue

    h = act(xw[:, :W_HID], 0)                                 # layer 0
    for i in range(1, D):                                     # layers 1..7 (unrolled)
        pre = jnp.dot(h, w_hid_ref[i - 1], preferred_element_type=jnp.float32)
        if (i - 1) in SKIPS:                                  # skip-concat -> split dot
            pre = pre + x_skip
        h = act(pre, i)
    # final Linear(W, 3) (padded to OUT_PAD lanes), bf16 lane-dense writeback
    out_ref[...] = (
        jnp.dot(h, w_fin_ref[...], preferred_element_type=jnp.float32)
        + b_fin_ref[...]).astype(out_ref.dtype)


@functools.partial(jax.jit, static_argnames=("tm",))
def _query_time_pallas(x, ts, packed, tm):
    n = x.shape[0]
    n_pad = pl.cdiv(n, tm) * tm
    # bf16 input slab: (n, 7) -> (n_pad, 8); tail rows / last lane are zero.
    xcat = jnp.concatenate([x, ts], axis=-1).astype(jnp.bfloat16)
    xin = jnp.pad(xcat, ((0, n_pad - n), (0, IN_PAD - xcat.shape[1])))

    kernel = functools.partial(_time_net_kernel, bf16_epilogue=_BF16_EPILOGUE)
    out = pl.pallas_call(
        kernel,
        out_shape=jax.ShapeDtypeStruct((n_pad, OUT_PAD), jnp.bfloat16),
        grid_spec=pltpu.PrefetchScalarGridSpec(
            num_scalar_prefetch=0,
            grid=(n_pad // tm,),
            in_specs=[
                pl.BlockSpec((tm, IN_PAD), lambda i: (i, 0)),              # x tile
                pl.BlockSpec((IN_PAD, 2 * W_HID), lambda i: (0, 0)),       # w_in_skip
                pl.BlockSpec((D - 1, W_HID, W_HID), lambda i: (0, 0, 0)),  # w_hid
                pl.BlockSpec((D, W_HID), lambda i: (0, 0)),                # b_all
                pl.BlockSpec((W_HID, OUT_PAD), lambda i: (0, 0)),          # w_fin
                pl.BlockSpec((1, OUT_PAD), lambda i: (0, 0)),              # b_fin
            ],
            out_specs=pl.BlockSpec((tm, OUT_PAD), lambda i: (i, 0)),
        ),
        compiler_params=pltpu.CompilerParams(
            dimension_semantics=("parallel",),
            vmem_limit_bytes=32 * 1024 * 1024),
    )(xin, packed["w_in_skip"], packed["w_hid"], packed["b_all"],
      packed["w_fin"], packed["b_fin"])
    # Slice the 3 real channels; f32 to match the PyTorch module's output dtype.
    return out[:n, :OUT_CH].astype(jnp.float32)


def _pick_tm(n):
    """Static row-tile bucket; per-core target so v7x's 2 TCs both get work."""
    target = -(-n // _NUM_TC)
    for tm in _TM_BUCKETS:
        if target <= tm:
            return tm
    return _TM_BUCKETS[-1]


def query_time_pallas(x, ts, packed):
    return _query_time_pallas(x, ts, packed, tm=_pick_tm(x.shape[0]))


# ------------------------------------------------------------------------------
# Module-level forward (matches DirectTemporalNeRF_scaling.forward semantics).
# ------------------------------------------------------------------------------
def forward(x, ts, iteration, packed):
    # "Only accepts all points from same time" — host-side check (forward is
    # intentionally not jitted; this assert would fail under tracing).
    assert len(np.unique(np.asarray(ts[:, :1]))) == 1, \
        "Only accepts all points from same time"
    _cur_time = ts[0, 0]  # unused downstream, kept for parity with PyTorch code
    if iteration < 3000:
        return jnp.zeros_like(x[:, :OUT_CH])
    return query_time_pallas(x, ts, packed)


# ------------------------------------------------------------------------------
# Pure-JAX reference for correctness checking.
# ------------------------------------------------------------------------------
def reference_query_time(x, ts, params, final):
    h = jnp.concatenate([x, ts], axis=-1)
    for i in range(D):
        w, b = params[i]
        h = jax.nn.relu(h @ w + b)
        if i in SKIPS:
            h = jnp.concatenate([x, h], axis=-1)
    wf, bf = final
    return h @ wf + bf


if __name__ == "__main__":
    key = jax.random.PRNGKey(0)
    kp, kx, kx2 = jax.random.split(key, 3)

    params, final = init_time_net(kp)
    packed = pack_params(params, final)

    # small example inputs: N points, 6 position channels, shared time value
    N = 16
    x = jax.random.normal(kx, (N, INPUT_CH), jnp.float32)
    ts = jnp.full((N, INPUT_CH_TIME), 0.5, jnp.float32)

    # iteration < 3000 branch: zeros
    dx_early = forward(x, ts, iteration=100, packed=packed)
    dx_early = jax.block_until_ready(dx_early)
    assert dx_early.shape == (N, OUT_CH)
    assert float(jnp.max(jnp.abs(dx_early))) == 0.0

    # iteration >= 3000 branch: Pallas time-MLP (single tile)
    dx = forward(x, ts, iteration=5000, packed=packed)
    dx = jax.block_until_ready(dx)
    assert dx.shape == (N, OUT_CH)
    ref = reference_query_time(x, ts, params, final)
    err = float(jnp.max(jnp.abs(dx - ref)))
    assert jnp.allclose(dx, ref, rtol=2e-2, atol=2e-2), f"max abs err = {err}"

    # second check exercising the multi-step tiled path (grid >= 2, padded tail)
    N2 = 1500
    x2 = jax.random.normal(kx2, (N2, INPUT_CH), jnp.float32)
    ts2 = jnp.full((N2, INPUT_CH_TIME), 0.5, jnp.float32)
    dx2 = jax.block_until_ready(forward(x2, ts2, iteration=5000, packed=packed))
    ref2 = reference_query_time(x2, ts2, params, final)
    err2 = float(jnp.max(jnp.abs(dx2 - ref2)))
    assert dx2.shape == (N2, OUT_CH)
    assert jnp.allclose(dx2, ref2, rtol=2e-2, atol=2e-2), f"max abs err = {err2}"

    print("KERNEL_OK")
</pallas_src>

<mosaic_0001>
module attributes {stable_mosaic.version = 11 : i64} {
  func.func @_time_net_kernel(%arg0: i32, %arg1: memref<128x8xbf16, #tpu.memory_space<vmem>>, %arg2: memref<8x512xbf16, #tpu.memory_space<vmem>>, %arg3: memref<7x256x256xbf16, #tpu.memory_space<vmem>>, %arg4: memref<8x256xf32, #tpu.memory_space<vmem>>, %arg5: memref<256x128xbf16, #tpu.memory_space<vmem>>, %arg6: memref<1x128xf32, #tpu.memory_space<vmem>>, %arg7: memref<128x128xbf16, #tpu.memory_space<vmem>>) attributes {dimension_semantics = [#tpu.dimension_semantics<parallel>], iteration_bounds = array<i64: 1>, scalar_prefetch = 0 : i64, scratch_operands = 0 : i64, tpu.core_type = #tpu.core_type<tc>, window_params = [{transform_indices = @transform_0, window_bounds = array<i64: 128, 8>}, {pipeline_mode = #tpu.pipeline_mode<synchronous>, transform_indices = @transform_1, window_bounds = array<i64: 8, 512>}, {pipeline_mode = #tpu.pipeline_mode<synchronous>, transform_indices = @transform_2, window_bounds = array<i64: 7, 256, 256>}, {pipeline_mode = #tpu.pipeline_mode<synchronous>, transform_indices = @transform_3, window_bounds = array<i64: 8, 256>}, {pipeline_mode = #tpu.pipeline_mode<synchronous>, transform_indices = @transform_4, window_bounds = array<i64: 256, 128>}, {pipeline_mode = #tpu.pipeline_mode<synchronous>, transform_indices = @transform_5, window_bounds = array<i64: 1, 128>}, {transform_indices = @transform_6, window_bounds = array<i64: 128, 128>}]} {
    %c0 = arith.constant 0 : index
    %c0_0 = arith.constant 0 : index
    %0 = vector.load %arg1[%c0, %c0_0] : memref<128x8xbf16, #tpu.memory_space<vmem>>, vector<128x8xbf16>
    %c0_1 = arith.constant 0 : index
    %c0_2 = arith.constant 0 : index
    %1 = vector.load %arg2[%c0_1, %c0_2] : memref<8x512xbf16, #tpu.memory_space<vmem>>, vector<8x512xbf16>
    %cst = arith.constant dense<0.000000e+00> : vector<128x512xf32>
    %2 = tpu.matmul %0, %1, %cst {dimension_numbers = #tpu.dot_dimension_numbers<[1], [0], [0], [1], [0, 0, 1, 1], [], []>} : vector<128x8xbf16>, vector<8x512xbf16>, vector<128x512xf32> -> vector<128x512xf32>
    %3 = vector.extract_strided_slice %2 {offsets = [0, 256], sizes = [128, 256], strides = [1, 1]} : vector<128x512xf32> to vector<128x256xf32>
    %4 = vector.extract_strided_slice %2 {offsets = [0, 0], sizes = [128, 256], strides = [1, 1]} : vector<128x512xf32> to vector<128x256xf32>
    %c0_3 = arith.constant 0 : index
    %c0_4 = arith.constant 0 : index
    %5 = vector.load %arg4[%c0_3, %c0_4] : memref<8x256xf32, #tpu.memory_space<vmem>>, vector<1x256xf32>
    %6 = vector.broadcast %5 : vector<1x256xf32> to vector<128x256xf32>
    %7 = arith.addf %4, %6 : vector<128x256xf32>
    %cst_5 = arith.constant 0.000000e+00 : f32
    %8 = vector.broadcast %cst_5 : f32 to vector<128x256xf32>
    %9 = arith.maximumf %7, %8 : vector<128x256xf32>
    %10 = arith.truncf %9 : vector<128x256xf32> to vector<128x256xbf16>
    %c0_6 = arith.constant 0 : index
    %c0_7 = arith.constant 0 : index
    %c0_8 = arith.constant 0 : index
    %11 = vector.load %arg3[%c0_6, %c0_7, %c0_8] : memref<7x256x256xbf16, #tpu.memory_space<vmem>>, vector<1x256x256xbf16>
    %12 = vector.shape_cast %11 : vector<1x256x256xbf16> to vector<256x256xbf16>
    %cst_9 = arith.constant dense<0.000000e+00> : vector<128x256xf32>
    %13 = tpu.matmul %10, %12, %cst_9 {dimension_numbers = #tpu.dot_dimension_numbers<[1], [0], [0], [1], [0, 0, 1, 1], [], []>} : vector<128x256xbf16>, vector<256x256xbf16>, vector<128x256xf32> -> vector<128x256xf32>
    %c1 = arith.constant 1 : index
    %c0_10 = arith.constant 0 : index
    %14 = vector.load %arg4[%c1, %c0_10] : memref<8x256xf32, #tpu.memory_space<vmem>>, vector<1x256xf32>
    %15 = vector.broadcast %14 : vector<1x256xf32> to vector<128x256xf32>
    %16 = arith.addf %13, %15 : vector<128x256xf32>
    %cst_11 = arith.constant 0.000000e+00 : f32
    %17 = vector.broadcast %cst_11 : f32 to vector<128x256xf32>
    %18 = arith.maximumf %16, %17 : vector<128x256xf32>
    %19 = arith.truncf %18 : vector<128x256xf32> to vector<128x256xbf16>
    %c1_12 = arith.constant 1 : index
    %c0_13 = arith.constant 0 : index
    %c0_14 = arith.constant 0 : index
    %20 = vector.load %arg3[%c1_12, %c0_13, %c0_14] : memref<7x256x256xbf16, #tpu.memory_space<vmem>>, vector<1x256x256xbf16>
    %21 = vector.shape_cast %20 : vector<1x256x256xbf16> to vector<256x256xbf16>
    %cst_15 = arith.constant dense<0.000000e+00> : vector<128x256xf32>
    %22 = tpu.matmul %19, %21, %cst_15 {dimension_numbers = #tpu.dot_dimension_numbers<[1], [0], [0], [1], [0, 0, 1, 1], [], []>} : vector<128x256xbf16>, vector<256x256xbf16>, vector<128x256xf32> -> vector<128x256xf32>
    %c2 = arith.constant 2 : index
    %c0_16 = arith.constant 0 : index
    %23 = vector.load %arg4[%c2, %c0_16] : memref<8x256xf32, #tpu.memory_space<vmem>>, vector<1x256xf32>
    %24 = vector.broadcast %23 : vector<1x256xf32> to vector<128x256xf32>
    %25 = arith.addf %22, %24 : vector<128x256xf32>
    %cst_17 = arith.constant 0.000000e+00 : f32
    %26 = vector.broadcast %cst_17 : f32 to vector<128x256xf32>
    %27 = arith.maximumf %25, %26 : vector<128x256xf32>
    %28 = arith.truncf %27 : vector<128x256xf32> to vector<128x256xbf16>
    %c2_18 = arith.constant 2 : index
    %c0_19 = arith.constant 0 : index
    %c0_20 = arith.constant 0 : index
    %29 = vector.load %arg3[%c2_18, %c0_19, %c0_20] : memref<7x256x256xbf16, #tpu.memory_space<vmem>>, vector<1x256x256xbf16>
    %30 = vector.shape_cast %29 : vector<1x256x256xbf16> to vector<256x256xbf16>
    %cst_21 = arith.constant dense<0.000000e+00> : vector<128x256xf32>
    %31 = tpu.matmul %28, %30, %cst_21 {dimension_numbers = #tpu.dot_dimension_numbers<[1], [0], [0], [1], [0, 0, 1, 1], [], []>} : vector<128x256xbf16>, vector<256x256xbf16>, vector<128x256xf32> -> vector<128x256xf32>
    %c3 = arith.constant 3 : index
    %c0_22 = arith.constant 0 : index
    %32 = vector.load %arg4[%c3, %c0_22] : memref<8x256xf32, #tpu.memory_space<vmem>>, vector<1x256xf32>
    %33 = vector.broadcast %32 : vector<1x256xf32> to vector<128x256xf32>
    %34 = arith.addf %31, %33 : vector<128x256xf32>
    %cst_23 = arith.constant 0.000000e+00 : f32
    %35 = vector.broadcast %cst_23 : f32 to vector<128x256xf32>
    %36 = arith.maximumf %34, %35 : vector<128x256xf32>
    %37 = arith.truncf %36 : vector<128x256xf32> to vector<128x256xbf16>
    %c3_24 = arith.constant 3 : index
    %c0_25 = arith.constant 0 : index
    %c0_26 = arith.constant 0 : index
    %38 = vector.load %arg3[%c3_24, %c0_25, %c0_26] : memref<7x256x256xbf16, #tpu.memory_space<vmem>>, vector<1x256x256xbf16>
    %39 = vector.shape_cast %38 : vector<1x256x256xbf16> to vector<256x256xbf16>
    %cst_27 = arith.constant dense<0.000000e+00> : vector<128x256xf32>
    %40 = tpu.matmul %37, %39, %cst_27 {dimension_numbers = #tpu.dot_dimension_numbers<[1], [0], [0], [1], [0, 0, 1, 1], [], []>} : vector<128x256xbf16>, vector<256x256xbf16>, vector<128x256xf32> -> vector<128x256xf32>
    %c4 = arith.constant 4 : index
    %c0_28 = arith.constant 0 : index
    %41 = vector.load %arg4[%c4, %c0_28] : memref<8x256xf32, #tpu.memory_space<vmem>>, vector<1x256xf32>
    %42 = vector.broadcast %41 : vector<1x256xf32> to vector<128x256xf32>
    %43 = arith.addf %40, %42 : vector<128x256xf32>
    %cst_29 = arith.constant 0.000000e+00 : f32
    %44 = vector.broadcast %cst_29 : f32 to vector<128x256xf32>
    %45 = arith.maximumf %43, %44 : vector<128x256xf32>
    %46 = arith.truncf %45 : vector<128x256xf32> to vector<128x256xbf16>
    %c4_30 = arith.constant 4 : index
    %c0_31 = arith.constant 0 : index
    %c0_32 = arith.constant 0 : index
    %47 = vector.load %arg3[%c4_30, %c0_31, %c0_32] : memref<7x256x256xbf16, #tpu.memory_space<vmem>>, vector<1x256x256xbf16>
    %48 = vector.shape_cast %47 : vector<1x256x256xbf16> to vector<256x256xbf16>
    %cst_33 = arith.constant dense<0.000000e+00> : vector<128x256xf32>
    %49 = tpu.matmul %46, %48, %cst_33 {dimension_numbers = #tpu.dot_dimension_numbers<[1], [0], [0], [1], [0, 0, 1, 1], [], []>} : vector<128x256xbf16>, vector<256x256xbf16>, vector<128x256xf32> -> vector<128x256xf32>
    %50 = arith.addf %49, %3 : vector<128x256xf32>
    %c5 = arith.constant 5 : index
    %c0_34 = arith.constant 0 : index
    %51 = vector.load %arg4[%c5, %c0_34] : memref<8x256xf32, #tpu.memory_space<vmem>>, vector<1x256xf32>
    %52 = vector.broadcast %51 : vector<1x256xf32> to vector<128x256xf32>
    %53 = arith.addf %50, %52 : vector<128x256xf32>
    %cst_35 = arith.constant 0.000000e+00 : f32
    %54 = vector.broadcast %cst_35 : f32 to vector<128x256xf32>
    %55 = arith.maximumf %53, %54 : vector<128x256xf32>
    %56 = arith.truncf %55 : vector<128x256xf32> to vector<128x256xbf16>
    %c5_36 = arith.constant 5 : index
    %c0_37 = arith.constant 0 : index
    %c0_38 = arith.constant 0 : index
    %57 = vector.load %arg3[%c5_36, %c0_37, %c0_38] : memref<7x256x256xbf16, #tpu.memory_space<vmem>>, vector<1x256x256xbf16>
    %58 = vector.shape_cast %57 : vector<1x256x256xbf16> to vector<256x256xbf16>
    %cst_39 = arith.constant dense<0.000000e+00> : vector<128x256xf32>
    %59 = tpu.matmul %56, %58, %cst_39 {dimension_numbers = #tpu.dot_dimension_numbers<[1], [0], [0], [1], [0, 0, 1, 1], [], []>} : vector<128x256xbf16>, vector<256x256xbf16>, vector<128x256xf32> -> vector<128x256xf32>
    %c6 = arith.constant 6 : index
    %c0_40 = arith.constant 0 : index
    %60 = vector.load %arg4[%c6, %c0_40] : memref<8x256xf32, #tpu.memory_space<vmem>>, vector<1x256xf32>
    %61 = vector.broadcast %60 : vector<1x256xf32> to vector<128x256xf32>
    %62 = arith.addf %59, %61 : vector<128x256xf32>
    %cst_41 = arith.constant 0.000000e+00 : f32
    %63 = vector.broadcast %cst_41 : f32 to vector<128x256xf32>
    %64 = arith.maximumf %62, %63 : vector<128x256xf32>
    %65 = arith.truncf %64 : vector<128x256xf32> to vector<128x256xbf16>
    %c6_42 = arith.constant 6 : index
    %c0_43 = arith.constant 0 : index
    %c0_44 = arith.constant 0 : index
    %66 = vector.load %arg3[%c6_42, %c0_43, %c0_44] : memref<7x256x256xbf16, #tpu.memory_space<vmem>>, vector<1x256x256xbf16>
    %67 = vector.shape_cast %66 : vector<1x256x256xbf16> to vector<256x256xbf16>
    %cst_45 = arith.constant dense<0.000000e+00> : vector<128x256xf32>
    %68 = tpu.matmul %65, %67, %cst_45 {dimension_numbers = #tpu.dot_dimension_numbers<[1], [0], [0], [1], [0, 0, 1, 1], [], []>} : vector<128x256xbf16>, vector<256x256xbf16>, vector<128x256xf32> -> vector<128x256xf32>
    %c7 = arith.constant 7 : index
    %c0_46 = arith.constant 0 : index
    %69 = vector.load %arg4[%c7, %c0_46] : memref<8x256xf32, #tpu.memory_space<vmem>>, vector<1x256xf32>
    %70 = vector.broadcast %69 : vector<1x256xf32> to vector<128x256xf32>
    %71 = arith.addf %68, %70 : vector<128x256xf32>
    %cst_47 = arith.constant 0.000000e+00 : f32
    %72 = vector.broadcast %cst_47 : f32 to vector<128x256xf32>
    %73 = arith.maximumf %71, %72 : vector<128x256xf32>
    %74 = arith.truncf %73 : vector<128x256xf32> to vector<128x256xbf16>
    %c0_48 = arith.constant 0 : index
    %c0_49 = arith.constant 0 : index
    %75 = vector.load %arg5[%c0_48, %c0_49] : memref<256x128xbf16, #tpu.memory_space<vmem>>, vector<256x128xbf16>
    %cst_50 = arith.constant dense<0.000000e+00> : vector<128x128xf32>
    %76 = tpu.matmul %74, %75, %cst_50 {dimension_numbers = #tpu.dot_dimension_numbers<[1], [0], [0], [1], [0, 0, 1, 1], [], []>} : vector<128x256xbf16>, vector<256x128xbf16>, vector<128x128xf32> -> vector<128x128xf32>
    %c0_51 = arith.constant 0 : index
    %c0_52 = arith.constant 0 : index
    %77 = vector.load %arg6[%c0_51, %c0_52] : memref<1x128xf32, #tpu.memory_space<vmem>>, vector<1x128xf32>
    %78 = vector.broadcast %77 : vector<1x128xf32> to vector<128x128xf32>
    %79 = arith.addf %76, %78 : vector<128x128xf32>
    %80 = arith.truncf %79 : vector<128x128xf32> to vector<128x128xbf16>
    %c0_53 = arith.constant 0 : index
    %c0_54 = arith.constant 0 : index
    %81 = vector.load %arg7[%c0_53, %c0_54] : memref<128x128xbf16, #tpu.memory_space<vmem>>, vector<128x128xbf16>
    tpu.vector_store %arg7[%c0_53, %c0_54], %80 {strides = array<i32>} : memref<128x128xbf16, #tpu.memory_space<vmem>>, vector<128x128xbf16>,
    return
  }
  func.func @transform_0(%arg0: i32) -> (i32, i32) {
    %c0_i32 = arith.constant 0 : i32
    %c0_i32_0 = arith.constant 0 : i32
    return %arg0, %c0_i32 : i32, i32
  }
  func.func @transform_1(%arg0: i32) -> (i32, i32) {
    %c0_i32 = arith.constant 0 : i32
    %c0_i32_0 = arith.constant 0 : i32
    %c0_i32_1 = arith.constant 0 : i32
    return %c0_i32, %c0_i32_0 : i32, i32
  }
  func.func @transform_2(%arg0: i32) -> (i32, i32, i32) {
    %c0_i32 = arith.constant 0 : i32
    %c0_i32_0 = arith.constant 0 : i32
    %c0_i32_1 = arith.constant 0 : i32
    %c0_i32_2 = arith.constant 0 : i32
    return %c0_i32, %c0_i32_0, %c0_i32_1 : i32, i32, i32
  }
  func.func @transform_3(%arg0: i32) -> (i32, i32) {
    %c0_i32 = arith.constant 0 : i32
    %c0_i32_0 = arith.constant 0 : i32
    %c0_i32_1 = arith.constant 0 : i32
    return %c0_i32, %c0_i32_0 : i32, i32
  }
  func.func @transform_4(%arg0: i32) -> (i32, i32) {
    %c0_i32 = arith.constant 0 : i32
    %c0_i32_0 = arith.constant 0 : i32
    %c0_i32_1 = arith.constant 0 : i32
    return %c0_i32, %c0_i32_0 : i32, i32
  }
  func.func @transform_5(%arg0: i32) -> (i32, i32) {
    %c0_i32 = arith.constant 0 : i32
    %c0_i32_0 = arith.constant 0 : i32
    %c0_i32_1 = arith.constant 0 : i32
    return %c0_i32, %c0_i32_0 : i32, i32
  }
  func.func @transform_6(%arg0: i32) -> (i32, i32) {
    %c0_i32 = arith.constant 0 : i32
    %c0_i32_0 = arith.constant 0 : i32
    return %arg0, %c0_i32 : i32, i32
  }
}

</mosaic_0001>

<llo_original>
// kernel: _query_time_pallas.1
$region0: #{_query_time_pallas.1}
  #allocation0 [shape = 'u32[]', space=smem, size = 0x4, offset = 0x4, fixed_abs, tag = 'smem constant byte address 0x4 - core index']
  #allocation1 [shape = 'u32[144,128]{1,0:T(1,128)}', space=vmem, size = 0x12000, scoped, tag = 'internal scratch']
  %s0 = inlined_call_operand.vmem [shape: bf16[128,8], index: 0, kind: input, shape index: {}]
  %s1 = inlined_call_operand.hbm [shape: bf16[8,512], index: 1, kind: input, shape index: {}]
  %s2 = inlined_call_operand.hbm [shape: bf16[7,256,256], index: 2, kind: input, shape index: {}]
  %s3 = inlined_call_operand.hbm [shape: f32[8,256], index: 3, kind: input, shape index: {}]
  %s4 = inlined_call_operand.vmem [shape: bf16[256,128], index: 4, kind: input, shape index: {}]
  %s5 = inlined_call_operand.vmem [shape: f32[1,128], index: 5, kind: input, shape index: {}]
  %s6 = inlined_call_operand.vmem [shape: bf16[128,128], index: 6, kind: output, shape index: {}]
  %s7 = sld [smem:[#allocation0]]
  $region46: #{_query_time_pallas.1} parent=0
    _
  %s9 = ssub.s32 1, %s7
  %s10 = scalar_select 0, %s9, %s7
  $region1: #{_query_time_pallas.1} parent=0
    #allocation2 [shape = 'u8[8192]{0}', space=vmem, size = 0x2000, scoped, tag = 'input window, operand 1, single buffered']
    #allocation3 [shape = 's32[1]{0}', space=sflag, size = 0x4, scoped, tag = 'scoped memory for _query_time_pallas.1']
    #allocation4 [shape = 'u8[917504]{0}', space=vmem, size = 0xe0000, scoped, tag = 'input window, operand 2, single buffered']
    #allocation5 [shape = 's32[1]{0}', space=sflag, size = 0x4, scoped, tag = 'scoped memory for _query_time_pallas.1']
    #allocation6 [shape = 'u8[8192]{0}', space=vmem, size = 0x2000, scoped, tag = 'input window, operand 3, single buffered']
    %11 = vsyncpa [#allocation3], 0
    %12 = vsyncpa [#allocation5], 0
    // Predicated region
    $region2: #{_query_time_pallas.1} parent=1 // pred_check
      _
    $region3: #{_query_time_pallas.1} parent=1 // pred_check_branch
      %14 = sbr.rel (0) target = $region5
    $region4: #{_query_time_pallas.1} parent=1 // pred_region
      _
    $region5: #{_query_time_pallas.1} parent=1 // pred_fallthru
      _
    // Predicated region
    $region6: #{_query_time_pallas.1} parent=1 // pred_check
      _
    $region7: #{_query_time_pallas.1} parent=1 // pred_check_branch
      %16 = sbr.rel (0) target = $region9
    $region8: #{_query_time_pallas.1} parent=1 // pred_region
      %s18 = ssub.s32 256, 256
      %19 = vsyncadd [#allocation3], %s18
      %s21 = sshll.u32 [#allocation2], 4
      %s22 = int_to_ptr.vmem [resolvable:$true] %s21
      %24 = dma.hbm_to_vmem [thread:$0]  %s1, 256, %s22, [#allocation3]
    $region9: #{_query_time_pallas.1} parent=1 // pred_fallthru
      _
    // Predicated region
    $region10: #{_query_time_pallas.1} parent=1 // pred_check
      _
    $region11: #{_query_time_pallas.1} parent=1 // pred_check_branch
      %26 = sbr.rel (0) target = $region13
    $region12: #{_query_time_pallas.1} parent=1 // pred_region
      %s28 = ssub.s32 28672, 28672
      %29 = vsyncadd [#allocation5], %s28
      %s30 = sshll.u32 [#allocation4], 4
      %s31 = int_to_ptr.vmem [resolvable:$true] %s30
      %36 = dma.hbm_to_vmem [thread:$0]  %s2, 28672, %s31, [#allocation5], 128, 128, 8
    $region13: #{_query_time_pallas.1} parent=1 // pred_fallthru
      _
    // Predicated region
    $region14: #{_query_time_pallas.1} parent=1 // pred_check
      _
    $region15: #{_query_time_pallas.1} parent=1 // pred_check_branch
      %38 = sbr.rel (0) target = $region17
    $region16: #{_query_time_pallas.1} parent=1 // pred_region
      %s40 = ssub.s32 256, 256
      %41 = vsyncadd [#allocation5], %s40
      %s43 = sshll.u32 [#allocation6], 4
      %s44 = int_to_ptr.vmem [resolvable:$true] %s43
      %46 = dma.hbm_to_vmem [thread:$0]  %s3, 256, %s44, [#allocation5]
    $region17: #{_query_time_pallas.1} parent=1 // pred_fallthru
      _
    // Predicated region
    $region18: #{_query_time_pallas.1} parent=1 // pred_check
      _
    $region19: #{_query_time_pallas.1} parent=1 // pred_check_branch
      %48 = sbr.rel (0) target = $region21
    $region20: #{_query_time_pallas.1} parent=1 // pred_region
      _
    $region21: #{_query_time_pallas.1} parent=1 // pred_fallthru
      _
    // Predicated region
    $region22: #{_query_time_pallas.1} parent=1 // pred_check
      _
    $region23: #{_query_time_pallas.1} parent=1 // pred_check_branch
      %50 = sbr.rel (0) target = $region25
    $region24: #{_query_time_pallas.1} parent=1 // pred_region
      _
    $region25: #{_query_time_pallas.1} parent=1 // pred_fallthru
      _
    // Predicated region
    $region26: #{_query_time_pallas.1} parent=1 // pred_check
      _
    $region27: #{_query_time_pallas.1} parent=1 // pred_check_branch
      %52 = sbr.rel (0) target = $region29
    $region28: #{_query_time_pallas.1} parent=1 // pred_region
      %53 = dma.done [#allocation3], 256
    $region29: #{_query_time_pallas.1} parent=1 // pred_fallthru
      _
    // Predicated region
    $region30: #{_query_time_pallas.1} parent=1 // pred_check
      _
    $region31: #{_query_time_pallas.1} parent=1 // pred_check_branch
      %55 = sbr.rel (0) target = $region33
    $region32: #{_query_time_pallas.1} parent=1 // pred_region
      %56 = dma.done [#allocation5], 28672
    $region33: #{_query_time_pallas.1} parent=1 // pred_fallthru
      _
    // Predicated region
    $region34: #{_query_time_pallas.1} parent=1 // pred_check
      _
    $region35: #{_query_time_pallas.1} parent=1 // pred_check_branch
      %58 = sbr.rel (0) target = $region37
    $region36: #{_query_time_pallas.1} parent=1 // pred_region
      %59 = dma.done [#allocation5], 256
    $region37: #{_query_time_pallas.1} parent=1 // pred_fallthru
      _
    %v61 = vld [vmem:[%s0] sm:$0xf]
    %v62 = vld [vmem:[%s0 + $0x4] sm:$0xf]
    %v63 = vld [vmem:[%s0 + $0x8] sm:$0xf]
    %v64 = vld [vmem:[%s0 + $0xc] sm:$0xf]
    %v65 = vld [vmem:[%s0 + $0x10] sm:$0xf]
    %v66 = vld [vmem:[%s0 + $0x14] sm:$0xf]
    %v67 = vld [vmem:[%s0 + $0x18] sm:$0xf]
    %v68 = vld [vmem:[%s0 + $0x1c] sm:$0xf]
    %v69 = vld [vmem:[%s0 + $0x20] sm:$0xf]
    %v70 = vld [vmem:[%s0 + $0x24] sm:$0xf]
    %v71 = vld [vmem:[%s0 + $0x28] sm:$0xf]
    %v72 = vld [vmem:[%s0 + $0x2c] sm:$0xf]
    %v73 = vld [vmem:[%s0 + $0x30] sm:$0xf]
    %v74 = vld [vmem:[%s0 + $0x34] sm:$0xf]
    %v75 = vld [vmem:[%s0 + $0x38] sm:$0xf]
    %v76 = vld [vmem:[%s0 + $0x3c] sm:$0xf]
    %v77 = vld [vmem:[#allocation2] sm:$0xff]
    %v78 = vld [vmem:[#allocation2 + $0x8] sm:$0xff]
    %v95 = vunpack.c.l.b16 %v61
    %v96 = vunpack.c.l.b16 %v62
    %v97 = vunpack.c.l.b16 %v63
    %v98 = vunpack.c.l.b16 %v64
    %v99 = vunpack.c.l.b16 %v65
    %v100 = vunpack.c.l.b16 %v66
    %v101 = vunpack.c.l.b16 %v67
    %v102 = vunpack.c.l.b16 %v68
    %v103 = vunpack.c.l.b16 %v69
    %v104 = vunpack.c.l.b16 %v70
    %v105 = vunpack.c.l.b16 %v71
    %v106 = vunpack.c.l.b16 %v72
    %v107 = vunpack.c.l.b16 %v73
    %v108 = vunpack.c.l.b16 %v74
    %v109 = vunpack.c.l.b16 %v75
    %v110 = vunpack.c.l.b16 %v76
    %v111 = vpack.c.b16 %v96, %v95
    %v112 = vpack.c.b16 %v98, %v97
    %v113 = vpack.c.b16 %v100, %v99
    %v114 = vpack.c.b16 %v102, %v101
    %v115 = vpack.c.b16 %v104, %v103
    %v116 = vpack.c.b16 %v106, %v105
    %v117 = vpack.c.b16 %v108, %v107
    %v118 = vpack.c.b16 %v110, %v109
    %v121 = vunpack.c.l.b16 %v77
    %v122 = vunpack.c.h.b16 %v77
    %v123 = vunpack.c.l.b16 %v78
    %v124 = vunpack.c.h.b16 %v78
    %v125 = vpack.c.b16 %v121, %v121
    %v126 = vpack.c.b16 %v122, %v122
    %v127 = vpack.c.b16 %v123, %v123
    %v128 = vpack.c.b16 %v124, %v124
    %vm129 = vcmask 64512
    %v131 = vsel %vm129, %v111, 0
    %v134 = vsel %vm129, %v112, 0
    %v137 = vsel %vm129, %v113, 0
    %v140 = vsel %vm129, %v114, 0
    %v143 = vsel %vm129, %v115, 0
    %v146 = vsel %vm129, %v116, 0
    %v149 = vsel %vm129, %v117, 0
    %v152 = vsel %vm129, %v118, 0
    %vm154 = vcmask 1043456
    %v156 = vsel %vm154, %v125, 0
    %v159 = vsel %vm154, %v126, 0
    %v162 = vsel %vm154, %v127, 0
    %v165 = vsel %vm154, %v128, 0
    %167 = vmatprep.subr.bf16.mxu0 %v159
    %168 = vmatpush1.bf16.msra.mxu0 %v156
    %169 = vmatprep.subr.bf16.mxu0 0
    %170 = vmatpush1.bf16.msra.mxu0 0
    %171 = vmatprep.subr.bf16.mxu0 0
    %172 = vmatpush1.bf16.msra.mxu0 0
    %173 = vmatprep.subr.bf16.mxu0 0
    %174 = vmatpush1.bf16.msra.mxu0 0
    %175 = vmatprep.subr.bf16.mxu0 0
    %176 = vmatpush1.bf16.msra.mxu0 0
    %177 = vmatprep.subr.bf16.mxu0 0
    %178 = vmatpush1.bf16.msra.mxu0 0
    %179 = vmatprep.subr.bf16.mxu0 0
    %180 = vmatpush1.bf16.msra.mxu0 0
    %181 = vmatprep.subr.bf16.mxu0 0
    %182 = vmatpush1.bf16.msra.mxu0 0
    %183 = vmatprep.subr.bf16.mxu0 0
    %184 = vmatpush1.bf16.msra.mxu0 0
    %185 = vmatprep.subr.bf16.mxu0 0
    %186 = vmatpush1.bf16.msra.mxu0 0
    %187 = vmatprep.subr.bf16.mxu0 0
    %188 = vmatpush1.bf16.msra.mxu0 0
    %189 = vmatprep.subr.bf16.mxu0 0
    %190 = vmatpush1.bf16.msra.mxu0 0
    %191 = vmatprep.subr.bf16.mxu0 0
    %192 = vmatpush1.bf16.msra.mxu0 0
    %193 = vmatprep.subr.bf16.mxu0 0
    %194 = vmatpush1.bf16.msra.mxu0 0
    %195 = vmatprep.subr.bf16.mxu0 0
    %196 = vmatpush1.bf16.msra.mxu0 0
    %197 = vmatprep.subr.bf16.mxu0 0
    %198 = vmatpush1.bf16.msra.mxu0 0
    %199 = vmatprep.mubr.bf16.mxu0 0
    %200 = vmatmul.mubr.bf16.gmra.mrb[0].mxu0 %v131
    %v201 = vpop.f32.mrb[0].mxu0
    %v202 = vadd.f32 0.0, %v201
    %v203 = vpop.f32.mrb[0].mxu0
    %v204 = vadd.f32 0.0, %v203
    %v205 = vpop.f32.mrb[0].mxu0
    %v206 = vadd.f32 0.0, %v205
    %v207 = vpop.f32.mrb[0].mxu0
    %v208 = vadd.f32 0.0, %v207
    %209 = vmatprep.mubr.bf16.mxu0 0
    %210 = vmatmul.mubr.bf16.gmra.mrb[0].mxu0 %v134
    %v211 = vpop.f32.mrb[0].mxu0
    %v212 = vadd.f32 0.0, %v211
    %v213 = vpop.f32.mrb[0].mxu0
    %v214 = vadd.f32 0.0, %v213
    %v215 = vpop.f32.mrb[0].mxu0
    %v216 = vadd.f32 0.0, %v215
    %v217 = vpop.f32.mrb[0].mxu0
    %v218 = vadd.f32 0.0, %v217
    %219 = vmatprep.mubr.bf16.mxu0 0
    %220 = vmatmul.mubr.bf16.gmra.mrb[0].mxu0 %v137
    %v221 = vpop.f32.mrb[0].mxu0
    %v222 = vadd.f32 0.0, %v221
    %v223 = vpop.f32.mrb[0].mxu0
    %v224 = vadd.f32 0.0, %v223
    %v225 = vpop.f32.mrb[0].mxu0
    %v226 = vadd.f32 0.0, %v225
    %v227 = vpop.f32.mrb[0].mxu0
    %v228 = vadd.f32 0.0, %v227
    %229 = vmatprep.mubr.bf16.mxu0 0
    %230 = vmatmul.mubr.bf16.gmra.mrb[0].mxu0 %v140
    %v231 = vpop.f32.mrb[0].mxu0
    %v232 = vadd.f32 0.0, %v231
    %v233 = vpop.f32.mrb[0].mxu0
    %v234 = vadd.f32 0.0, %v233
    %v235 = vpop.f32.mrb[0].mxu0
    %v236 = vadd.f32 0.0, %v235
    %v237 = vpop.f32.mrb[0].mxu0
    %v238 = vadd.f32 0.0, %v237
    %239 = vmatprep.mubr.bf16.mxu0 0
    %240 = vmatmul.mubr.bf16.gmra.mrb[0].mxu0 %v143
    %v241 = vpop.f32.mrb[0].mxu0
    %v242 = vadd.f32 0.0, %v241
    %v243 = vpop.f32.mrb[0].mxu0
    %v244 = vadd.f32 0.0, %v243
    %v245 = vpop.f32.mrb[0].mxu0
    %v246 = vadd.f32 0.0, %v245
    %v247 = vpop.f32.mrb[0].mxu0
    %v248 = vadd.f32 0.0, %v247
    %249 = vmatprep.mubr.bf16.mxu0 0
    %250 = vmatmul.mubr.bf16.gmra.mrb[0].mxu0 %v146
    %v251 = vpop.f32.mrb[0].mxu0
    %v252 = vadd.f32 0.0, %v251
    %v253 = vpop.f32.mrb[0].mxu0
    %v254 = vadd.f32 0.0, %v253
    %v255 = vpop.f32.mrb[0].mxu0
    %v256 = vadd.f32 0.0, %v255
    %v257 = vpop.f32.mrb[0].mxu0
    %v258 = vadd.f32 0.0, %v257
    %259 = vmatprep.mubr.bf16.mxu0 0
    %260 = vmatmul.mubr.bf16.gmra.mrb[0].mxu0 %v149
    %v261 = vpop.f32.mrb[0].mxu0
    %v262 = vadd.f32 0.0, %v261
    %v263 = vpop.f32.mrb[0].mxu0
    %v264 = vadd.f32 0.0, %v263
    %v265 = vpop.f32.mrb[0].mxu0
    %v266 = vadd.f32 0.0, %v265
    %v267 = vpop.f32.mrb[0].mxu0
    %v268 = vadd.f32 0.0, %v267
    %269 = vmatprep.mubr.bf16.mxu0 0
    %270 = vmatmul.mubr.bf16.gmra.mrb[0].mxu0 %v152
    %v271 = vpop.f32.mrb[0].mxu0
    %v272 = vadd.f32 0.0, %v271
    %v273 = vpop.f32.mrb[0].mxu0
    %v274 = vadd.f32 0.0, %v273
    %v275 = vpop.f32.mrb[0].mxu0
    %v276 = vadd.f32 0.0, %v275
    %v277 = vpop.f32.mrb[0].mxu0
    %v278 = vadd.f32 0.0, %v277
    %279 = vdwg.mxu0
    %280 = vmatprep.subr.bf16.mxu0 %v165
    %281 = vmatpush1.bf16.msra.mxu0 %v162
    %282 = vmatprep.subr.bf16.mxu0 0
    %283 = vmatpush1.bf16.msra.mxu0 0
    %284 = vmatprep.subr.bf16.mxu0 0
    %285 = vmatpush1.bf16.msra.mxu0 0
    %286 = vmatprep.subr.bf16.mxu0 0
    %287 = vmatpush1.bf16.msra.mxu0 0
    %288 = vmatprep.subr.bf16.mxu0 0
    %289 = vmatpush1.bf16.msra.mxu0 0
    %290 = vmatprep.subr.bf16.mxu0 0
    %291 = vmatpush1.bf16.msra.mxu0 0
    %292 = vmatprep.subr.bf16.mxu0 0
    %293 = vmatpush1.bf16.msra.mxu0 0
    %294 = vmatprep.subr.bf16.mxu0 0
    %295 = vmatpush1.bf16.msra.mxu0 0
    %296 = vmatprep.subr.bf16.mxu0 0
    %297 = vmatpush1.bf16.msra.mxu0 0
    %298 = vmatprep.subr.bf16.mxu0 0
    %299 = vmatpush1.bf16.msra.mxu0 0
    %300 = vmatprep.subr.bf16.mxu0 0
    %301 = vmatpush1.bf16.msra.mxu0 0
    %302 = vmatprep.subr.bf16.mxu0 0
    %303 = vmatpush1.bf16.msra.mxu0 0
    %304 = vmatprep.subr.bf16.mxu0 0
    %305 = vmatpush1.bf16.msra.mxu0 0
    %306 = vmatprep.subr.bf16.mxu0 0
    %307 = vmatpush1.bf16.msra.mxu0 0
    %308 = vmatprep.subr.bf16.mxu0 0
    %309 = vmatpush1.bf16.msra.mxu0 0
    %310 = vmatprep.subr.bf16.mxu0 0
    %311 = vmatpush1.bf16.msra.mxu0 0
    %312 = vmatprep.mubr.bf16.mxu0 0
    %313 = vmatmul.mubr.bf16.gmra.mrb[0].mxu0 %v131
    %v314 = vpop.f32.mrb[0].mxu0
    %v315 = vadd.f32 0.0, %v314
    %v316 = vpop.f32.mrb[0].mxu0
    %v317 = vadd.f32 0.0, %v316
    %v318 = vpop.f32.mrb[0].mxu0
    %v319 = vadd.f32 0.0, %v318
    %v320 = vpop.f32.mrb[0].mxu0
    %v321 = vadd.f32 0.0, %v320
    %322 = vmatprep.mubr.bf16.mxu0 0
    %323 = vmatmul.mubr.bf16.gmra.mrb[0].mxu0 %v134
    %v324 = vpop.f32.mrb[0].mxu0
    %v325 = vadd.f32 0.0, %v324
    %v326 = vpop.f32.mrb[0].mxu0
    %v327 = vadd.f32 0.0, %v326
    %v328 = vpop.f32.mrb[0].mxu0
    %v329 = vadd.f32 0.0, %v328
    %v330 = vpop.f32.mrb[0].mxu0
    %v331 = vadd.f32 0.0, %v330
    %332 = vmatprep.mubr.bf16.mxu0 0
    %333 = vmatmul.mubr.bf16.gmra.mrb[0].mxu0 %v137
    %v334 = vpop.f32.mrb[0].mxu0
    %v335 = vadd.f32 0.0, %v334
    %v336 = vpop.f32.mrb[0].mxu0
    %v337 = vadd.f32 0.0, %v336
    %v338 = vpop.f32.mrb[0].mxu0
    %v339 = vadd.f32 0.0, %v338
    %v340 = vpop.f32.mrb[0].mxu0
    %v341 = vadd.f32 0.0, %v340
    %342 = vmatprep.mubr.bf16.mxu0 0
    %343 = vmatmul.mubr.bf16.gmra.mrb[0].mxu0 %v140
    %v344 = vpop.f32.mrb[0].mxu0
    %v345 = vadd.f32 0.0, %v344
    %v346 = vpop.f32.mrb[0].mxu0
    %v347 = vadd.f32 0.0, %v346
    %v348 = vpop.f32.mrb[0].mxu0
    %v349 = vadd.f32 0.0, %v348
    %v350 = vpop.f32.mrb[0].mxu0
    %v351 = vadd.f32 0.0, %v350
    %352 = vmatprep.mubr.bf16.mxu0 0
    %353 = vmatmul.mubr.bf16.gmra.mrb[0].mxu0 %v143
    %v354 = vpop.f32.mrb[0].mxu0
    %v355 = vadd.f32 0.0, %v354
    %v356 = vpop.f32.mrb[0].mxu0
    %v357 = vadd.f32 0.0, %v356
    %v358 = vpop.f32.mrb[0].mxu0
    %v359 = vadd.f32 0.0, %v358
    %v360 = vpop.f32.mrb[0].mxu0
    %v361 = vadd.f32 0.0, %v360
    %362 = vmatprep.mubr.bf16.mxu0 0
    %363 = vmatmul.mubr.bf16.gmra.mrb[0].mxu0 %v146
    %v364 = vpop.f32.mrb[0].mxu0
    %v365 = vadd.f32 0.0, %v364
    %v366 = vpop.f32.mrb[0].mxu0
    %v367 = vadd.f32 0.0, %v366
    %v368 = vpop.f32.mrb[0].mxu0
    %v369 = vadd.f32 0.0, %v368
    %v370 = vpop.f32.mrb[0].mxu0
    %v371 = vadd.f32 0.0, %v370
    %372 = vmatprep.mubr.bf16.mxu0 0
    %373 = vmatmul.mubr.bf16.gmra.mrb[0].mxu0 %v149
    %v374 = vpop.f32.mrb[0].mxu0
    %v375 = vadd.f32 0.0, %v374
    %v376 = vpop.f32.mrb[0].mxu0
    %v377 = vadd.f32 0.0, %v376
    %v378 = vpop.f32.mrb[0].mxu0
    %v379 = vadd.f32 0.0, %v378
    %v380 = vpop.f32.mrb[0].mxu0
    %v381 = vadd.f32 0.0, %v380
    %382 = vmatprep.mubr.bf16.mxu0 0
    %383 = vmatmul.mubr.bf16.gmra.mrb[0].mxu0 %v152
    %v384 = vpop.f32.mrb[0].mxu0
    %v385 = vadd.f32 0.0, %v384
    %v386 = vpop.f32.mrb[0].mxu0
    %v387 = vadd.f32 0.0, %v386
    %v388 = vpop.f32.mrb[0].mxu0
    %v389 = vadd.f32 0.0, %v388
    %v390 = vpop.f32.mrb[0].mxu0
    %v391 = vadd.f32 0.0, %v390
    %392 = vdwg.mxu0
    %v393 = vld [vmem:[#allocation6] ss:$8 sm:$0x3]
    %v395 = vlaneseq
    %v396 = vshrl.u32 %v395, 7
    %v397 = vsub.s32 0, %v396
    %v398 = vrot.slane %v393, %v397
    %v399 = vlaneseq
    %v400 = vshrl.u32 %v399, 7
    %v401 = vsub.s32 1, %v400
    %v402 = vrot.slane %v393, %v401
    %v405 = vadd.f32 %v202, %v398
    %v406 = vadd.f32 %v204, %v402
    %v407 = vadd.f32 %v206, %v398
    %v408 = vadd.f32 %v208, %v402
    %v409 = vadd.f32 %v212, %v398
    %v410 = vadd.f32 %v214, %v402
    %v411 = vadd.f32 %v216, %v398
    %v412 = vadd.f32 %v218, %v402
    %v413 = vadd.f32 %v222, %v398
    %v414 = vadd.f32 %v224, %v402
    %v415 = vadd.f32 %v226, %v398
    %v416 = vadd.f32 %v228, %v402
    %v417 = vadd.f32 %v232, %v398
    %v418 = vadd.f32 %v234, %v402
    %v419 = vadd.f32 %v236, %v398
    %v420 = vadd.f32 %v238, %v402
    %v421 = vadd.f32 %v242, %v398
    %v422 = vadd.f32 %v244, %v402
    %v423 = vadd.f32 %v246, %v398
    %v424 = vadd.f32 %v248, %v402
    %v425 = vadd.f32 %v252, %v398
    %v426 = vadd.f32 %v254, %v402
    %v427 = vadd.f32 %v256, %v398
    %v428 = vadd.f32 %v258, %v402
    %v429 = vadd.f32 %v262, %v398
    %v430 = vadd.f32 %v264, %v402
    %v431 = vadd.f32 %v266, %v398
    %v432 = vadd.f32 %v268, %v402
    %v433 = vadd.f32 %v272, %v398
    %v434 = vadd.f32 %v274, %v402
    %v435 = vadd.f32 %v276, %v398
    %v436 = vadd.f32 %v278, %v402
    %v437 = vmax.f32 %v405, 0.0
    %v438 = vmax.f32 %v406, 0.0
    %v439 = vmax.f32 %v407, 0.0
    %v440 = vmax.f32 %v408, 0.0
    %v441 = vmax.f32 %v409, 0.0
    %v442 = vmax.f32 %v410, 0.0
    %v443 = vmax.f32 %v411, 0.0
    %v444 = vmax.f32 %v412, 0.0
    %v445 = vmax.f32 %v413, 0.0
    %v446 = vmax.f32 %v414, 0.0
    %v447 = vmax.f32 %v415, 0.0
    %v448 = vmax.f32 %v416, 0.0
    %v449 = vmax.f32 %v417, 0.0
    %v450 = vmax.f32 %v418, 0.0
    %v451 = vmax.f32 %v419, 0.0
    %v452 = vmax.f32 %v420, 0.0
    %v453 = vmax.f32 %v421, 0.0
    %v454 = vmax.f32 %v422, 0.0
    %v455 = vmax.f32 %v423, 0.0
    %v456 = vmax.f32 %v424, 0.0
    %v457 = vmax.f32 %v425, 0.0
    %v458 = vmax.f32 %v426, 0.0
    %v459 = vmax.f32 %v427, 0.0
    %v460 = vmax.f32 %v428, 0.0
    %v461 = vmax.f32 %v429, 0.0
    %v462 = vmax.f32 %v430, 0.0
    %v463 = vmax.f32 %v431, 0.0
    %v464 = vmax.f32 %v432, 0.0
    %v465 = vmax.f32 %v433, 0.0
    %v466 = vmax.f32 %v434, 0.0
    %v467 = vmax.f32 %v435, 0.0
    %v468 = vmax.f32 %v436, 0.0
    %v469 = vpack.c.bf16 %v439, %v437
    %v470 = vpack.c.bf16 %v440, %v438
    %v471 = vpack.c.bf16 %v443, %v441
    %v472 = vpack.c.bf16 %v444, %v442
    %v473 = vpack.c.bf16 %v447, %v445
    %v474 = vpack.c.bf16 %v448, %v446
    %v475 = vpack.c.bf16 %v451, %v449
    %v476 = vpack.c.bf16 %v452, %v450
    %v477 = vpack.c.bf16 %v455, %v453
    %v478 = vpack.c.bf16 %v456, %v454
    %v479 = vpack.c.bf16 %v459, %v457
    %v480 = vpack.c.bf16 %v460, %v458
    %v481 = vpack.c.bf16 %v463, %v461
    %v482 = vpack.c.bf16 %v464, %v462
    %v483 = vpack.c.bf16 %v467, %v465
    %v484 = vpack.c.bf16 %v468, %v466
    %v485 = vld [vmem:[#allocation4] sm:$0xff]
    %v486 = vld [vmem:[#allocation4 + $0x8] sm:$0xff]
    %v487 = vld [vmem:[#allocation4 + $0x10] sm:$0xff]
    %v488 = vld [vmem:[#allocation4 + $0x18] sm:$0xff]
    %v489 = vld [vmem:[#allocation4 + $0x20] sm:$0xff]
    %v490 = vld [vmem:[#allocation4 + $0x28] sm:$0xff]
    %v491 = vld [vmem:[#allocation4 + $0x30] sm:$0xff]
    %v492 = vld [vmem:[#allocation4 + $0x38] sm:$0xff]
    %v493 = vld [vmem:[#allocation4 + $0x40] sm:$0xff]
    %v494 = vld [vmem:[#allocation4 + $0x48] sm:$0xff]
    %v495 = vld [vmem:[#allocation4 + $0x50] sm:$0xff]
    %v496 = vld [vmem:[#allocation4 + $0x58] sm:$0xff]
    %v497 = vld [vmem:[#allocation4 + $0x60] sm:$0xff]
    %v498 = vld [vmem:[#allocation4 + $0x68] sm:$0xff]
    %v499 = vld [vmem:[#allocation4 + $0x70] sm:$0xff]
    %v500 = vld [vmem:[#allocation4 + $0x78] sm:$0xff]
    %v501 = vld [vmem:[#allocation4 + $0x80] sm:$0xff]
    %v502 = vld [vmem:[#allocation4 + $0x88] sm:$0xff]
    %v503 = vld [vmem:[#allocation4 + $0x90] sm:$0xff]
    %v504 = vld [vmem:[#allocation4 + $0x98] sm:$0xff]
    %v505 = vld [vmem:[#allocation4 + $0xa0] sm:$0xff]
    %v506 = vld [vmem:[#allocation4 + $0xa8] sm:$0xff]
    %v507 = vld [vmem:[#allocation4 + $0xb0] sm:$0xff]
    %v508 = vld [vmem:[#allocation4 + $0xb8] sm:$0xff]
    %v509 = vld [vmem:[#allocation4 + $0xc0] sm:$0xff]
    %v510 = vld [vmem:[#allocation4 + $0xc8] sm:$0xff]
    %v511 = vld [vmem:[#allocation4 + $0xd0] sm:$0xff]
    %v512 = vld [vmem:[#allocation4 + $0xd8] sm:$0xff]
    %v513 = vld [vmem:[#allocation4 + $0xe0] sm:$0xff]
    %v514 = vld [vmem:[#allocation4 + $0xe8] sm:$0xff]
    %v515 = vld [vmem:[#allocation4 + $0xf0] sm:$0xff]
    %v516 = vld [vmem:[#allocation4 + $0xf8] sm:$0xff]
    %s517 = scalar_lea.vmem [#allocation6], 1
    %v518 = vld [vmem:[%s517] ss:$8 sm:$0x3]
    %v520 = vlaneseq
    %v521 = vshrl.u32 %v520, 7
    %v522 = vsub.s32 0, %v521
    %v523 = vrot.slane %v518, %v522
    %v524 = vlaneseq
    %v525 = vshrl.u32 %v524, 7
    %v526 = vsub.s32 1, %v525
    %v527 = vrot.slane %v518, %v526
    %v562 = vunpack.c.l.b16 %v485
    %v563 = vunpack.c.h.b16 %v485
    %v564 = vunpack.c.l.b16 %v486
    %v565 = vunpack.c.h.b16 %v486
    %v566 = vunpack.c.l.b16 %v487
    %v567 = vunpack.c.h.b16 %v487
    %v568 = vunpack.c.l.b16 %v488
    %v569 = vunpack.c.h.b16 %v488
    %v570 = vunpack.c.l.b16 %v489
    %v571 = vunpack.c.h.b16 %v489
    %v572 = vunpack.c.l.b16 %v490
    %v573 = vunpack.c.h.b16 %v490
    %v574 = vunpack.c.l.b16 %v491
    %v575 = vunpack.c.h.b16 %v491
    %v576 = vunpack.c.l.b16 %v492
    %v577 = vunpack.c.h.b16 %v492
    %v578 = vunpack.c.l.b16 %v493
    %v579 = vunpack.c.h.b16 %v493
    %v580 = vunpack.c.l.b16 %v494
    %v581 = vunpack.c.h.b16 %v494
    %v582 = vunpack.c.l.b16 %v495
    %v583 = vunpack.c.h.b16 %v495
    %v584 = vunpack.c.l.b16 %v496
    %v585 = vunpack.c.h.b16 %v496
    %v586 = vunpack.c.l.b16 %v497
    %v587 = vunpack.c.h.b16 %v497
    %v588 = vunpack.c.l.b16 %v498
    %v589 = vunpack.c.h.b16 %v498
    %v590 = vunpack.c.l.b16 %v499
    %v591 = vunpack.c.h.b16 %v499
    %v592 = vunpack.c.l.b16 %v500
    %v593 = vunpack.c.h.b16 %v500
    %v594 = vunpack.c.l.b16 %v501
    %v595 = vunpack.c.h.b16 %v501
    %v596 = vunpack.c.l.b16 %v502
    %v597 = vunpack.c.h.b16 %v502
    %v598 = vunpack.c.l.b16 %v503
    %v599 = vunpack.c.h.b16 %v503
    %v600 = vunpack.c.l.b16 %v504
    %v601 = vunpack.c.h.b16 %v504
    %v602 = vunpack.c.l.b16 %v505
    %v603 = vunpack.c.h.b16 %v505
    %v604 = vunpack.c.l.b16 %v506
    %v605 = vunpack.c.h.b16 %v506
    %v606 = vunpack.c.l.b16 %v507
    %v607 = vunpack.c.h.b16 %v507
    %v608 = vunpack.c.l.b16 %v508
    %v609 = vunpack.c.h.b16 %v508
    %v610 = vunpack.c.l.b16 %v509
    %v611 = vunpack.c.h.b16 %v509
    %v612 = vunpack.c.l.b16 %v510
    %v613 = vunpack.c.h.b16 %v510
    %v614 = vunpack.c.l.b16 %v511
    %v615 = vunpack.c.h.b16 %v511
    %v616 = vunpack.c.l.b16 %v512
    %v617 = vunpack.c.h.b16 %v512
    %v618 = vunpack.c.l.b16 %v513
    %v619 = vunpack.c.h.b16 %v513
    %v620 = vunpack.c.l.b16 %v514
    %v621 = vunpack.c.h.b16 %v514
    %v622 = vunpack.c.l.b16 %v515
    %v623 = vunpack.c.h.b16 %v515
    %v624 = vunpack.c.l.b16 %v516
    %v625 = vunpack.c.h.b16 %v516
    %v626 = vpack.c.b16 %v564, %v562
    %v627 = vpack.c.b16 %v565, %v563
    %v628 = vpack.c.b16 %v568, %v566
    %v629 = vpack.c.b16 %v569, %v567
    %v630 = vpack.c.b16 %v572, %v570
    %v631 = vpack.c.b16 %v573, %v571
    %v632 = vpack.c.b16 %v576, %v574
    %v633 = vpack.c.b16 %v577, %v575
    %v634 = vpack.c.b16 %v580, %v578
    %v635 = vpack.c.b16 %v581, %v579
    %v636 = vpack.c.b16 %v584, %v582
    %v637 = vpack.c.b16 %v585, %v583
    %v638 = vpack.c.b16 %v588, %v586
    %v639 = vpack.c.b16 %v589, %v587
    %v640 = vpack.c.b16 %v592, %v590
    %v641 = vpack.c.b16 %v593, %v591
    %v642 = vpack.c.b16 %v596, %v594
    %v643 = vpack.c.b16 %v597, %v595
    %v644 = vpack.c.b16 %v600, %v598
    %v645 = vpack.c.b16 %v601, %v599
    %v646 = vpack.c.b16 %v604, %v602
    %v647 = vpack.c.b16 %v605, %v603
    %v648 = vpack.c.b16 %v608, %v606
    %v649 = vpack.c.b16 %v609, %v607
    %v650 = vpack.c.b16 %v612, %v610
    %v651 = vpack.c.b16 %v613, %v611
    %v652 = vpack.c.b16 %v616, %v614
    %v653 = vpack.c.b16 %v617, %v615
    %v654 = vpack.c.b16 %v620, %v618
    %v655 = vpack.c.b16 %v621, %v619
    %v656 = vpack.c.b16 %v624, %v622
    %v657 = vpack.c.b16 %v625, %v623
    %690 = vmatprep.subr.bf16.mxu0 %v627
    %691 = vmatpush1.bf16.msra.mxu0 %v626
    %692 = vmatprep.subr.bf16.mxu0 %v629
    %693 = vmatpush1.bf16.msra.mxu0 %v628
    %694 = vmatprep.subr.bf16.mxu0 %v631
    %695 = vmatpush1.bf16.msra.mxu0 %v630
    %696 = vmatprep.subr.bf16.mxu0 %v633
    %697 = vmatpush1.bf16.msra.mxu0 %v632
    %698 = vmatprep.subr.bf16.mxu0 %v635
    %699 = vmatpush1.bf16.msra.mxu0 %v634
    %700 = vmatprep.subr.bf16.mxu0 %v637
    %701 = vmatpush1.bf16.msra.mxu0 %v636
    %702 = vmatprep.subr.bf16.mxu0 %v639
    %703 = vmatpush1.bf16.msra.mxu0 %v638
    %704 = vmatprep.subr.bf16.mxu0 %v641
    %705 = vmatpush1.bf16.msra.mxu0 %v640
    %706 = vmatprep.subr.bf16.mxu0 %v643
    %707 = vmatpush1.bf16.msra.mxu0 %v642
    %708 = vmatprep.subr.bf16.mxu0 %v645
    %709 = vmatpush1.bf16.msra.mxu0 %v644
    %710 = vmatprep.subr.bf16.mxu0 %v647
    %711 = vmatpush1.bf16.msra.mxu0 %v646
    %712 = vmatprep.subr.bf16.mxu0 %v649
    %713 = vmatpush1.bf16.msra.mxu0 %v648
    %714 = vmatprep.subr.bf16.mxu0 %v651
    %715 = vmatpush1.bf16.msra.mxu0 %v650
    %716 = vmatprep.subr.bf16.mxu0 %v653
    %717 = vmatpush1.bf16.msra.mxu0 %v652
    %718 = vmatprep.subr.bf16.mxu0 %v655
    %719 = vmatpush1.bf16.msra.mxu0 %v654
    %720 = vmatprep.subr.bf16.mxu0 %v657
    %721 = vmatpush1.bf16.msra.mxu0 %v656
    %722 = vmatprep.mubr.bf16.mxu0 %v470
    %723 = vmatmul.mubr.bf16.gmra.mrb[0].mxu0 %v469
    %v724 = vpop.f32.mrb[0].mxu0
    %v725 = vadd.f32 %v523, %v724
    %v726 = vpop.f32.mrb[0].mxu0
    %v727 = vadd.f32 %v527, %v726
    %v728 = vpop.f32.mrb[0].mxu0
    %v729 = vadd.f32 %v523, %v728
    %v730 = vpop.f32.mrb[0].mxu0
    %v731 = vadd.f32 %v527, %v730
    %732 = vmatprep.mubr.bf16.mxu0 %v472
    %733 = vmatmul.mubr.bf16.gmra.mrb[0].mxu0 %v471
    %v734 = vpop.f32.mrb[0].mxu0
    %v735 = vadd.f32 %v523, %v734
    %v736 = vpop.f32.mrb[0].mxu0
    %v737 = vadd.f32 %v527, %v736
    %v738 = vpop.f32.mrb[0].mxu0
    %v739 = vadd.f32 %v523, %v738
    %v740 = vpop.f32.mrb[0].mxu0
    %v741 = vadd.f32 %v527, %v740
    %742 = vmatprep.mubr.bf16.mxu0 %v474
    %743 = vmatmul.mubr.bf16.gmra.mrb[0].mxu0 %v473
    %v744 = vpop.f32.mrb[0].mxu0
    %v745 = vadd.f32 %v523, %v744
    %v746 = vpop.f32.mrb[0].mxu0
    %v747 = vadd.f32 %v527, %v746
    %v748 = vpop.f32.mrb[0].mxu0
    %v749 = vadd.f32 %v523, %v748
    %v750 = vpop.f32.mrb[0].mxu0
    %v751 = vadd.f32 %v527, %v750
    %752 = vmatprep.mubr.bf16.mxu0 %v476
    %753 = vmatmul.mubr.bf16.gmra.mrb[0].mxu0 %v475
    %v754 = vpop.f32.mrb[0].mxu0
    %v755 = vadd.f32 %v523, %v754
    %v756 = vpop.f32.mrb[0].mxu0
    %v757 = vadd.f32 %v527, %v756
    %v758 = vpop.f32.mrb[0].mxu0
    %v759 = vadd.f32 %v523, %v758
    %v760 = vpop.f32.mrb[0].mxu0
    %v761 = vadd.f32 %v527, %v760
    %762 = vmatprep.mubr.bf16.mxu0 %v478
    %763 = vmatmul.mubr.bf16.gmra.mrb[0].mxu0 %v477
    %v764 = vpop.f32.mrb[0].mxu0
    %v765 = vadd.f32 %v523, %v764
    %v766 = vpop.f32.mrb[0].mxu0
    %v767 = vadd.f32 %v527, %v766
    %v768 = vpop.f32.mrb[0].mxu0
    %v769 = vadd.f32 %v523, %v768
    %v770 = vpop.f32.mrb[0].mxu0
    %v771 = vadd.f32 %v527, %v770
    %772 = vmatprep.mubr.bf16.mxu0 %v480
    %773 = vmatmul.mubr.bf16.gmra.mrb[0].mxu0 %v479
    %v774 = vpop.f32.mrb[0].mxu0
    %v775 = vadd.f32 %v523, %v774
    %v776 = vpop.f32.mrb[0].mxu0
    %v777 = vadd.f32 %v527, %v776
    %v778 = vpop.f32.mrb[0].mxu0
    %v779 = vadd.f32 %v523, %v778
    %v780 = vpop.f32.mrb[0].mxu0
    %v781 = vadd.f32 %v527, %v780
    %782 = vmatprep.mubr.bf16.mxu0 %v482
    %783 = vmatmul.mubr.bf16.gmra.mrb[0].mxu0 %v481
    %v784 = vpop.f32.mrb[0].mxu0
    %v785 = vadd.f32 %v523, %v784
    %v786 = vpop.f32.mrb[0].mxu0
    %v787 = vadd.f32 %v527, %v786
    %v788 = vpop.f32.mrb[0].mxu0
    %v789 = vadd.f32 %v523, %v788
    %v790 = vpop.f32.mrb[0].mxu0
    %v791 = vadd.f32 %v527, %v790
    %792 = vmatprep.mubr.bf16.mxu0 %v484
    %793 = vmatmul.mubr.bf16.gmra.mrb[0].mxu0 %v483
    %v794 = vpop.f32.mrb[0].mxu0
    %v795 = vadd.f32 %v523, %v794
    %v796 = vpop.f32.mrb[0].mxu0
    %v797 = vadd.f32 %v527, %v796
    %v798 = vpop.f32.mrb[0].mxu0
    %v799 = vadd.f32 %v523, %v798
    %v800 = vpop.f32.mrb[0].mxu0
    %v801 = vadd.f32 %v527, %v800
    %802 = vdwg.mxu0
    %v803 = vmax.f32 %v725, 0.0
    %v804 = vmax.f32 %v727, 0.0
    %v805 = vmax.f32 %v729, 0.0
    %v806 = vmax.f32 %v731, 0.0
    %v807 = vmax.f32 %v735, 0.0
    %v808 = vmax.f32 %v737, 0.0
    %v809 = vmax.f32 %v739, 0.0
    %v810 = vmax.f32 %v741, 0.0
    %v811 = vmax.f32 %v745, 0.0
    %v812 = vmax.f32 %v747, 0.0
    %v813 = vmax.f32 %v749, 0.0
    %v814 = vmax.f32 %v751, 0.0
    %v815 = vmax.f32 %v755, 0.0
    %v816 = vmax.f32 %v757, 0.0
    %v817 = vmax.f32 %v759, 0.0
    %v818 = vmax.f32 %v761, 0.0
    %v819 = vmax.f32 %v765, 0.0
    %v820 = vmax.f32 %v767, 0.0
    %v821 = vmax.f32 %v769, 0.0
    %v822 = vmax.f32 %v771, 0.0
    %v823 = vmax.f32 %v775, 0.0
    %v824 = vmax.f32 %v777, 0.0
    %v825 = vmax.f32 %v779, 0.0
    %v826 = vmax.f32 %v781, 0.0
    %v827 = vmax.f32 %v785, 0.0
    %v828 = vmax.f32 %v787, 0.0
    %v829 = vmax.f32 %v789, 0.0
    %v830 = vmax.f32 %v791, 0.0
    %v831 = vmax.f32 %v795, 0.0
    %v832 = vmax.f32 %v797, 0.0
    %v833 = vmax.f32 %v799, 0.0
    %v834 = vmax.f32 %v801, 0.0
    %v835 = vpack.c.bf16 %v805, %v803
    %v836 = vpack.c.bf16 %v806, %v804
    %v837 = vpack.c.bf16 %v809, %v807
    %v838 = vpack.c.bf16 %v810, %v808
    %v839 = vpack.c.bf16 %v813, %v811
    %v840 = vpack.c.bf16 %v814, %v812
    %v841 = vpack.c.bf16 %v817, %v815
    %v842 = vpack.c.bf16 %v818, %v816
    %v843 = vpack.c.bf16 %v821, %v819
    %v844 = vpack.c.bf16 %v822, %v820
    %v845 = vpack.c.bf16 %v825, %v823
    %v846 = vpack.c.bf16 %v826, %v824
    %v847 = vpack.c.bf16 %v829, %v827
    %v848 = vpack.c.bf16 %v830, %v828
    %v849 = vpack.c.bf16 %v833, %v831
    %v850 = vpack.c.bf16 %v834, %v832
    %s851 = scalar_lea.vmem [#allocation4], 256
    %v852 = vld [vmem:[%s851] sm:$0xff]
    %v853 = vld [vmem:[%s851 + $0x8] sm:$0xff]
    %v854 = vld [vmem:[%s851 + $0x10] sm:$0xff]
    %v855 = vld [vmem:[%s851 + $0x18] sm:$0xff]
    %v856 = vld [vmem:[%s851 + $0x20] sm:$0xff]
    %v857 = vld [vmem:[%s851 + $0x28] sm:$0xff]
    %v858 = vld [vmem:[%s851 + $0x30] sm:$0xff]
    %v859 = vld [vmem:[%s851 + $0x38] sm:$0xff]
    %v860 = vld [vmem:[%s851 + $0x40] sm:$0xff]
    %v861 = vld [vmem:[%s851 + $0x48] sm:$0xff]
    %v862 = vld [vmem:[%s851 + $0x50] sm:$0xff]
    %v863 = vld [vmem:[%s851 + $0x58] sm:$0xff]
    %v864 = vld [vmem:[%s851 + $0x60] sm:$0xff]
    %v865 = vld [vmem:[%s851 + $0x68] sm:$0xff]
    %v866 = vld [vmem:[%s851 + $0x70] sm:$0xff]
    %v867 = vld [vmem:[%s851 + $0x78] sm:$0xff]
    %v868 = vld [vmem:[%s851 + $0x80] sm:$0xff]
    %v869 = vld [vmem:[%s851 + $0x88] sm:$0xff]
    %v870 = vld [vmem:[%s851 + $0x90] sm:$0xff]
    %v871 = vld [vmem:[%s851 + $0x98] sm:$0xff]
    %v872 = vld [vmem:[%s851 + $0xa0] sm:$0xff]
    %v873 = vld [vmem:[%s851 + $0xa8] sm:$0xff]
    %v874 = vld [vmem:[%s851 + $0xb0] sm:$0xff]
    %v875 = vld [vmem:[%s851 + $0xb8] sm:$0xff]
    %v876 = vld [vmem:[%s851 + $0xc0] sm:$0xff]
    %v877 = vld [vmem:[%s851 + $0xc8] sm:$0xff]
    %v878 = vld [vmem:[%s851 + $0xd0] sm:$0xff]
    %v879 = vld [vmem:[%s851 + $0xd8] sm:$0xff]
    %v880 = vld [vmem:[%s851 + $0xe0] sm:$0xff]
    %v881 = vld [vmem:[%s851 + $0xe8] sm:$0xff]
    %v882 = vld [vmem:[%s851 + $0xf0] sm:$0xff]
    %v883 = vld [vmem:[%s851 + $0xf8] sm:$0xff]
    %s884 = scalar_lea.vmem [#allocation6], 2
    %v885 = vld [vmem:[%s884] ss:$8 sm:$0x3]
    %v887 = vlaneseq
    %v888 = vshrl.u32 %v887, 7
    %v889 = vsub.s32 0, %v888
    %v890 = vrot.slane %v885, %v889
    %v891 = vlaneseq
    %v892 = vshrl.u32 %v891, 7
    %v893 = vsub.s32 1, %v892
    %v894 = vrot.slane %v885, %v893
    %v929 = vunpack.c.l.b16 %v852
    %v930 = vunpack.c.h.b16 %v852
    %v931 = vunpack.c.l.b16 %v853
    %v932 = vunpack.c.h.b16 %v853
    %v933 = vunpack.c.l.b16 %v854
    %v934 = vunpack.c.h.b16 %v854
    %v935 = vunpack.c.l.b16 %v855
    %v936 = vunpack.c.h.b16 %v855
    %v937 = vunpack.c.l.b16 %v856
    %v938 = vunpack.c.h.b16 %v856
    %v939 = vunpack.c.l.b16 %v857
    %v940 = vunpack.c.h.b16 %v857
    %v941 = vunpack.c.l.b16 %v858
    %v942 = vunpack.c.h.b16 %v858
    %v943 = vunpack.c.l.b16 %v859
    %v944 = vunpack.c.h.b16 %v859
    %v945 = vunpack.c.l.b16 %v860
    %v946 = vunpack.c.h.b16 %v860
    %v947 = vunpack.c.l.b16 %v861
    %v948 = vunpack.c.h.b16 %v861
    %v949 = vunpack.c.l.b16 %v862
    %v950 = vunpack.c.h.b16 %v862
    %v951 = vunpack.c.l.b16 %v863
    %v952 = vunpack.c.h.b16 %v863
    %v953 = vunpack.c.l.b16 %v864
    %v954 = vunpack.c.h.b16 %v864
    %v955 = vunpack.c.l.b16 %v865
    %v956 = vunpack.c.h.b16 %v865
    %v957 = vunpack.c.l.b16 %v866
    %v958 = vunpack.c.h.b16 %v866
    %v959 = vunpack.c.l.b16 %v867
    %v960 = vunpack.c.h.b16 %v867
    %v961 = vunpack.c.l.b16 %v868
    %v962 = vunpack.c.h.b16 %v868
    %v963 = vunpack.c.l.b16 %v869
    %v964 = vunpack.c.h.b16 %v869
    %v965 = vunpack.c.l.b16 %v870
    %v966 = vunpack.c.h.b16 %v870
    %v967 = vunpack.c.l.b16 %v871
    %v968 = vunpack.c.h.b16 %v871
    %v969 = vunpack.c.l.b16 %v872
    %v970 = vunpack.c.h.b16 %v872
    %v971 = vunpack.c.l.b16 %v873
    %v972 = vunpack.c.h.b16 %v873
    %v973 = vunpack.c.l.b16 %v874
    %v974 = vunpack.c.h.b16 %v874
    %v975 = vunpack.c.l.b16 %v875
    %v976 = vunpack.c.h.b16 %v875
    %v977 = vunpack.c.l.b16 %v876
    %v978 = vunpack.c.h.b16 %v876
    %v979 = vunpack.c.l.b16 %v877
    %v980 = vunpack.c.h.b16 %v877
    %v981 = vunpack.c.l.b16 %v878
    %v982 = vunpack.c.h.b16 %v878
    %v983 = vunpack.c.l.b16 %v879
    %v984 = vunpack.c.h.b16 %v879
    %v985 = vunpack.c.l.b16 %v880
    %v986 = vunpack.c.h.b16 %v880
    %v987 = vunpack.c.l.b16 %v881
    %v988 = vunpack.c.h.b16 %v881
    %v989 = vunpack.c.l.b16 %v882
    %v990 = vunpack.c.h.b16 %v882
    %v991 = vunpack.c.l.b16 %v883
    %v992 = vunpack.c.h.b16 %v883
    %v993 = vpack.c.b16 %v931, %v929
    %v994 = vpack.c.b16 %v932, %v930
    %v995 = vpack.c.b16 %v935, %v933
    %v996 = vpack.c.b16 %v936, %v934
    %v997 = vpack.c.b16 %v939, %v937
    %v998 = vpack.c.b16 %v940, %v938
    %v999 = vpack.c.b16 %v943, %v941
    %v1000 = vpack.c.b16 %v944, %v942
    %v1001 = vpack.c.b16 %v947, %v945
    %v1002 = vpack.c.b16 %v948, %v946
    %v1003 = vpack.c.b16 %v951, %v949
    %v1004 = vpack.c.b16 %v952, %v950
    %v1005 = vpack.c.b16 %v955, %v953
    %v1006 = vpack.c.b16 %v956, %v954
    %v1007 = vpack.c.b16 %v959, %v957
    %v1008 = vpack.c.b16 %v960, %v958
    %v1009 = vpack.c.b16 %v963, %v961
    %v1010 = vpack.c.b16 %v964, %v962
    %v1011 = vpack.c.b16 %v967, %v965
    %v1012 = vpack.c.b16 %v968, %v966
    %v1013 = vpack.c.b16 %v971, %v969
    %v1014 = vpack.c.b16 %v972, %v970
    %v1015 = vpack.c.b16 %v975, %v973
    %v1016 = vpack.c.b16 %v976, %v974
    %v1017 = vpack.c.b16 %v979, %v977
    %v1018 = vpack.c.b16 %v980, %v978
    %v1019 = vpack.c.b16 %v983, %v981
    %v1020 = vpack.c.b16 %v984, %v982
    %v1021 = vpack.c.b16 %v987, %v985
    %v1022 = vpack.c.b16 %v988, %v986
    %v1023 = vpack.c.b16 %v991, %v989
    %v1024 = vpack.c.b16 %v992, %v990
    %1057 = vmatprep.subr.bf16.mxu0 %v994
    %1058 = vmatpush1.bf16.msra.mxu0 %v993
    %1059 = vmatprep.subr.bf16.mxu0 %v996
    %1060 = vmatpush1.bf16.msra.mxu0 %v995
    %1061 = vmatprep.subr.bf16.mxu0 %v998
    %1062 = vmatpush1.bf16.msra.mxu0 %v997
    %1063 = vmatprep.subr.bf16.mxu0 %v1000
    %1064 = vmatpush1.bf16.msra.mxu0 %v999
    %1065 = vmatprep.subr.bf16.mxu0 %v1002
    %1066 = vmatpush1.bf16.msra.mxu0 %v1001
    %1067 = vmatprep.subr.bf16.mxu0 %v1004
    %1068 = vmatpush1.bf16.msra.mxu0 %v1003
    %1069 = vmatprep.subr.bf16.mxu0 %v1006
    %1070 = vmatpush1.bf16.msra.mxu0 %v1005
    %1071 = vmatprep.subr.bf16.mxu0 %v1008
    %1072 = vmatpush1.bf16.msra.mxu0 %v1007
    %1073 = vmatprep.subr.bf16.mxu0 %v1010
    %1074 = vmatpush1.bf16.msra.mxu0 %v1009
    %1075 = vmatprep.subr.bf16.mxu0 %v1012
    %1076 = vmatpush1.bf16.msra.mxu0 %v1011
    %1077 = vmatprep.subr.bf16.mxu0 %v1014
    %1078 = vmatpush1.bf16.msra.mxu0 %v1013
    %1079 = vmatprep.subr.bf16.mxu0 %v1016
    %1080 = vmatpush1.bf16.msra.mxu0 %v1015
    %1081 = vmatprep.subr.bf16.mxu0 %v1018
    %1082 = vmatpush1.bf16.msra.mxu0 %v1017
    %1083 = vmatprep.subr.bf16.mxu0 %v1020
    %1084 = vmatpush1.bf16.msra.mxu0 %v1019
    %1085 = vmatprep.subr.bf16.mxu0 %v1022
    %1086 = vmatpush1.bf16.msra.mxu0 %v1021
    %1087 = vmatprep.subr.bf16.mxu0 %v1024
    %1088 = vmatpush1.bf16.msra.mxu0 %v1023
    %1089 = vmatprep.mubr.bf16.mxu0 %v836
    %1090 = vmatmul.mubr.bf16.gmra.mrb[0].mxu0 %v835
    %v1091 = vpop.f32.mrb[0].mxu0
    %v1092 = vadd.f32 %v890, %v1091
    %v1093 = vpop.f32.mrb[0].mxu0
    %v1094 = vadd.f32 %v894, %v1093
    %v1095 = vpop.f32.mrb[0].mxu0
    %v1096 = vadd.f32 %v890, %v1095
    %v1097 = vpop.f32.mrb[0].mxu0
    %v1098 = vadd.f32 %v894, %v1097
    %1099 = vmatprep.mubr.bf16.mxu0 %v838
    %1100 = vmatmul.mubr.bf16.gmra.mrb[0].mxu0 %v837
    %v1101 = vpop.f32.mrb[0].mxu0
    %v1102 = vadd.f32 %v890, %v1101
    %v1103 = vpop.f32.mrb[0].mxu0
    %v1104 = vadd.f32 %v894, %v1103
    %v1105 = vpop.f32.mrb[0].mxu0
    %v1106 = vadd.f32 %v890, %v1105
    %v1107 = vpop.f32.mrb[0].mxu0
    %v1108 = vadd.f32 %v894, %v1107
    %1109 = vmatprep.mubr.bf16.mxu0 %v840
    %1110 = vmatmul.mubr.bf16.gmra.mrb[0].mxu0 %v839
    %v1111 = vpop.f32.mrb[0].mxu0
    %v1112 = vadd.f32 %v890, %v1111
    %v1113 = vpop.f32.mrb[0].mxu0
    %v1114 = vadd.f32 %v894, %v1113
    %v1115 = vpop.f32.mrb[0].mxu0
    %v1116 = vadd.f32 %v890, %v1115
    %v1117 = vpop.f32.mrb[0].mxu0
    %v1118 = vadd.f32 %v894, %v1117
    %1119 = vmatprep.mubr.bf16.mxu0 %v842
    %1120 = vmatmul.mubr.bf16.gmra.mrb[0].mxu0 %v841
    %v1121 = vpop.f32.mrb[0].mxu0
    %v1122 = vadd.f32 %v890, %v1121
    %v1123 = vpop.f32.mrb[0].mxu0
    %v1124 = vadd.f32 %v894, %v1123
    %v1125 = vpop.f32.mrb[0].mxu0
    %v1126 = vadd.f32 %v890, %v1125
    %v1127 = vpop.f32.mrb[0].mxu0
    %v1128 = vadd.f32 %v894, %v1127
    %1129 = vmatprep.mubr.bf16.mxu0 %v844
    %1130 = vmatmul.mubr.bf16.gmra.mrb[0].mxu0 %v843
    %v1131 = vpop.f32.mrb[0].mxu0
    %v1132 = vadd.f32 %v890, %v1131
    %v1133 = vpop.f32.mrb[0].mxu0
    %v1134 = vadd.f32 %v894, %v1133
    %v1135 = vpop.f32.mrb[0].mxu0
    %v1136 = vadd.f32 %v890, %v1135
    %v1137 = vpop.f32.mrb[0].mxu0
    %v1138 = vadd.f32 %v894, %v1137
    %1139 = vmatprep.mubr.bf16.mxu0 %v846
    %1140 = vmatmul.mubr.bf16.gmra.mrb[0].mxu0 %v845
    %v1141 = vpop.f32.mrb[0].mxu0
    %v1142 = vadd.f32 %v890, %v1141
    %v1143 = vpop.f32.mrb[0].mxu0
    %v1144 = vadd.f32 %v894, %v1143
    %v1145 = vpop.f32.mrb[0].mxu0
    %v1146 = vadd.f32 %v890, %v1145
    %v1147 = vpop.f32.mrb[0].mxu0
    %v1148 = vadd.f32 %v894, %v1147
    %1149 = vmatprep.mubr.bf16.mxu0 %v848
    %1150 = vmatmul.mubr.bf16.gmra.mrb[0].mxu0 %v847
    %v1151 = vpop.f32.mrb[0].mxu0
    %v1152 = vadd.f32 %v890, %v1151
    %v1153 = vpop.f32.mrb[0].mxu0
    %v1154 = vadd.f32 %v894, %v1153
    %v1155 = vpop.f32.mrb[0].mxu0
    %v1156 = vadd.f32 %v890, %v1155
    %v1157 = vpop.f32.mrb[0].mxu0
    %v1158 = vadd.f32 %v894, %v1157
    %1159 = vmatprep.mubr.bf16.mxu0 %v850
    %1160 = vmatmul.mubr.bf16.gmra.mrb[0].mxu0 %v849
    %v1161 = vpop.f32.mrb[0].mxu0
    %v1162 = vadd.f32 %v890, %v1161
    %v1163 = vpop.f32.mrb[0].mxu0
    %v1164 = vadd.f32 %v894, %v1163
    %v1165 = vpop.f32.mrb[0].mxu0
    %v1166 = vadd.f32 %v890, %v1165
    %v1167 = vpop.f32.mrb[0].mxu0
    %v1168 = vadd.f32 %v894, %v1167
    %1169 = vdwg.mxu0
    %v1170 = vmax.f32 %v1092, 0.0
    %v1171 = vmax.f32 %v1094, 0.0
    %v1172 = vmax.f32 %v1096, 0.0
    %v1173 = vmax.f32 %v1098, 0.0
    %v1174 = vmax.f32 %v1102, 0.0
    %v1175 = vmax.f32 %v1104, 0.0
    %v1176 = vmax.f32 %v1106, 0.0
    %v1177 = vmax.f32 %v1108, 0.0
    %v1178 = vmax.f32 %v1112, 0.0
    %v1179 = vmax.f32 %v1114, 0.0
    %v1180 = vmax.f32 %v1116, 0.0
    %v1181 = vmax.f32 %v1118, 0.0
    %v1182 = vmax.f32 %v1122, 0.0
    %v1183 = vmax.f32 %v1124, 0.0
    %v1184 = vmax.f32 %v1126, 0.0
    %v1185 = vmax.f32 %v1128, 0.0
    %v1186 = vmax.f32 %v1132, 0.0
    %v1187 = vmax.f32 %v1134, 0.0
    %v1188 = vmax.f32 %v1136, 0.0
    %v1189 = vmax.f32 %v1138, 0.0
    %v1190 = vmax.f32 %v1142, 0.0
    %v1191 = vmax.f32 %v1144, 0.0
    %v1192 = vmax.f32 %v1146, 0.0
    %v1193 = vmax.f32 %v1148, 0.0
    %v1194 = vmax.f32 %v1152, 0.0
    %v1195 = vmax.f32 %v1154, 0.0
    %v1196 = vmax.f32 %v1156, 0.0
    %v1197 = vmax.f32 %v1158, 0.0
    %v1198 = vmax.f32 %v1162, 0.0
    %v1199 = vmax.f32 %v1164, 0.0
    %v1200 = vmax.f32 %v1166, 0.0
    %v1201 = vmax.f32 %v1168, 0.0
    %v1202 = vpack.c.bf16 %v1172, %v1170
    %v1203 = vpack.c.bf16 %v1173, %v1171
    %v1204 = vpack.c.bf16 %v1176, %v1174
    %v1205 = vpack.c.bf16 %v1177, %v1175
    %v1206 = vpack.c.bf16 %v1180, %v1178
    %v1207 = vpack.c.bf16 %v1181, %v1179
    %v1208 = vpack.c.bf16 %v1184, %v1182
    %v1209 = vpack.c.bf16 %v1185, %v1183
    %v1210 = vpack.c.bf16 %v1188, %v1186
    %v1211 = vpack.c.bf16 %v1189, %v1187
    %v1212 = vpack.c.bf16 %v1192, %v1190
    %v1213 = vpack.c.bf16 %v1193, %v1191
    %v1214 = vpack.c.bf16 %v1196, %v1194
    %v1215 = vpack.c.bf16 %v1197, %v1195
    %v1216 = vpack.c.bf16 %v1200, %v1198
    %v1217 = vpack.c.bf16 %v1201, %v1199
    %s1218 = scalar_lea.vmem [#allocation4], 512
    %v1219 = vld [vmem:[%s1218] sm:$0xff]
    %v1220 = vld [vmem:[%s1218 + $0x8] sm:$0xff]
    %v1221 = vld [vmem:[%s1218 + $0x10] sm:$0xff]
    %v1222 = vld [vmem:[%s1218 + $0x18] sm:$0xff]
    %v1223 = vld [vmem:[%s1218 + $0x20] sm:$0xff]
    %v1224 = vld [vmem:[%s1218 + $0x28] sm:$0xff]
    %v1225 = vld [vmem:[%s1218 + $0x30] sm:$0xff]
    %v1226 = vld [vmem:[%s1218 + $0x38] sm:$0xff]
    %v1227 = vld [vmem:[%s1218 + $0x40] sm:$0xff]
    %v1228 = vld [vmem:[%s1218 + $0x48] sm:$0xff]
    %v1229 = vld [vmem:[%s1218 + $0x50] sm:$0xff]
    %v1230 = vld [vmem:[%s1218 + $0x58] sm:$0xff]
    %v1231 = vld [vmem:[%s1218 + $0x60] sm:$0xff]
    %v1232 = vld [vmem:[%s1218 + $0x68] sm:$0xff]
    %v1233 = vld [vmem:[%s1218 + $0x70] sm:$0xff]
    %v1234 = vld [vmem:[%s1218 + $0x78] sm:$0xff]
    %v1235 = vld [vmem:[%s1218 + $0x80] sm:$0xff]
    %v1236 = vld [vmem:[%s1218 + $0x88] sm:$0xff]
    %v1237 = vld [vmem:[%s1218 + $0x90] sm:$0xff]
    %v1238 = vld [vmem:[%s1218 + $0x98] sm:$0xff]
    %v1239 = vld [vmem:[%s1218 + $0xa0] sm:$0xff]
    %v1240 = vld [vmem:[%s1218 + $0xa8] sm:$0xff]
    %v1241 = vld [vmem:[%s1218 + $0xb0] sm:$0xff]
    %v1242 = vld [vmem:[%s1218 + $0xb8] sm:$0xff]
    %v1243 = vld [vmem:[%s1218 + $0xc0] sm:$0xff]
    %v1244 = vld [vmem:[%s1218 + $0xc8] sm:$0xff]
    %v1245 = vld [vmem:[%s1218 + $0xd0] sm:$0xff]
    %v1246 = vld [vmem:[%s1218 + $0xd8] sm:$0xff]
    %v1247 = vld [vmem:[%s1218 + $0xe0] sm:$0xff]
    %v1248 = vld [vmem:[%s1218 + $0xe8] sm:$0xff]
    %v1249 = vld [vmem:[%s1218 + $0xf0] sm:$0xff]
    %v1250 = vld [vmem:[%s1218 + $0xf8] sm:$0xff]
    %s1251 = scalar_lea.vmem [#allocation6], 3
    %v1252 = vld [vmem:[%s1251] ss:$8 sm:$0x3]
    %v1254 = vlaneseq
    %v1255 = vshrl.u32 %v1254, 7
    %v1256 = vsub.s32 0, %v1255
    %v1257 = vrot.slane %v1252, %v1256
    %v1258 = vlaneseq
    %v1259 = vshrl.u32 %v1258, 7
    %v1260 = vsub.s32 1, %v1259
    %v1261 = vrot.slane %v1252, %v1260
    %v1296 = vunpack.c.l.b16 %v1219
    %v1297 = vunpack.c.h.b16 %v1219
    %v1298 = vunpack.c.l.b16 %v1220
    %v1299 = vunpack.c.h.b16 %v1220
    %v1300 = vunpack.c.l.b16 %v1221
    %v1301 = vunpack.c.h.b16 %v1221
    %v1302 = vunpack.c.l.b16 %v1222
    %v1303 = vunpack.c.h.b16 %v1222
    %v1304 = vunpack.c.l.b16 %v1223
    %v1305 = vunpack.c.h.b16 %v1223
    %v1306 = vunpack.c.l.b16 %v1224
    %v1307 = vunpack.c.h.b16 %v1224
    %v1308 = vunpack.c.l.b16 %v1225
    %v1309 = vunpack.c.h.b16 %v1225
    %v1310 = vunpack.c.l.b16 %v1226
    %v1311 = vunpack.c.h.b16 %v1226
    %v1312 = vunpack.c.l.b16 %v1227
    %v1313 = vunpack.c.h.b16 %v1227
    %v1314 = vunpack.c.l.b16 %v1228
    %v1315 = vunpack.c.h.b16 %v1228
    %v1316 = vunpack.c.l.b16 %v1229
    %v1317 = vunpack.c.h.b16 %v1229
    %v1318 = vunpack.c.l.b16 %v1230
    %v1319 = vunpack.c.h.b16 %v1230
    %v1320 = vunpack.c.l.b16 %v1231
    %v1321 = vunpack.c.h.b16 %v1231
    %v1322 = vunpack.c.l.b16 %v1232
    %v1323 = vunpack.c.h.b16 %v1232
    %v1324 = vunpack.c.l.b16 %v1233
    %v1325 = vunpack.c.h.b16 %v1233
    %v1326 = vunpack.c.l.b16 %v1234
    %v1327 = vunpack.c.h.b16 %v1234
    %v1328 = vunpack.c.l.b16 %v1235
    %v1329 = vunpack.c.h.b16 %v1235
    %v1330 = vunpack.c.l.b16 %v1236
    %v1331 = vunpack.c.h.b16 %v1236
    %v1332 = vunpack.c.l.b16 %v1237
    %v1333 = vunpack.c.h.b16 %v1237
    %v1334 = vunpack.c.l.b16 %v1238
    %v1335 = vunpack.c.h.b16 %v1238
    %v1336 = vunpack.c.l.b16 %v1239
    %v1337 = vunpack.c.h.b16 %v1239
    %v1338 = vunpack.c.l.b16 %v1240
    %v1339 = vunpack.c.h.b16 %v1240
    %v1340 = vunpack.c.l.b16 %v1241
    %v1341 = vunpack.c.h.b16 %v1241
    %v1342 = vunpack.c.l.b16 %v1242
    %v1343 = vunpack.c.h.b16 %v1242
    %v1344 = vunpack.c.l.b16 %v1243
    %v1345 = vunpack.c.h.b16 %v1243
    %v1346 = vunpack.c.l.b16 %v1244
    %v1347 = vunpack.c.h.b16 %v1244
    %v1348 = vunpack.c.l.b16 %v1245
    %v1349 = vunpack.c.h.b16 %v1245
    %v1350 = vunpack.c.l.b16 %v1246
    %v1351 = vunpack.c.h.b16 %v1246
    %v1352 = vunpack.c.l.b16 %v1247
    %v1353 = vunpack.c.h.b16 %v1247
    %v1354 = vunpack.c.l.b16 %v1248
    %v1355 = vunpack.c.h.b16 %v1248
    %v1356 = vunpack.c.l.b16 %v1249
    %v1357 = vunpack.c.h.b16 %v1249
    %v1358 = vunpack.c.l.b16 %v1250
    %v1359 = vunpack.c.h.b16 %v1250
    %v1360 = vpack.c.b16 %v1298, %v1296
    %v1361 = vpack.c.b16 %v1299, %v1297
    %v1362 = vpack.c.b16 %v1302, %v1300
    %v1363 = vpack.c.b16 %v1303, %v1301
    %v1364 = vpack.c.b16 %v1306, %v1304
    %v1365 = vpack.c.b16 %v1307, %v1305
    %v1366 = vpack.c.b16 %v1310, %v1308
    %v1367 = vpack.c.b16 %v1311, %v1309
    %v1368 = vpack.c.b16 %v1314, %v1312
    %v1369 = vpack.c.b16 %v1315, %v1313
    %v1370 = vpack.c.b16 %v1318, %v1316
    %v1371 = vpack.c.b16 %v1319, %v1317
    %v1372 = vpack.c.b16 %v1322, %v1320
    %v1373 = vpack.c.b16 %v1323, %v1321
    %v1374 = vpack.c.b16 %v1326, %v1324
    %v1375 = vpack.c.b16 %v1327, %v1325
    %v1376 = vpack.c.b16 %v1330, %v1328
    %v1377 = vpack.c.b16 %v1331, %v1329
    %v1378 = vpack.c.b16 %v1334, %v1332
    %v1379 = vpack.c.b16 %v1335, %v1333
    %v1380 = vpack.c.b16 %v1338, %v1336
    %v1381 = vpack.c.b16 %v1339, %v1337
    %v1382 = vpack.c.b16 %v1342, %v1340
    %v1383 = vpack.c.b16 %v1343, %v1341
    %v1384 = vpack.c.b16 %v1346, %v1344
    %v1385 = vpack.c.b16 %v1347, %v1345
    %v1386 = vpack.c.b16 %v1350, %v1348
    %v1387 = vpack.c.b16 %v1351, %v1349
    %v1388 = vpack.c.b16 %v1354, %v1352
    %v1389 = vpack.c.b16 %v1355, %v1353
    %v1390 = vpack.c.b16 %v1358, %v1356
    %v1391 = vpack.c.b16 %v1359, %v1357
    %1424 = vmatprep.subr.bf16.mxu0 %v1361
    %1425 = vmatpush1.bf16.msra.mxu0 %v1360
    %1426 = vmatprep.subr.bf16.mxu0 %v1363
    %1427 = vmatpush1.bf16.msra.mxu0 %v1362
    %1428 = vmatprep.subr.bf16.mxu0 %v1365
    %1429 = vmatpush1.bf16.msra.mxu0 %v1364
    %1430 = vmatprep.subr.bf16.mxu0 %v1367
    %1431 = vmatpush1.bf16.msra.mxu0 %v1366
    %1432 = vmatprep.subr.bf16.mxu0 %v1369
    %1433 = vmatpush1.bf16.msra.mxu0 %v1368
    %1434 = vmatprep.subr.bf16.mxu0 %v1371
    %1435 = vmatpush1.bf16.msra.mxu0 %v1370
    %1436 = vmatprep.subr.bf16.mxu0 %v1373
    %1437 = vmatpush1.bf16.msra.mxu0 %v1372
    %1438 = vmatprep.subr.bf16.mxu0 %v1375
    %1439 = vmatpush1.bf16.msra.mxu0 %v1374
    %1440 = vmatprep.subr.bf16.mxu0 %v1377
    %1441 = vmatpush1.bf16.msra.mxu0 %v1376
    %1442 = vmatprep.subr.bf16.mxu0 %v1379
    %1443 = vmatpush1.bf16.msra.mxu0 %v1378
    %1444 = vmatprep.subr.bf16.mxu0 %v1381
    %1445 = vmatpush1.bf16.msra.mxu0 %v1380
    %1446 = vmatprep.subr.bf16.mxu0 %v1383
    %1447 = vmatpush1.bf16.msra.mxu0 %v1382
    %1448 = vmatprep.subr.bf16.mxu0 %v1385
    %1449 = vmatpush1.bf16.msra.mxu0 %v1384
    %1450 = vmatprep.subr.bf16.mxu0 %v1387
    %1451 = vmatpush1.bf16.msra.mxu0 %v1386
    %1452 = vmatprep.subr.bf16.mxu0 %v1389
    %1453 = vmatpush1.bf16.msra.mxu0 %v1388
    %1454 = vmatprep.subr.bf16.mxu0 %v1391
    %1455 = vmatpush1.bf16.msra.mxu0 %v1390
    %1456 = vmatprep.mubr.bf16.mxu0 %v1203
    %1457 = vmatmul.mubr.bf16.gmra.mrb[0].mxu0 %v1202
    %v1458 = vpop.f32.mrb[0].mxu0
    %v1459 = vadd.f32 %v1257, %v1458
    %v1460 = vpop.f32.mrb[0].mxu0
    %v1461 = vadd.f32 %v1261, %v1460
    %v1462 = vpop.f32.mrb[0].mxu0
    %v1463 = vadd.f32 %v1257, %v1462
    %v1464 = vpop.f32.mrb[0].mxu0
    %v1465 = vadd.f32 %v1261, %v1464
    %1466 = vmatprep.mubr.bf16.mxu0 %v1205
    %1467 = vmatmul.mubr.bf16.gmra.mrb[0].mxu0 %v1204
    %v1468 = vpop.f32.mrb[0].mxu0
    %v1469 = vadd.f32 %v1257, %v1468
    %v1470 = vpop.f32.mrb[0].mxu0
    %v1471 = vadd.f32 %v1261, %v1470
    %v1472 = vpop.f32.mrb[0].mxu0
    %v1473 = vadd.f32 %v1257, %v1472
    %v1474 = vpop.f32.mrb[0].mxu0
    %v1475 = vadd.f32 %v1261, %v1474
    %1476 = vmatprep.mubr.bf16.mxu0 %v1207
    %1477 = vmatmul.mubr.bf16.gmra.mrb[0].mxu0 %v1206
    %v1478 = vpop.f32.mrb[0].mxu0
    %v1479 = vadd.f32 %v1257, %v1478
    %v1480 = vpop.f32.mrb[0].mxu0
    %v1481 = vadd.f32 %v1261, %v1480
    %v1482 = vpop.f32.mrb[0].mxu0
    %v1483 = vadd.f32 %v1257, %v1482
    %v1484 = vpop.f32.mrb[0].mxu0
    %v1485 = vadd.f32 %v1261, %v1484
    %1486 = vmatprep.mubr.bf16.mxu0 %v1209
    %1487 = vmatmul.mubr.bf16.gmra.mrb[0].mxu0 %v1208
    %v1488 = vpop.f32.mrb[0].mxu0
    %v1489 = vadd.f32 %v1257, %v1488
    %v1490 = vpop.f32.mrb[0].mxu0
    %v1491 = vadd.f32 %v1261, %v1490
    %v1492 = vpop.f32.mrb[0].mxu0
    %v1493 = vadd.f32 %v1257, %v1492
    %v1494 = vpop.f32.mrb[0].mxu0
    %v1495 = vadd.f32 %v1261, %v1494
    %1496 = vmatprep.mubr.bf16.mxu0 %v1211
    %1497 = vmatmul.mubr.bf16.gmra.mrb[0].mxu0 %v1210
    %v1498 = vpop.f32.mrb[0].mxu0
    %v1499 = vadd.f32 %v1257, %v1498
    %v1500 = vpop.f32.mrb[0].mxu0
    %v1501 = vadd.f32 %v1261, %v1500
    %v1502 = vpop.f32.mrb[0].mxu0
    %v1503 = vadd.f32 %v1257, %v1502
    %v1504 = vpop.f32.mrb[0].mxu0
    %v1505 = vadd.f32 %v1261, %v1504
    %1506 = vmatprep.mubr.bf16.mxu0 %v1213
    %1507 = vmatmul.mubr.bf16.gmra.mrb[0].mxu0 %v1212
    %v1508 = vpop.f32.mrb[0].mxu0
    %v1509 = vadd.f32 %v1257, %v1508
    %v1510 = vpop.f32.mrb[0].mxu0
    %v1511 = vadd.f32 %v1261, %v1510
    %v1512 = vpop.f32.mrb[0].mxu0
    %v1513 = vadd.f32 %v1257, %v1512
    %v1514 = vpop.f32.mrb[0].mxu0
    %v1515 = vadd.f32 %v1261, %v1514
    %1516 = vmatprep.mubr.bf16.mxu0 %v1215
    %1517 = vmatmul.mubr.bf16.gmra.mrb[0].mxu0 %v1214
    %v1518 = vpop.f32.mrb[0].mxu0
    %v1519 = vadd.f32 %v1257, %v1518
    %v1520 = vpop.f32.mrb[0].mxu0
    %v1521 = vadd.f32 %v1261, %v1520
    %v1522 = vpop.f32.mrb[0].mxu0
    %v1523 = vadd.f32 %v1257, %v1522
    %v1524 = vpop.f32.mrb[0].mxu0
    %v1525 = vadd.f32 %v1261, %v1524
    %1526 = vmatprep.mubr.bf16.mxu0 %v1217
    %1527 = vmatmul.mubr.bf16.gmra.mrb[0].mxu0 %v1216
    %v1528 = vpop.f32.mrb[0].mxu0
    %v1529 = vadd.f32 %v1257, %v1528
    %v1530 = vpop.f32.mrb[0].mxu0
    %v1531 = vadd.f32 %v1261, %v1530
    %v1532 = vpop.f32.mrb[0].mxu0
    %v1533 = vadd.f32 %v1257, %v1532
    %v1534 = vpop.f32.mrb[0].mxu0
    %v1535 = vadd.f32 %v1261, %v1534
    %1536 = vdwg.mxu0
    %v1537 = vmax.f32 %v1459, 0.0
    %v1538 = vmax.f32 %v1461, 0.0
    %v1539 = vmax.f32 %v1463, 0.0
    %v1540 = vmax.f32 %v1465, 0.0
    %v1541 = vmax.f32 %v1469, 0.0
    %v1542 = vmax.f32 %v1471, 0.0
    %v1543 = vmax.f32 %v1473, 0.0
    %v1544 = vmax.f32 %v1475, 0.0
    %v1545 = vmax.f32 %v1479, 0.0
    %v1546 = vmax.f32 %v1481, 0.0
    %v1547 = vmax.f32 %v1483, 0.0
    %v1548 = vmax.f32 %v1485, 0.0
    %v1549 = vmax.f32 %v1489, 0.0
    %v1550 = vmax.f32 %v1491, 0.0
    %v1551 = vmax.f32 %v1493, 0.0
    %v1552 = vmax.f32 %v1495, 0.0
    %v1553 = vmax.f32 %v1499, 0.0
    %v1554 = vmax.f32 %v1501, 0.0
    %v1555 = vmax.f32 %v1503, 0.0
    %v1556 = vmax.f32 %v1505, 0.0
    %v1557 = vmax.f32 %v1509, 0.0
    %v1558 = vmax.f32 %v1511, 0.0
    %v1559 = vmax.f32 %v1513, 0.0
    %v1560 = vmax.f32 %v1515, 0.0
    %v1561 = vmax.f32 %v1519, 0.0
    %v1562 = vmax.f32 %v1521, 0.0
    %v1563 = vmax.f32 %v1523, 0.0
    %v1564 = vmax.f32 %v1525, 0.0
    %v1565 = vmax.f32 %v1529, 0.0
    %v1566 = vmax.f32 %v1531, 0.0
    %v1567 = vmax.f32 %v1533, 0.0
    %v1568 = vmax.f32 %v1535, 0.0
    %v1569 = vpack.c.bf16 %v1539, %v1537
    %v1570 = vpack.c.bf16 %v1540, %v1538
    %v1571 = vpack.c.bf16 %v1543, %v1541
    %v1572 = vpack.c.bf16 %v1544, %v1542
    %v1573 = vpack.c.bf16 %v1547, %v1545
    %v1574 = vpack.c.bf16 %v1548, %v1546
    %v1575 = vpack.c.bf16 %v1551, %v1549
    %v1576 = vpack.c.bf16 %v1552, %v1550
    %v1577 = vpack.c.bf16 %v1555, %v1553
    %v1578 = vpack.c.bf16 %v1556, %v1554
    %v1579 = vpack.c.bf16 %v1559, %v1557
    %v1580 = vpack.c.bf16 %v1560, %v1558
    %v1581 = vpack.c.bf16 %v1563, %v1561
    %v1582 = vpack.c.bf16 %v1564, %v1562
    %v1583 = vpack.c.bf16 %v1567, %v1565
    %v1584 = vpack.c.bf16 %v1568, %v1566
    %s1585 = scalar_lea.vmem [#allocation4], 768
    %v1586 = vld [vmem:[%s1585] sm:$0xff]
    %v1587 = vld [vmem:[%s1585 + $0x8] sm:$0xff]
    %v1588 = vld [vmem:[%s1585 + $0x10] sm:$0xff]
    %v1589 = vld [vmem:[%s1585 + $0x18] sm:$0xff]
    %v1590 = vld [vmem:[%s1585 + $0x20] sm:$0xff]
    %v1591 = vld [vmem:[%s1585 + $0x28] sm:$0xff]
    %v1592 = vld [vmem:[%s1585 + $0x30] sm:$0xff]
    %v1593 = vld [vmem:[%s1585 + $0x38] sm:$0xff]
    %v1594 = vld [vmem:[%s1585 + $0x40] sm:$0xff]
    %v1595 = vld [vmem:[%s1585 + $0x48] sm:$0xff]
    %v1596 = vld [vmem:[%s1585 + $0x50] sm:$0xff]
    %v1597 = vld [vmem:[%s1585 + $0x58] sm:$0xff]
    %v1598 = vld [vmem:[%s1585 + $0x60] sm:$0xff]
    %v1599 = vld [vmem:[%s1585 + $0x68] sm:$0xff]
    %v1600 = vld [vmem:[%s1585 + $0x70] sm:$0xff]
    %v1601 = vld [vmem:[%s1585 + $0x78] sm:$0xff]
    %v1602 = vld [vmem:[%s1585 + $0x80] sm:$0xff]
    %v1603 = vld [vmem:[%s1585 + $0x88] sm:$0xff]
    %v1604 = vld [vmem:[%s1585 + $0x90] sm:$0xff]
    %v1605 = vld [vmem:[%s1585 + $0x98] sm:$0xff]
    %v1606 = vld [vmem:[%s1585 + $0xa0] sm:$0xff]
    %v1607 = vld [vmem:[%s1585 + $0xa8] sm:$0xff]
    %v1608 = vld [vmem:[%s1585 + $0xb0] sm:$0xff]
    %v1609 = vld [vmem:[%s1585 + $0xb8] sm:$0xff]
    %v1610 = vld [vmem:[%s1585 + $0xc0] sm:$0xff]
    %v1611 = vld [vmem:[%s1585 + $0xc8] sm:$0xff]
    %v1612 = vld [vmem:[%s1585 + $0xd0] sm:$0xff]
    %v1613 = vld [vmem:[%s1585 + $0xd8] sm:$0xff]
    %v1614 = vld [vmem:[%s1585 + $0xe0] sm:$0xff]
    %v1615 = vld [vmem:[%s1585 + $0xe8] sm:$0xff]
    %v1616 = vld [vmem:[%s1585 + $0xf0] sm:$0xff]
    %v1617 = vld [vmem:[%s1585 + $0xf8] sm:$0xff]
    %s1618 = scalar_lea.vmem [#allocation6], 4
    %v1619 = vld [vmem:[%s1618] ss:$8 sm:$0x3]
    %v1621 = vlaneseq
    %v1622 = vshrl.u32 %v1621, 7
    %v1623 = vsub.s32 0, %v1622
    %v1624 = vrot.slane %v1619, %v1623
    %v1625 = vlaneseq
    %v1626 = vshrl.u32 %v1625, 7
    %v1627 = vsub.s32 1, %v1626
    %v1628 = vrot.slane %v1619, %v1627
    %v1663 = vunpack.c.l.b16 %v1586
    %v1664 = vunpack.c.h.b16 %v1586
    %v1665 = vunpack.c.l.b16 %v1587
    %v1666 = vunpack.c.h.b16 %v1587
    %v1667 = vunpack.c.l.b16 %v1588
    %v1668 = vunpack.c.h.b16 %v1588
    %v1669 = vunpack.c.l.b16 %v1589
    %v1670 = vunpack.c.h.b16 %v1589
    %v1671 = vunpack.c.l.b16 %v1590
    %v1672 = vunpack.c.h.b16 %v1590
    %v1673 = vunpack.c.l.b16 %v1591
    %v1674 = vunpack.c.h.b16 %v1591
    %v1675 = vunpack.c.l.b16 %v1592
    %v1676 = vunpack.c.h.b16 %v1592
    %v1677 = vunpack.c.l.b16 %v1593
    %v1678 = vunpack.c.h.b16 %v1593
    %v1679 = vunpack.c.l.b16 %v1594
    %v1680 = vunpack.c.h.b16 %v1594
    %v1681 = vunpack.c.l.b16 %v1595
    %v1682 = vunpack.c.h.b16 %v1595
    %v1683 = vunpack.c.l.b16 %v1596
    %v1684 = vunpack.c.h.b16 %v1596
    %v1685 = vunpack.c.l.b16 %v1597
    %v1686 = vunpack.c.h.b16 %v1597
    %v1687 = vunpack.c.l.b16 %v1598
    %v1688 = vunpack.c.h.b16 %v1598
    %v1689 = vunpack.c.l.b16 %v1599
    %v1690 = vunpack.c.h.b16 %v1599
    %v1691 = vunpack.c.l.b16 %v1600
    %v1692 = vunpack.c.h.b16 %v1600
    %v1693 = vunpack.c.l.b16 %v1601
    %v1694 = vunpack.c.h.b16 %v1601
    %v1695 = vunpack.c.l.b16 %v1602
    %v1696 = vunpack.c.h.b16 %v1602
    %v1697 = vunpack.c.l.b16 %v1603
    %v1698 = vunpack.c.h.b16 %v1603
    %v1699 = vunpack.c.l.b16 %v1604
    %v1700 = vunpack.c.h.b16 %v1604
    %v1701 = vunpack.c.l.b16 %v1605
    %v1702 = vunpack.c.h.b16 %v1605
    %v1703 = vunpack.c.l.b16 %v1606
    %v1704 = vunpack.c.h.b16 %v1606
    %v1705 = vunpack.c.l.b16 %v1607
    %v1706 = vunpack.c.h.b16 %v1607
    %v1707 = vunpack.c.l.b16 %v1608
    %v1708 = vunpack.c.h.b16 %v1608
    %v1709 = vunpack.c.l.b16 %v1609
    %v1710 = vunpack.c.h.b16 %v1609
    %v1711 = vunpack.c.l.b16 %v1610
    %v1712 = vunpack.c.h.b16 %v1610
    %v1713 = vunpack.c.l.b16 %v1611
    %v1714 = vunpack.c.h.b16 %v1611
    %v1715 = vunpack.c.l.b16 %v1612
    %v1716 = vunpack.c.h.b16 %v1612
    %v1717 = vunpack.c.l.b16 %v1613
    %v1718 = vunpack.c.h.b16 %v1613
    %v1719 = vunpack.c.l.b16 %v1614
    %v1720 = vunpack.c.h.b16 %v1614
    %v1721 = vunpack.c.l.b16 %v1615
    %v1722 = vunpack.c.h.b16 %v1615
    %v1723 = vunpack.c.l.b16 %v1616
    %v1724 = vunpack.c.h.b16 %v1616
    %v1725 = vunpack.c.l.b16 %v1617
    %v1726 = vunpack.c.h.b16 %v1617
    %v1727 = vpack.c.b16 %v1665, %v1663
    %v1728 = vpack.c.b16 %v1666, %v1664
    %v1729 = vpack.c.b16 %v1669, %v1667
    %v1730 = vpack.c.b16 %v1670, %v1668
    %v1731 = vpack.c.b16 %v1673, %v1671
    %v1732 = vpack.c.b16 %v1674, %v1672
    %v1733 = vpack.c.b16 %v1677, %v1675
    %v1734 = vpack.c.b16 %v1678, %v1676
    %v1735 = vpack.c.b16 %v1681, %v1679
    %v1736 = vpack.c.b16 %v1682, %v1680
    %v1737 = vpack.c.b16 %v1685, %v1683
    %v1738 = vpack.c.b16 %v1686, %v1684
    %v1739 = vpack.c.b16 %v1689, %v1687
    %v1740 = vpack.c.b16 %v1690, %v1688
    %v1741 = vpack.c.b16 %v1693, %v1691
    %v1742 = vpack.c.b16 %v1694, %v1692
    %v1743 = vpack.c.b16 %v1697, %v1695
    %v1744 = vpack.c.b16 %v1698, %v1696
    %v1745 = vpack.c.b16 %v1701, %v1699
    %v1746 = vpack.c.b16 %v1702, %v1700
    %v1747 = vpack.c.b16 %v1705, %v1703
    %v1748 = vpack.c.b16 %v1706, %v1704
    %v1749 = vpack.c.b16 %v1709, %v1707
    %v1750 = vpack.c.b16 %v1710, %v1708
    %v1751 = vpack.c.b16 %v1713, %v1711
    %v1752 = vpack.c.b16 %v1714, %v1712
    %v1753 = vpack.c.b16 %v1717, %v1715
    %v1754 = vpack.c.b16 %v1718, %v1716
    %v1755 = vpack.c.b16 %v1721, %v1719
    %v1756 = vpack.c.b16 %v1722, %v1720
    %v1757 = vpack.c.b16 %v1725, %v1723
    %v1758 = vpack.c.b16 %v1726, %v1724
    %1791 = vmatprep.subr.bf16.mxu0 %v1728
    %1792 = vmatpush1.bf16.msra.mxu0 %v1727
    %1793 = vmatprep.subr.bf16.mxu0 %v1730
    %1794 = vmatpush1.bf16.msra.mxu0 %v1729
    %1795 = vmatprep.subr.bf16.mxu0 %v1732
    %1796 = vmatpush1.bf16.msra.mxu0 %v1731
    %1797 = vmatprep.subr.bf16.mxu0 %v1734
    %1798 = vmatpush1.bf16.msra.mxu0 %v1733
    %1799 = vmatprep.subr.bf16.mxu0 %v1736
    %1800 = vmatpush1.bf16.msra.mxu0 %v1735
    %1801 = vmatprep.subr.bf16.mxu0 %v1738
    %1802 = vmatpush1.bf16.msra.mxu0 %v1737
    %1803 = vmatprep.subr.bf16.mxu0 %v1740
    %1804 = vmatpush1.bf16.msra.mxu0 %v1739
    %1805 = vmatprep.subr.bf16.mxu0 %v1742
    %1806 = vmatpush1.bf16.msra.mxu0 %v1741
    %1807 = vmatprep.subr.bf16.mxu0 %v1744
    %1808 = vmatpush1.bf16.msra.mxu0 %v1743
    %1809 = vmatprep.subr.bf16.mxu0 %v1746
    %1810 = vmatpush1.bf16.msra.mxu0 %v1745
    %1811 = vmatprep.subr.bf16.mxu0 %v1748
    %1812 = vmatpush1.bf16.msra.mxu0 %v1747
    %1813 = vmatprep.subr.bf16.mxu0 %v1750
    %1814 = vmatpush1.bf16.msra.mxu0 %v1749
    %1815 = vmatprep.subr.bf16.mxu0 %v1752
    %1816 = vmatpush1.bf16.msra.mxu0 %v1751
    %1817 = vmatprep.subr.bf16.mxu0 %v1754
    %1818 = vmatpush1.bf16.msra.mxu0 %v1753
    %1819 = vmatprep.subr.bf16.mxu0 %v1756
    %1820 = vmatpush1.bf16.msra.mxu0 %v1755
    %1821 = vmatprep.subr.bf16.mxu0 %v1758
    %1822 = vmatpush1.bf16.msra.mxu0 %v1757
    %1823 = vmatprep.mubr.bf16.mxu0 %v1570
    %1824 = vmatmul.mubr.bf16.gmra.mrb[0].mxu0 %v1569
    %v1825 = vpop.f32.mrb[0].mxu0
    %v1826 = vadd.f32 %v1624, %v1825
    %v1827 = vpop.f32.mrb[0].mxu0
    %v1828 = vadd.f32 %v1628, %v1827
    %v1829 = vpop.f32.mrb[0].mxu0
    %v1830 = vadd.f32 %v1624, %v1829
    %v1831 = vpop.f32.mrb[0].mxu0
    %v1832 = vadd.f32 %v1628, %v1831
    %1833 = vmatprep.mubr.bf16.mxu0 %v1572
    %1834 = vmatmul.mubr.bf16.gmra.mrb[0].mxu0 %v1571
    %v1835 = vpop.f32.mrb[0].mxu0
    %v1836 = vadd.f32 %v1624, %v1835
    %v1837 = vpop.f32.mrb[0].mxu0
    %v1838 = vadd.f32 %v1628, %v1837
    %v1839 = vpop.f32.mrb[0].mxu0
    %v1840 = vadd.f32 %v1624, %v1839
    %v1841 = vpop.f32.mrb[0].mxu0
    %v1842 = vadd.f32 %v1628, %v1841
    %1843 = vmatprep.mubr.bf16.mxu0 %v1574
    %1844 = vmatmul.mubr.bf16.gmra.mrb[0].mxu0 %v1573
    %v1845 = vpop.f32.mrb[0].mxu0
    %v1846 = vadd.f32 %v1624, %v1845
    %v1847 = vpop.f32.mrb[0].mxu0
    %v1848 = vadd.f32 %v1628, %v1847
    %v1849 = vpop.f32.mrb[0].mxu0
    %v1850 = vadd.f32 %v1624, %v1849
    %v1851 = vpop.f32.mrb[0].mxu0
    %v1852 = vadd.f32 %v1628, %v1851
    %1853 = vmatprep.mubr.bf16.mxu0 %v1576
    %1854 = vmatmul.mubr.bf16.gmra.mrb[0].mxu0 %v1575
    %v1855 = vpop.f32.mrb[0].mxu0
    %v1856 = vadd.f32 %v1624, %v1855
    %v1857 = vpop.f32.mrb[0].mxu0
    %v1858 = vadd.f32 %v1628, %v1857
    %v1859 = vpop.f32.mrb[0].mxu0
    %v1860 = vadd.f32 %v1624, %v1859
    %v1861 = vpop.f32.mrb[0].mxu0
    %v1862 = vadd.f32 %v1628, %v1861
    %1863 = vmatprep.mubr.bf16.mxu0 %v1578
    %1864 = vmatmul.mubr.bf16.gmra.mrb[0].mxu0 %v1577
    %v1865 = vpop.f32.mrb[0].mxu0
    %v1866 = vadd.f32 %v1624, %v1865
    %v1867 = vpop.f32.mrb[0].mxu0
    %v1868 = vadd.f32 %v1628, %v1867
    %v1869 = vpop.f32.mrb[0].mxu0
    %v1870 = vadd.f32 %v1624, %v1869
    %v1871 = vpop.f32.mrb[0].mxu0
    %v1872 = vadd.f32 %v1628, %v1871
    %1873 = vmatprep.mubr.bf16.mxu0 %v1580
    %1874 = vmatmul.mubr.bf16.gmra.mrb[0].mxu0 %v1579
    %v1875 = vpop.f32.mrb[0].mxu0
    %v1876 = vadd.f32 %v1624, %v1875
    %v1877 = vpop.f32.mrb[0].mxu0
    %v1878 = vadd.f32 %v1628, %v1877
    %v1879 = vpop.f32.mrb[0].mxu0
    %v1880 = vadd.f32 %v1624, %v1879
    %v1881 = vpop.f32.mrb[0].mxu0
    %v1882 = vadd.f32 %v1628, %v1881
    %1883 = vmatprep.mubr.bf16.mxu0 %v1582
    %1884 = vmatmul.mubr.bf16.gmra.mrb[0].mxu0 %v1581
    %v1885 = vpop.f32.mrb[0].mxu0
    %v1886 = vadd.f32 %v1624, %v1885
    %v1887 = vpop.f32.mrb[0].mxu0
    %v1888 = vadd.f32 %v1628, %v1887
    %v1889 = vpop.f32.mrb[0].mxu0
    %v1890 = vadd.f32 %v1624, %v1889
    %v1891 = vpop.f32.mrb[0].mxu0
    %v1892 = vadd.f32 %v1628, %v1891
    %1893 = vmatprep.mubr.bf16.mxu0 %v1584
    %1894 = vmatmul.mubr.bf16.gmra.mrb[0].mxu0 %v1583
    %v1895 = vpop.f32.mrb[0].mxu0
    %v1896 = vadd.f32 %v1624, %v1895
    %v1897 = vpop.f32.mrb[0].mxu0
    %v1898 = vadd.f32 %v1628, %v1897
    %v1899 = vpop.f32.mrb[0].mxu0
    %v1900 = vadd.f32 %v1624, %v1899
    %v1901 = vpop.f32.mrb[0].mxu0
    %v1902 = vadd.f32 %v1628, %v1901
    %1903 = vdwg.mxu0
    %v1904 = vmax.f32 %v1826, 0.0
    %v1905 = vmax.f32 %v1828, 0.0
    %v1906 = vmax.f32 %v1830, 0.0
    %v1907 = vmax.f32 %v1832, 0.0
    %v1908 = vmax.f32 %v1836, 0.0
    %v1909 = vmax.f32 %v1838, 0.0
    %v1910 = vmax.f32 %v1840, 0.0
    %v1911 = vmax.f32 %v1842, 0.0
    %v1912 = vmax.f32 %v1846, 0.0
    %v1913 = vmax.f32 %v1848, 0.0
    %v1914 = vmax.f32 %v1850, 0.0
    %v1915 = vmax.f32 %v1852, 0.0
    %v1916 = vmax.f32 %v1856, 0.0
    %v1917 = vmax.f32 %v1858, 0.0
    %v1918 = vmax.f32 %v1860, 0.0
    %v1919 = vmax.f32 %v1862, 0.0
    %v1920 = vmax.f32 %v1866, 0.0
    %v1921 = vmax.f32 %v1868, 0.0
    %v1922 = vmax.f32 %v1870, 0.0
    %v1923 = vmax.f32 %v1872, 0.0
    %v1924 = vmax.f32 %v1876, 0.0
    %v1925 = vmax.f32 %v1878, 0.0
    %v1926 = vmax.f32 %v1880, 0.0
    %v1927 = vmax.f32 %v1882, 0.0
    %v1928 = vmax.f32 %v1886, 0.0
    %v1929 = vmax.f32 %v1888, 0.0
    %v1930 = vmax.f32 %v1890, 0.0
    %v1931 = vmax.f32 %v1892, 0.0
    %v1932 = vmax.f32 %v1896, 0.0
    %v1933 = vmax.f32 %v1898, 0.0
    %v1934 = vmax.f32 %v1900, 0.0
    %v1935 = vmax.f32 %v1902, 0.0
    %v1936 = vpack.c.bf16 %v1906, %v1904
    %v1937 = vpack.c.bf16 %v1907, %v1905
    %v1938 = vpack.c.bf16 %v1910, %v1908
    %v1939 = vpack.c.bf16 %v1911, %v1909
    %v1940 = vpack.c.bf16 %v1914, %v1912
    %v1941 = vpack.c.bf16 %v1915, %v1913
    %v1942 = vpack.c.bf16 %v1918, %v1916
    %v1943 = vpack.c.bf16 %v1919, %v1917
    %v1944 = vpack.c.bf16 %v1922, %v1920
    %v1945 = vpack.c.bf16 %v1923, %v1921
    %v1946 = vpack.c.bf16 %v1926, %v1924
    %v1947 = vpack.c.bf16 %v1927, %v1925
    %v1948 = vpack.c.bf16 %v1930, %v1928
    %v1949 = vpack.c.bf16 %v1931, %v1929
    %v1950 = vpack.c.bf16 %v1934, %v1932
    %v1951 = vpack.c.bf16 %v1935, %v1933
    %s1952 = scalar_lea.vmem [#allocation4], 1024
    %v1953 = vld [vmem:[%s1952] sm:$0xff]
    %v1954 = vld [vmem:[%s1952 + $0x8] sm:$0xff]
    %v1955 = vld [vmem:[%s1952 + $0x10] sm:$0xff]
    %v1956 = vld [vmem:[%s1952 + $0x18] sm:$0xff]
    %v1957 = vld [vmem:[%s1952 + $0x20] sm:$0xff]
    %v1958 = vld [vmem:[%s1952 + $0x28] sm:$0xff]
    %v1959 = vld [vmem:[%s1952 + $0x30] sm:$0xff]
    %v1960 = vld [vmem:[%s1952 + $0x38] sm:$0xff]
    %v1961 = vld [vmem:[%s1952 + $0x40] sm:$0xff]
    %v1962 = vld [vmem:[%s1952 + $0x48] sm:$0xff]
    %v1963 = vld [vmem:[%s1952 + $0x50] sm:$0xff]
    %v1964 = vld [vmem:[%s1952 + $0x58] sm:$0xff]
    %v1965 = vld [vmem:[%s1952 + $0x60] sm:$0xff]
    %v1966 = vld [vmem:[%s1952 + $0x68] sm:$0xff]
    %v1967 = vld [vmem:[%s1952 + $0x70] sm:$0xff]
    %v1968 = vld [vmem:[%s1952 + $0x78] sm:$0xff]
    %v1969 = vld [vmem:[%s1952 + $0x80] sm:$0xff]
    %v1970 = vld [vmem:[%s1952 + $0x88] sm:$0xff]
    %v1971 = vld [vmem:[%s1952 + $0x90] sm:$0xff]
    %v1972 = vld [vmem:[%s1952 + $0x98] sm:$0xff]
    %v1973 = vld [vmem:[%s1952 + $0xa0] sm:$0xff]
    %v1974 = vld [vmem:[%s1952 + $0xa8] sm:$0xff]
    %v1975 = vld [vmem:[%s1952 + $0xb0] sm:$0xff]
    %v1976 = vld [vmem:[%s1952 + $0xb8] sm:$0xff]
    %v1977 = vld [vmem:[%s1952 + $0xc0] sm:$0xff]
    %v1978 = vld [vmem:[%s1952 + $0xc8] sm:$0xff]
    %v1979 = vld [vmem:[%s1952 + $0xd0] sm:$0xff]
    %v1980 = vld [vmem:[%s1952 + $0xd8] sm:$0xff]
    %v1981 = vld [vmem:[%s1952 + $0xe0] sm:$0xff]
    %v1982 = vld [vmem:[%s1952 + $0xe8] sm:$0xff]
    %v1983 = vld [vmem:[%s1952 + $0xf0] sm:$0xff]
    %v1984 = vld [vmem:[%s1952 + $0xf8] sm:$0xff]
    %v2017 = vunpack.c.l.b16 %v1953
    %v2018 = vunpack.c.h.b16 %v1953
    %v2019 = vunpack.c.l.b16 %v1954
    %v2020 = vunpack.c.h.b16 %v1954
    %v2021 = vunpack.c.l.b16 %v1955
    %v2022 = vunpack.c.h.b16 %v1955
    %v2023 = vunpack.c.l.b16 %v1956
    %v2024 = vunpack.c.h.b16 %v1956
    %v2025 = vunpack.c.l.b16 %v1957
    %v2026 = vunpack.c.h.b16 %v1957
    %v2027 = vunpack.c.l.b16 %v1958
    %v2028 = vunpack.c.h.b16 %v1958
    %v2029 = vunpack.c.l.b16 %v1959
    %v2030 = vunpack.c.h.b16 %v1959
    %v2031 = vunpack.c.l.b16 %v1960
    %v2032 = vunpack.c.h.b16 %v1960
    %v2033 = vunpack.c.l.b16 %v1961
    %v2034 = vunpack.c.h.b16 %v1961
    %v2035 = vunpack.c.l.b16 %v1962
    %v2036 = vunpack.c.h.b16 %v1962
    %v2037 = vunpack.c.l.b16 %v1963
    %v2038 = vunpack.c.h.b16 %v1963
    %v2039 = vunpack.c.l.b16 %v1964
    %v2040 = vunpack.c.h.b16 %v1964
    %v2041 = vunpack.c.l.b16 %v1965
    %v2042 = vunpack.c.h.b16 %v1965
    %v2043 = vunpack.c.l.b16 %v1966
    %v2044 = vunpack.c.h.b16 %v1966
    %v2045 = vunpack.c.l.b16 %v1967
    %v2046 = vunpack.c.h.b16 %v1967
    %v2047 = vunpack.c.l.b16 %v1968
    %v2048 = vunpack.c.h.b16 %v1968
    %v2049 = vunpack.c.l.b16 %v1969
    %v2050 = vunpack.c.h.b16 %v1969
    %v2051 = vunpack.c.l.b16 %v1970
    %v2052 = vunpack.c.h.b16 %v1970
    %v2053 = vunpack.c.l.b16 %v1971
    %v2054 = vunpack.c.h.b16 %v1971
    %v2055 = vunpack.c.l.b16 %v1972
    %v2056 = vunpack.c.h.b16 %v1972
    %v2057 = vunpack.c.l.b16 %v1973
    %v2058 = vunpack.c.h.b16 %v1973
    %v2059 = vunpack.c.l.b16 %v1974
    %v2060 = vunpack.c.h.b16 %v1974
    %v2061 = vunpack.c.l.b16 %v1975
    %v2062 = vunpack.c.h.b16 %v1975
    %v2063 = vunpack.c.l.b16 %v1976
    %v2064 = vunpack.c.h.b16 %v1976
    %v2065 = vunpack.c.l.b16 %v1977
    %v2066 = vunpack.c.h.b16 %v1977
    %v2067 = vunpack.c.l.b16 %v1978
    %v2068 = vunpack.c.h.b16 %v1978
    %v2069 = vunpack.c.l.b16 %v1979
    %v2070 = vunpack.c.h.b16 %v1979
    %v2071 = vunpack.c.l.b16 %v1980
    %v2072 = vunpack.c.h.b16 %v1980
    %v2073 = vunpack.c.l.b16 %v1981
    %v2074 = vunpack.c.h.b16 %v1981
    %v2075 = vunpack.c.l.b16 %v1982
    %v2076 = vunpack.c.h.b16 %v1982
    %v2077 = vunpack.c.l.b16 %v1983
    %v2078 = vunpack.c.h.b16 %v1983
    %v2079 = vunpack.c.l.b16 %v1984
    %v2080 = vunpack.c.h.b16 %v1984
    %v2081 = vpack.c.b16 %v2019, %v2017
    %v2082 = vpack.c.b16 %v2020, %v2018
    %v2083 = vpack.c.b16 %v2023, %v2021
    %v2084 = vpack.c.b16 %v2024, %v2022
    %v2085 = vpack.c.b16 %v2027, %v2025
    %v2086 = vpack.c.b16 %v2028, %v2026
    %v2087 = vpack.c.b16 %v2031, %v2029
    %v2088 = vpack.c.b16 %v2032, %v2030
    %v2089 = vpack.c.b16 %v2035, %v2033
    %v2090 = vpack.c.b16 %v2036, %v2034
    %v2091 = vpack.c.b16 %v2039, %v2037
    %v2092 = vpack.c.b16 %v2040, %v2038
    %v2093 = vpack.c.b16 %v2043, %v2041
    %v2094 = vpack.c.b16 %v2044, %v2042
    %v2095 = vpack.c.b16 %v2047, %v2045
    %v2096 = vpack.c.b16 %v2048, %v2046
    %v2097 = vpack.c.b16 %v2051, %v2049
    %v2098 = vpack.c.b16 %v2052, %v2050
    %v2099 = vpack.c.b16 %v2055, %v2053
    %v2100 = vpack.c.b16 %v2056, %v2054
    %v2101 = vpack.c.b16 %v2059, %v2057
    %v2102 = vpack.c.b16 %v2060, %v2058
    %v2103 = vpack.c.b16 %v2063, %v2061
    %v2104 = vpack.c.b16 %v2064, %v2062
    %v2105 = vpack.c.b16 %v2067, %v2065
    %v2106 = vpack.c.b16 %v2068, %v2066
    %v2107 = vpack.c.b16 %v2071, %v2069
    %v2108 = vpack.c.b16 %v2072, %v2070
    %v2109 = vpack.c.b16 %v2075, %v2073
    %v2110 = vpack.c.b16 %v2076, %v2074
    %v2111 = vpack.c.b16 %v2079, %v2077
    %v2112 = vpack.c.b16 %v2080, %v2078
    %2145 = vmatprep.subr.bf16.mxu0 %v2082
    %2146 = vmatpush1.bf16.msra.mxu0 %v2081
    %2147 = vmatprep.subr.bf16.mxu0 %v2084
    %2148 = vmatpush1.bf16.msra.mxu0 %v2083
    %2149 = vmatprep.subr.bf16.mxu0 %v2086
    %2150 = vmatpush1.bf16.msra.mxu0 %v2085
    %2151 = vmatprep.subr.bf16.mxu0 %v2088
    %2152 = vmatpush1.bf16.msra.mxu0 %v2087
    %2153 = vmatprep.subr.bf16.mxu0 %v2090
    %2154 = vmatpush1.bf16.msra.mxu0 %v2089
    %2155 = vmatprep.subr.bf16.mxu0 %v2092
    %2156 = vmatpush1.bf16.msra.mxu0 %v2091
    %2157 = vmatprep.subr.bf16.mxu0 %v2094
    %2158 = vmatpush1.bf16.msra.mxu0 %v2093
    %2159 = vmatprep.subr.bf16.mxu0 %v2096
    %2160 = vmatpush1.bf16.msra.mxu0 %v2095
    %2161 = vmatprep.subr.bf16.mxu0 %v2098
    %2162 = vmatpush1.bf16.msra.mxu0 %v2097
    %2163 = vmatprep.subr.bf16.mxu0 %v2100
    %2164 = vmatpush1.bf16.msra.mxu0 %v2099
    %2165 = vmatprep.subr.bf16.mxu0 %v2102
    %2166 = vmatpush1.bf16.msra.mxu0 %v2101
    %2167 = vmatprep.subr.bf16.mxu0 %v2104
    %2168 = vmatpush1.bf16.msra.mxu0 %v2103
    %2169 = vmatprep.subr.bf16.mxu0 %v2106
    %2170 = vmatpush1.bf16.msra.mxu0 %v2105
    %2171 = vmatprep.subr.bf16.mxu0 %v2108
    %2172 = vmatpush1.bf16.msra.mxu0 %v2107
    %2173 = vmatprep.subr.bf16.mxu0 %v2110
    %2174 = vmatpush1.bf16.msra.mxu0 %v2109
    %2175 = vmatprep.subr.bf16.mxu0 %v2112
    %2176 = vmatpush1.bf16.msra.mxu0 %v2111
    %2177 = vmatprep.mubr.bf16.mxu0 %v1937
    %2178 = vmatmul.mubr.bf16.gmra.mrb[0].mxu0 %v1936
    %v2179 = vpop.f32.mrb[0].mxu0
    %v2180 = vadd.f32 %v315, %v2179
    %v2181 = vpop.f32.mrb[0].mxu0
    %v2182 = vadd.f32 %v317, %v2181
    %v2183 = vpop.f32.mrb[0].mxu0
    %v2184 = vadd.f32 %v319, %v2183
    %v2185 = vpop.f32.mrb[0].mxu0
    %v2186 = vadd.f32 %v321, %v2185
    %2187 = vmatprep.mubr.bf16.mxu0 %v1939
    %2188 = vmatmul.mubr.bf16.gmra.mrb[0].mxu0 %v1938
    %v2189 = vpop.f32.mrb[0].mxu0
    %v2190 = vadd.f32 %v325, %v2189
    %v2191 = vpop.f32.mrb[0].mxu0
    %v2192 = vadd.f32 %v327, %v2191
    %v2193 = vpop.f32.mrb[0].mxu0
    %v2194 = vadd.f32 %v329, %v2193
    %v2195 = vpop.f32.mrb[0].mxu0
    %v2196 = vadd.f32 %v331, %v2195
    %2197 = vmatprep.mubr.bf16.mxu0 %v1941
    %2198 = vmatmul.mubr.bf16.gmra.mrb[0].mxu0 %v1940
    %v2199 = vpop.f32.mrb[0].mxu0
    %v2200 = vadd.f32 %v335, %v2199
    %v2201 = vpop.f32.mrb[0].mxu0
    %v2202 = vadd.f32 %v337, %v2201
    %v2203 = vpop.f32.mrb[0].mxu0
    %v2204 = vadd.f32 %v339, %v2203
    %v2205 = vpop.f32.mrb[0].mxu0
    %v2206 = vadd.f32 %v341, %v2205
    %2207 = vmatprep.mubr.bf16.mxu0 %v1943
    %2208 = vmatmul.mubr.bf16.gmra.mrb[0].mxu0 %v1942
    %v2209 = vpop.f32.mrb[0].mxu0
    %v2210 = vadd.f32 %v345, %v2209
    %v2211 = vpop.f32.mrb[0].mxu0
    %v2212 = vadd.f32 %v347, %v2211
    %v2213 = vpop.f32.mrb[0].mxu0
    %v2214 = vadd.f32 %v349, %v2213
    %v2215 = vpop.f32.mrb[0].mxu0
    %v2216 = vadd.f32 %v351, %v2215
    %2217 = vmatprep.mubr.bf16.mxu0 %v1945
    %2218 = vmatmul.mubr.bf16.gmra.mrb[0].mxu0 %v1944
    %v2219 = vpop.f32.mrb[0].mxu0
    %v2220 = vadd.f32 %v355, %v2219
    %v2221 = vpop.f32.mrb[0].mxu0
    %v2222 = vadd.f32 %v357, %v2221
    %v2223 = vpop.f32.mrb[0].mxu0
    %v2224 = vadd.f32 %v359, %v2223
    %v2225 = vpop.f32.mrb[0].mxu0
    %v2226 = vadd.f32 %v361, %v2225
    %2227 = vmatprep.mubr.bf16.mxu0 %v1947
    %2228 = vmatmul.mubr.bf16.gmra.mrb[0].mxu0 %v1946
    %v2229 = vpop.f32.mrb[0].mxu0
    %v2230 = vadd.f32 %v365, %v2229
    %v2231 = vpop.f32.mrb[0].mxu0
    %v2232 = vadd.f32 %v367, %v2231
    %v2233 = vpop.f32.mrb[0].mxu0
    %v2234 = vadd.f32 %v369, %v2233
    %v2235 = vpop.f32.mrb[0].mxu0
    %v2236 = vadd.f32 %v371, %v2235
    %2237 = vmatprep.mubr.bf16.mxu0 %v1949
    %2238 = vmatmul.mubr.bf16.gmra.mrb[0].mxu0 %v1948
    %v2239 = vpop.f32.mrb[0].mxu0
    %v2240 = vadd.f32 %v375, %v2239
    %v2241 = vpop.f32.mrb[0].mxu0
    %v2242 = vadd.f32 %v377, %v2241
    %v2243 = vpop.f32.mrb[0].mxu0
    %v2244 = vadd.f32 %v379, %v2243
    %v2245 = vpop.f32.mrb[0].mxu0
    %v2246 = vadd.f32 %v381, %v2245
    %2247 = vmatprep.mubr.bf16.mxu0 %v1951
    %2248 = vmatmul.mubr.bf16.gmra.mrb[0].mxu0 %v1950
    %v2249 = vpop.f32.mrb[0].mxu0
    %v2250 = vadd.f32 %v385, %v2249
    %v2251 = vpop.f32.mrb[0].mxu0
    %v2252 = vadd.f32 %v387, %v2251
    %v2253 = vpop.f32.mrb[0].mxu0
    %v2254 = vadd.f32 %v389, %v2253
    %v2255 = vpop.f32.mrb[0].mxu0
    %v2256 = vadd.f32 %v391, %v2255
    %2257 = vdwg.mxu0
    %s2258 = scalar_lea.vmem [#allocation6], 5
    %v2259 = vld [vmem:[%s2258] ss:$8 sm:$0x3]
    %v2261 = vlaneseq
    %v2262 = vshrl.u32 %v2261, 7
    %v2263 = vsub.s32 0, %v2262
    %v2264 = vrot.slane %v2259, %v2263
    %v2265 = vlaneseq
    %v2266 = vshrl.u32 %v2265, 7
    %v2267 = vsub.s32 1, %v2266
    %v2268 = vrot.slane %v2259, %v2267
    %v2271 = vadd.f32 %v2180, %v2264
    %v2272 = vadd.f32 %v2182, %v2268
    %v2273 = vadd.f32 %v2184, %v2264
    %v2274 = vadd.f32 %v2186, %v2268
    %v2275 = vadd.f32 %v2190, %v2264
    %v2276 = vadd.f32 %v2192, %v2268
    %v2277 = vadd.f32 %v2194, %v2264
    %v2278 = vadd.f32 %v2196, %v2268
    %v2279 = vadd.f32 %v2200, %v2264
    %v2280 = vadd.f32 %v2202, %v2268
    %v2281 = vadd.f32 %v2204, %v2264
    %v2282 = vadd.f32 %v2206, %v2268
    %v2283 = vadd.f32 %v2210, %v2264
    %v2284 = vadd.f32 %v2212, %v2268
    %v2285 = vadd.f32 %v2214, %v2264
    %v2286 = vadd.f32 %v2216, %v2268
    %v2287 = vadd.f32 %v2220, %v2264
    %v2288 = vadd.f32 %v2222, %v2268
    %v2289 = vadd.f32 %v2224, %v2264
    %v2290 = vadd.f32 %v2226, %v2268
    %v2291 = vadd.f32 %v2230, %v2264
    %v2292 = vadd.f32 %v2232, %v2268
    %v2293 = vadd.f32 %v2234, %v2264
    %v2294 = vadd.f32 %v2236, %v2268
    %v2295 = vadd.f32 %v2240, %v2264
    %v2296 = vadd.f32 %v2242, %v2268
    %v2297 = vadd.f32 %v2244, %v2264
    %v2298 = vadd.f32 %v2246, %v2268
    %v2299 = vadd.f32 %v2250, %v2264
    %v2300 = vadd.f32 %v2252, %v2268
    %v2301 = vadd.f32 %v2254, %v2264
    %v2302 = vadd.f32 %v2256, %v2268
    %v2303 = vmax.f32 %v2271, 0.0
    %v2304 = vmax.f32 %v2272, 0.0
    %v2305 = vmax.f32 %v2273, 0.0
    %v2306 = vmax.f32 %v2274, 0.0
    %v2307 = vmax.f32 %v2275, 0.0
    %v2308 = vmax.f32 %v2276, 0.0
    %v2309 = vmax.f32 %v2277, 0.0
    %v2310 = vmax.f32 %v2278, 0.0
    %v2311 = vmax.f32 %v2279, 0.0
    %v2312 = vmax.f32 %v2280, 0.0
    %v2313 = vmax.f32 %v2281, 0.0
    %v2314 = vmax.f32 %v2282, 0.0
    %v2315 = vmax.f32 %v2283, 0.0
    %v2316 = vmax.f32 %v2284, 0.0
    %v2317 = vmax.f32 %v2285, 0.0
    %v2318 = vmax.f32 %v2286, 0.0
    %v2319 = vmax.f32 %v2287, 0.0
    %v2320 = vmax.f32 %v2288, 0.0
    %v2321 = vmax.f32 %v2289, 0.0
    %v2322 = vmax.f32 %v2290, 0.0
    %v2323 = vmax.f32 %v2291, 0.0
    %v2324 = vmax.f32 %v2292, 0.0
    %v2325 = vmax.f32 %v2293, 0.0
    %v2326 = vmax.f32 %v2294, 0.0
    %v2327 = vmax.f32 %v2295, 0.0
    %v2328 = vmax.f32 %v2296, 0.0
    %v2329 = vmax.f32 %v2297, 0.0
    %v2330 = vmax.f32 %v2298, 0.0
    %v2331 = vmax.f32 %v2299, 0.0
    %v2332 = vmax.f32 %v2300, 0.0
    %v2333 = vmax.f32 %v2301, 0.0
    %v2334 = vmax.f32 %v2302, 0.0
    %v2335 = vpack.c.bf16 %v2305, %v2303
    %v2336 = vpack.c.bf16 %v2306, %v2304
    %v2337 = vpack.c.bf16 %v2309, %v2307
    %v2338 = vpack.c.bf16 %v2310, %v2308
    %v2339 = vpack.c.bf16 %v2313, %v2311
    %v2340 = vpack.c.bf16 %v2314, %v2312
    %v2341 = vpack.c.bf16 %v2317, %v2315
    %v2342 = vpack.c.bf16 %v2318, %v2316
    %v2343 = vpack.c.bf16 %v2321, %v2319
    %v2344 = vpack.c.bf16 %v2322, %v2320
    %v2345 = vpack.c.bf16 %v2325, %v2323
    %v2346 = vpack.c.bf16 %v2326, %v2324
    %v2347 = vpack.c.bf16 %v2329, %v2327
    %v2348 = vpack.c.bf16 %v2330, %v2328
    %v2349 = vpack.c.bf16 %v2333, %v2331
    %v2350 = vpack.c.bf16 %v2334, %v2332
    %s2351 = scalar_lea.vmem [#allocation4], 1280
    %v2352 = vld [vmem:[%s2351] sm:$0xff]
    %v2353 = vld [vmem:[%s2351 + $0x8] sm:$0xff]
    %v2354 = vld [vmem:[%s2351 + $0x10] sm:$0xff]
    %v2355 = vld [vmem:[%s2351 + $0x18] sm:$0xff]
    %v2356 = vld [vmem:[%s2351 + $0x20] sm:$0xff]
    %v2357 = vld [vmem:[%s2351 + $0x28] sm:$0xff]
    %v2358 = vld [vmem:[%s2351 + $0x30] sm:$0xff]
    %v2359 = vld [vmem:[%s2351 + $0x38] sm:$0xff]
    %v2360 = vld [vmem:[%s2351 + $0x40] sm:$0xff]
    %v2361 = vld [vmem:[%s2351 + $0x48] sm:$0xff]
    %v2362 = vld [vmem:[%s2351 + $0x50] sm:$0xff]
    %v2363 = vld [vmem:[%s2351 + $0x58] sm:$0xff]
    %v2364 = vld [vmem:[%s2351 + $0x60] sm:$0xff]
    %v2365 = vld [vmem:[%s2351 + $0x68] sm:$0xff]
    %v2366 = vld [vmem:[%s2351 + $0x70] sm:$0xff]
    %v2367 = vld [vmem:[%s2351 + $0x78] sm:$0xff]
    %v2368 = vld [vmem:[%s2351 + $0x80] sm:$0xff]
    %v2369 = vld [vmem:[%s2351 + $0x88] sm:$0xff]
    %v2370 = vld [vmem:[%s2351 + $0x90] sm:$0xff]
    %v2371 = vld [vmem:[%s2351 + $0x98] sm:$0xff]
    %v2372 = vld [vmem:[%s2351 + $0xa0] sm:$0xff]
    %v2373 = vld [vmem:[%s2351 + $0xa8] sm:$0xff]
    %v2374 = vld [vmem:[%s2351 + $0xb0] sm:$0xff]
    %v2375 = vld [vmem:[%s2351 + $0xb8] sm:$0xff]
    %v2376 = vld [vmem:[%s2351 + $0xc0] sm:$0xff]
    %v2377 = vld [vmem:[%s2351 + $0xc8] sm:$0xff]
    %v2378 = vld [vmem:[%s2351 + $0xd0] sm:$0xff]
    %v2379 = vld [vmem:[%s2351 + $0xd8] sm:$0xff]
    %v2380 = vld [vmem:[%s2351 + $0xe0] sm:$0xff]
    %v2381 = vld [vmem:[%s2351 + $0xe8] sm:$0xff]
    %v2382 = vld [vmem:[%s2351 + $0xf0] sm:$0xff]
    %v2383 = vld [vmem:[%s2351 + $0xf8] sm:$0xff]
    %s2384 = scalar_lea.vmem [#allocation6], 6
    %v2385 = vld [vmem:[%s2384] ss:$8 sm:$0x3]
    %v2387 = vlaneseq
    %v2388 = vshrl.u32 %v2387, 7
    %v2389 = vsub.s32 0, %v2388
    %v2390 = vrot.slane %v2385, %v2389
    %v2391 = vlaneseq
    %v2392 = vshrl.u32 %v2391, 7
    %v2393 = vsub.s32 1, %v2392
    %v2394 = vrot.slane %v2385, %v2393
    %v2429 = vunpack.c.l.b16 %v2352
    %v2430 = vunpack.c.h.b16 %v2352
    %v2431 = vunpack.c.l.b16 %v2353
    %v2432 = vunpack.c.h.b16 %v2353
    %v2433 = vunpack.c.l.b16 %v2354
    %v2434 = vunpack.c.h.b16 %v2354
    %v2435 = vunpack.c.l.b16 %v2355
    %v2436 = vunpack.c.h.b16 %v2355
    %v2437 = vunpack.c.l.b16 %v2356
    %v2438 = vunpack.c.h.b16 %v2356
    %v2439 = vunpack.c.l.b16 %v2357
    %v2440 = vunpack.c.h.b16 %v2357
    %v2441 = vunpack.c.l.b16 %v2358
    %v2442 = vunpack.c.h.b16 %v2358
    %v2443 = vunpack.c.l.b16 %v2359
    %v2444 = vunpack.c.h.b16 %v2359
    %v2445 = vunpack.c.l.b16 %v2360
    %v2446 = vunpack.c.h.b16 %v2360
    %v2447 = vunpack.c.l.b16 %v2361
    %v2448 = vunpack.c.h.b16 %v2361
    %v2449 = vunpack.c.l.b16 %v2362
    %v2450 = vunpack.c.h.b16 %v2362
    %v2451 = vunpack.c.l.b16 %v2363
    %v2452 = vunpack.c.h.b16 %v2363
    %v2453 = vunpack.c.l.b16 %v2364
    %v2454 = vunpack.c.h.b16 %v2364
    %v2455 = vunpack.c.l.b16 %v2365
    %v2456 = vunpack.c.h.b16 %v2365
    %v2457 = vunpack.c.l.b16 %v2366
    %v2458 = vunpack.c.h.b16 %v2366
    %v2459 = vunpack.c.l.b16 %v2367
    %v2460 = vunpack.c.h.b16 %v2367
    %v2461 = vunpack.c.l.b16 %v2368
    %v2462 = vunpack.c.h.b16 %v2368
    %v2463 = vunpack.c.l.b16 %v2369
    %v2464 = vunpack.c.h.b16 %v2369
    %v2465 = vunpack.c.l.b16 %v2370
    %v2466 = vunpack.c.h.b16 %v2370
    %v2467 = vunpack.c.l.b16 %v2371
    %v2468 = vunpack.c.h.b16 %v2371
    %v2469 = vunpack.c.l.b16 %v2372
    %v2470 = vunpack.c.h.b16 %v2372
    %v2471 = vunpack.c.l.b16 %v2373
    %v2472 = vunpack.c.h.b16 %v2373
    %v2473 = vunpack.c.l.b16 %v2374
    %v2474 = vunpack.c.h.b16 %v2374
    %v2475 = vunpack.c.l.b16 %v2375
    %v2476 = vunpack.c.h.b16 %v2375
    %v2477 = vunpack.c.l.b16 %v2376
    %v2478 = vunpack.c.h.b16 %v2376
    %v2479 = vunpack.c.l.b16 %v2377
    %v2480 = vunpack.c.h.b16 %v2377
    %v2481 = vunpack.c.l.b16 %v2378
    %v2482 = vunpack.c.h.b16 %v2378
    %v2483 = vunpack.c.l.b16 %v2379
    %v2484 = vunpack.c.h.b16 %v2379
    %v2485 = vunpack.c.l.b16 %v2380
    %v2486 = vunpack.c.h.b16 %v2380
    %v2487 = vunpack.c.l.b16 %v2381
    %v2488 = vunpack.c.h.b16 %v2381
    %v2489 = vunpack.c.l.b16 %v2382
    %v2490 = vunpack.c.h.b16 %v2382
    %v2491 = vunpack.c.l.b16 %v2383
    %v2492 = vunpack.c.h.b16 %v2383
    %v2493 = vpack.c.b16 %v2431, %v2429
    %v2494 = vpack.c.b16 %v2432, %v2430
    %v2495 = vpack.c.b16 %v2435, %v2433
    %v2496 = vpack.c.b16 %v2436, %v2434
    %v2497 = vpack.c.b16 %v2439, %v2437
    %v2498 = vpack.c.b16 %v2440, %v2438
    %v2499 = vpack.c.b16 %v2443, %v2441
    %v2500 = vpack.c.b16 %v2444, %v2442
    %v2501 = vpack.c.b16 %v2447, %v2445
    %v2502 = vpack.c.b16 %v2448, %v2446
    %v2503 = vpack.c.b16 %v2451, %v2449
    %v2504 = vpack.c.b16 %v2452, %v2450
    %v2505 = vpack.c.b16 %v2455, %v2453
    %v2506 = vpack.c.b16 %v2456, %v2454
    %v2507 = vpack.c.b16 %v2459, %v2457
    %v2508 = vpack.c.b16 %v2460, %v2458
    %v2509 = vpack.c.b16 %v2463, %v2461
    %v2510 = vpack.c.b16 %v2464, %v2462
    %v2511 = vpack.c.b16 %v2467, %v2465
    %v2512 = vpack.c.b16 %v2468, %v2466
    %v2513 = vpack.c.b16 %v2471, %v2469
    %v2514 = vpack.c.b16 %v2472, %v2470
    %v2515 = vpack.c.b16 %v2475, %v2473
    %v2516 = vpack.c.b16 %v2476, %v2474
    %v2517 = vpack.c.b16 %v2479, %v2477
    %v2518 = vpack.c.b16 %v2480, %v2478
    %v2519 = vpack.c.b16 %v2483, %v2481
    %v2520 = vpack.c.b16 %v2484, %v2482
    %v2521 = vpack.c.b16 %v2487, %v2485
    %v2522 = vpack.c.b16 %v2488, %v2486
    %v2523 = vpack.c.b16 %v2491, %v2489
    %v2524 = vpack.c.b16 %v2492, %v2490
    %2557 = vmatprep.subr.bf16.mxu0 %v2494
    %2558 = vmatpush1.bf16.msra.mxu0 %v2493
    %2559 = vmatprep.subr.bf16.mxu0 %v2496
    %2560 = vmatpush1.bf16.msra.mxu0 %v2495
    %2561 = vmatprep.subr.bf16.mxu0 %v2498
    %2562 = vmatpush1.bf16.msra.mxu0 %v2497
    %2563 = vmatprep.subr.bf16.mxu0 %v2500
    %2564 = vmatpush1.bf16.msra.mxu0 %v2499
    %2565 = vmatprep.subr.bf16.mxu0 %v2502
    %2566 = vmatpush1.bf16.msra.mxu0 %v2501
    %2567 = vmatprep.subr.bf16.mxu0 %v2504
    %2568 = vmatpush1.bf16.msra.mxu0 %v2503
    %2569 = vmatprep.subr.bf16.mxu0 %v2506
    %2570 = vmatpush1.bf16.msra.mxu0 %v2505
    %2571 = vmatprep.subr.bf16.mxu0 %v2508
    %2572 = vmatpush1.bf16.msra.mxu0 %v2507
    %2573 = vmatprep.subr.bf16.mxu0 %v2510
    %2574 = vmatpush1.bf16.msra.mxu0 %v2509
    %2575 = vmatprep.subr.bf16.mxu0 %v2512
    %2576 = vmatpush1.bf16.msra.mxu0 %v2511
    %2577 = vmatprep.subr.bf16.mxu0 %v2514
    %2578 = vmatpush1.bf16.msra.mxu0 %v2513
    %2579 = vmatprep.subr.bf16.mxu0 %v2516
    %2580 = vmatpush1.bf16.msra.mxu0 %v2515
    %2581 = vmatprep.subr.bf16.mxu0 %v2518
    %2582 = vmatpush1.bf16.msra.mxu0 %v2517
    %2583 = vmatprep.subr.bf16.mxu0 %v2520
    %2584 = vmatpush1.bf16.msra.mxu0 %v2519
    %2585 = vmatprep.subr.bf16.mxu0 %v2522
    %2586 = vmatpush1.bf16.msra.mxu0 %v2521
    %2587 = vmatprep.subr.bf16.mxu0 %v2524
    %2588 = vmatpush1.bf16.msra.mxu0 %v2523
    %2589 = vmatprep.mubr.bf16.mxu0 %v2336
    %2590 = vmatmul.mubr.bf16.gmra.mrb[0].mxu0 %v2335
    %v2591 = vpop.f32.mrb[0].mxu0
    %v2592 = vadd.f32 %v2390, %v2591
    %v2593 = vpop.f32.mrb[0].mxu0
    %v2594 = vadd.f32 %v2394, %v2593
    %v2595 = vpop.f32.mrb[0].mxu0
    %v2596 = vadd.f32 %v2390, %v2595
    %v2597 = vpop.f32.mrb[0].mxu0
    %v2598 = vadd.f32 %v2394, %v2597
    %2599 = vmatprep.mubr.bf16.mxu0 %v2338
    %2600 = vmatmul.mubr.bf16.gmra.mrb[0].mxu0 %v2337
    %v2601 = vpop.f32.mrb[0].mxu0
    %v2602 = vadd.f32 %v2390, %v2601
    %v2603 = vpop.f32.mrb[0].mxu0
    %v2604 = vadd.f32 %v2394, %v2603
    %v2605 = vpop.f32.mrb[0].mxu0
    %v2606 = vadd.f32 %v2390, %v2605
    %v2607 = vpop.f32.mrb[0].mxu0
    %v2608 = vadd.f32 %v2394, %v2607
    %2609 = vmatprep.mubr.bf16.mxu0 %v2340
    %2610 = vmatmul.mubr.bf16.gmra.mrb[0].mxu0 %v2339
    %v2611 = vpop.f32.mrb[0].mxu0
    %v2612 = vadd.f32 %v2390, %v2611
    %v2613 = vpop.f32.mrb[0].mxu0
    %v2614 = vadd.f32 %v2394, %v2613
    %v2615 = vpop.f32.mrb[0].mxu0
    %v2616 = vadd.f32 %v2390, %v2615
    %v2617 = vpop.f32.mrb[0].mxu0
    %v2618 = vadd.f32 %v2394, %v2617
    %2619 = vmatprep.mubr.bf16.mxu0 %v2342
    %2620 = vmatmul.mubr.bf16.gmra.mrb[0].mxu0 %v2341
    %v2621 = vpop.f32.mrb[0].mxu0
    %v2622 = vadd.f32 %v2390, %v2621
    %v2623 = vpop.f32.mrb[0].mxu0
    %v2624 = vadd.f32 %v2394, %v2623
    %v2625 = vpop.f32.mrb[0].mxu0
    %v2626 = vadd.f32 %v2390, %v2625
    %v2627 = vpop.f32.mrb[0].mxu0
    %v2628 = vadd.f32 %v2394, %v2627
    %2629 = vmatprep.mubr.bf16.mxu0 %v2344
    %2630 = vmatmul.mubr.bf16.gmra.mrb[0].mxu0 %v2343
    %v2631 = vpop.f32.mrb[0].mxu0
    %v2632 = vadd.f32 %v2390, %v2631
    %v2633 = vpop.f32.mrb[0].mxu0
    %v2634 = vadd.f32 %v2394, %v2633
    %v2635 = vpop.f32.mrb[0].mxu0
    %v2636 = vadd.f32 %v2390, %v2635
    %v2637 = vpop.f32.mrb[0].mxu0
    %v2638 = vadd.f32 %v2394, %v2637
    %2639 = vmatprep.mubr.bf16.mxu0 %v2346
    %2640 = vmatmul.mubr.bf16.gmra.mrb[0].mxu0 %v2345
    %v2641 = vpop.f32.mrb[0].mxu0
    %v2642 = vadd.f32 %v2390, %v2641
    %v2643 = vpop.f32.mrb[0].mxu0
    %v2644 = vadd.f32 %v2394, %v2643
    %v2645 = vpop.f32.mrb[0].mxu0
    %v2646 = vadd.f32 %v2390, %v2645
    %v2647 = vpop.f32.mrb[0].mxu0
    %v2648 = vadd.f32 %v2394, %v2647
    %2649 = vmatprep.mubr.bf16.mxu0 %v2348
    %2650 = vmatmul.mubr.bf16.gmra.mrb[0].mxu0 %v2347
    %v2651 = vpop.f32.mrb[0].mxu0
    %v2652 = vadd.f32 %v2390, %v2651
    %v2653 = vpop.f32.mrb[0].mxu0
    %v2654 = vadd.f32 %v2394, %v2653
    %v2655 = vpop.f32.mrb[0].mxu0
    %v2656 = vadd.f32 %v2390, %v2655
    %v2657 = vpop.f32.mrb[0].mxu0
    %v2658 = vadd.f32 %v2394, %v2657
    %2659 = vmatprep.mubr.bf16.mxu0 %v2350
    %2660 = vmatmul.mubr.bf16.gmra.mrb[0].mxu0 %v2349
    %v2661 = vpop.f32.mrb[0].mxu0
    %v2662 = vadd.f32 %v2390, %v2661
    %v2663 = vpop.f32.mrb[0].mxu0
    %v2664 = vadd.f32 %v2394, %v2663
    %v2665 = vpop.f32.mrb[0].mxu0
    %v2666 = vadd.f32 %v2390, %v2665
    %v2667 = vpop.f32.mrb[0].mxu0
    %v2668 = vadd.f32 %v2394, %v2667
    %2669 = vdwg.mxu0
    %v2670 = vmax.f32 %v2592, 0.0
    %v2671 = vmax.f32 %v2594, 0.0
    %v2672 = vmax.f32 %v2596, 0.0
    %v2673 = vmax.f32 %v2598, 0.0
    %v2674 = vmax.f32 %v2602, 0.0
    %v2675 = vmax.f32 %v2604, 0.0
    %v2676 = vmax.f32 %v2606, 0.0
    %v2677 = vmax.f32 %v2608, 0.0
    %v2678 = vmax.f32 %v2612, 0.0
    %v2679 = vmax.f32 %v2614, 0.0
    %v2680 = vmax.f32 %v2616, 0.0
    %v2681 = vmax.f32 %v2618, 0.0
    %v2682 = vmax.f32 %v2622, 0.0
    %v2683 = vmax.f32 %v2624, 0.0
    %v2684 = vmax.f32 %v2626, 0.0
    %v2685 = vmax.f32 %v2628, 0.0
    %v2686 = vmax.f32 %v2632, 0.0
    %v2687 = vmax.f32 %v2634, 0.0
    %v2688 = vmax.f32 %v2636, 0.0
    %v2689 = vmax.f32 %v2638, 0.0
    %v2690 = vmax.f32 %v2642, 0.0
    %v2691 = vmax.f32 %v2644, 0.0
    %v2692 = vmax.f32 %v2646, 0.0
    %v2693 = vmax.f32 %v2648, 0.0
    %v2694 = vmax.f32 %v2652, 0.0
    %v2695 = vmax.f32 %v2654, 0.0
    %v2696 = vmax.f32 %v2656, 0.0
    %v2697 = vmax.f32 %v2658, 0.0
    %v2698 = vmax.f32 %v2662, 0.0
    %v2699 = vmax.f32 %v2664, 0.0
    %v2700 = vmax.f32 %v2666, 0.0
    %v2701 = vmax.f32 %v2668, 0.0
    %v2702 = vpack.c.bf16 %v2672, %v2670
    %v2703 = vpack.c.bf16 %v2673, %v2671
    %v2704 = vpack.c.bf16 %v2676, %v2674
    %v2705 = vpack.c.bf16 %v2677, %v2675
    %v2706 = vpack.c.bf16 %v2680, %v2678
    %v2707 = vpack.c.bf16 %v2681, %v2679
    %v2708 = vpack.c.bf16 %v2684, %v2682
    %v2709 = vpack.c.bf16 %v2685, %v2683
    %v2710 = vpack.c.bf16 %v2688, %v2686
    %v2711 = vpack.c.bf16 %v2689, %v2687
    %v2712 = vpack.c.bf16 %v2692, %v2690
    %v2713 = vpack.c.bf16 %v2693, %v2691
    %v2714 = vpack.c.bf16 %v2696, %v2694
    %v2715 = vpack.c.bf16 %v2697, %v2695
    %v2716 = vpack.c.bf16 %v2700, %v2698
    %v2717 = vpack.c.bf16 %v2701, %v2699
    %s2718 = scalar_lea.vmem [#allocation4], 1536
    %v2719 = vld [vmem:[%s2718] sm:$0xff]
    %v2720 = vld [vmem:[%s2718 + $0x8] sm:$0xff]
    %v2721 = vld [vmem:[%s2718 + $0x10] sm:$0xff]
    %v2722 = vld [vmem:[%s2718 + $0x18] sm:$0xff]
    %v2723 = vld [vmem:[%s2718 + $0x20] sm:$0xff]
    %v2724 = vld [vmem:[%s2718 + $0x28] sm:$0xff]
    %v2725 = vld [vmem:[%s2718 + $0x30] sm:$0xff]
    %v2726 = vld [vmem:[%s2718 + $0x38] sm:$0xff]
    %v2727 = vld [vmem:[%s2718 + $0x40] sm:$0xff]
    %v2728 = vld [vmem:[%s2718 + $0x48] sm:$0xff]
    %v2729 = vld [vmem:[%s2718 + $0x50] sm:$0xff]
    %v2730 = vld [vmem:[%s2718 + $0x58] sm:$0xff]
    %v2731 = vld [vmem:[%s2718 + $0x60] sm:$0xff]
    %v2732 = vld [vmem:[%s2718 + $0x68] sm:$0xff]
    %v2733 = vld [vmem:[%s2718 + $0x70] sm:$0xff]
    %v2734 = vld [vmem:[%s2718 + $0x78] sm:$0xff]
    %v2735 = vld [vmem:[%s2718 + $0x80] sm:$0xff]
    %v2736 = vld [vmem:[%s2718 + $0x88] sm:$0xff]
    %v2737 = vld [vmem:[%s2718 + $0x90] sm:$0xff]
    %v2738 = vld [vmem:[%s2718 + $0x98] sm:$0xff]
    %v2739 = vld [vmem:[%s2718 + $0xa0] sm:$0xff]
    %v2740 = vld [vmem:[%s2718 + $0xa8] sm:$0xff]
    %v2741 = vld [vmem:[%s2718 + $0xb0] sm:$0xff]
    %v2742 = vld [vmem:[%s2718 + $0xb8] sm:$0xff]
    %v2743 = vld [vmem:[%s2718 + $0xc0] sm:$0xff]
    %v2744 = vld [vmem:[%s2718 + $0xc8] sm:$0xff]
    %v2745 = vld [vmem:[%s2718 + $0xd0] sm:$0xff]
    %v2746 = vld [vmem:[%s2718 + $0xd8] sm:$0xff]
    %v2747 = vld [vmem:[%s2718 + $0xe0] sm:$0xff]
    %v2748 = vld [vmem:[%s2718 + $0xe8] sm:$0xff]
    %v2749 = vld [vmem:[%s2718 + $0xf0] sm:$0xff]
    %v2750 = vld [vmem:[%s2718 + $0xf8] sm:$0xff]
    %s2751 = scalar_lea.vmem [#allocation6], 7
    %v2752 = vld [vmem:[%s2751] ss:$8 sm:$0x3]
    %v2754 = vlaneseq
    %v2755 = vshrl.u32 %v2754, 7
    %v2756 = vsub.s32 0, %v2755
    %v2757 = vrot.slane %v2752, %v2756
    %v2758 = vlaneseq
    %v2759 = vshrl.u32 %v2758, 7
    %v2760 = vsub.s32 1, %v2759
    %v2761 = vrot.slane %v2752, %v2760
    %v2796 = vunpack.c.l.b16 %v2719
    %v2797 = vunpack.c.h.b16 %v2719
    %v2798 = vunpack.c.l.b16 %v2720
    %v2799 = vunpack.c.h.b16 %v2720
    %v2800 = vunpack.c.l.b16 %v2721
    %v2801 = vunpack.c.h.b16 %v2721
    %v2802 = vunpack.c.l.b16 %v2722
    %v2803 = vunpack.c.h.b16 %v2722
    %v2804 = vunpack.c.l.b16 %v2723
    %v2805 = vunpack.c.h.b16 %v2723
    %v2806 = vunpack.c.l.b16 %v2724
    %v2807 = vunpack.c.h.b16 %v2724
    %v2808 = vunpack.c.l.b16 %v2725
    %v2809 = vunpack.c.h.b16 %v2725
    %v2810 = vunpack.c.l.b16 %v2726
    %v2811 = vunpack.c.h.b16 %v2726
    %v2812 = vunpack.c.l.b16 %v2727
    %v2813 = vunpack.c.h.b16 %v2727
    %v2814 = vunpack.c.l.b16 %v2728
    %v2815 = vunpack.c.h.b16 %v2728
    %v2816 = vunpack.c.l.b16 %v2729
    %v2817 = vunpack.c.h.b16 %v2729
    %v2818 = vunpack.c.l.b16 %v2730
    %v2819 = vunpack.c.h.b16 %v2730
    %v2820 = vunpack.c.l.b16 %v2731
    %v2821 = vunpack.c.h.b16 %v2731
    %v2822 = vunpack.c.l.b16 %v2732
    %v2823 = vunpack.c.h.b16 %v2732
    %v2824 = vunpack.c.l.b16 %v2733
    %v2825 = vunpack.c.h.b16 %v2733
    %v2826 = vunpack.c.l.b16 %v2734
    %v2827 = vunpack.c.h.b16 %v2734
    %v2828 = vunpack.c.l.b16 %v2735
    %v2829 = vunpack.c.h.b16 %v2735
    %v2830 = vunpack.c.l.b16 %v2736
    %v2831 = vunpack.c.h.b16 %v2736
    %v2832 = vunpack.c.l.b16 %v2737
    %v2833 = vunpack.c.h.b16 %v2737
    %v2834 = vunpack.c.l.b16 %v2738
    %v2835 = vunpack.c.h.b16 %v2738
    %v2836 = vunpack.c.l.b16 %v2739
    %v2837 = vunpack.c.h.b16 %v2739
    %v2838 = vunpack.c.l.b16 %v2740
    %v2839 = vunpack.c.h.b16 %v2740
    %v2840 = vunpack.c.l.b16 %v2741
    %v2841 = vunpack.c.h.b16 %v2741
    %v2842 = vunpack.c.l.b16 %v2742
    %v2843 = vunpack.c.h.b16 %v2742
    %v2844 = vunpack.c.l.b16 %v2743
    %v2845 = vunpack.c.h.b16 %v2743
    %v2846 = vunpack.c.l.b16 %v2744
    %v2847 = vunpack.c.h.b16 %v2744
    %v2848 = vunpack.c.l.b16 %v2745
    %v2849 = vunpack.c.h.b16 %v2745
    %v2850 = vunpack.c.l.b16 %v2746
    %v2851 = vunpack.c.h.b16 %v2746
    %v2852 = vunpack.c.l.b16 %v2747
    %v2853 = vunpack.c.h.b16 %v2747
    %v2854 = vunpack.c.l.b16 %v2748
    %v2855 = vunpack.c.h.b16 %v2748
    %v2856 = vunpack.c.l.b16 %v2749
    %v2857 = vunpack.c.h.b16 %v2749
    %v2858 = vunpack.c.l.b16 %v2750
    %v2859 = vunpack.c.h.b16 %v2750
    %v2860 = vpack.c.b16 %v2798, %v2796
    %v2861 = vpack.c.b16 %v2799, %v2797
    %v2862 = vpack.c.b16 %v2802, %v2800
    %v2863 = vpack.c.b16 %v2803, %v2801
    %v2864 = vpack.c.b16 %v2806, %v2804
    %v2865 = vpack.c.b16 %v2807, %v2805
    %v2866 = vpack.c.b16 %v2810, %v2808
    %v2867 = vpack.c.b16 %v2811, %v2809
    %v2868 = vpack.c.b16 %v2814, %v2812
    %v2869 = vpack.c.b16 %v2815, %v2813
    %v2870 = vpack.c.b16 %v2818, %v2816
    %v2871 = vpack.c.b16 %v2819, %v2817
    %v2872 = vpack.c.b16 %v2822, %v2820
    %v2873 = vpack.c.b16 %v2823, %v2821
    %v2874 = vpack.c.b16 %v2826, %v2824
    %v2875 = vpack.c.b16 %v2827, %v2825
    %v2876 = vpack.c.b16 %v2830, %v2828
    %v2877 = vpack.c.b16 %v2831, %v2829
    %v2878 = vpack.c.b16 %v2834, %v2832
    %v2879 = vpack.c.b16 %v2835, %v2833
    %v2880 = vpack.c.b16 %v2838, %v2836
    %v2881 = vpack.c.b16 %v2839, %v2837
    %v2882 = vpack.c.b16 %v2842, %v2840
    %v2883 = vpack.c.b16 %v2843, %v2841
    %v2884 = vpack.c.b16 %v2846, %v2844
    %v2885 = vpack.c.b16 %v2847, %v2845
    %v2886 = vpack.c.b16 %v2850, %v2848
    %v2887 = vpack.c.b16 %v2851, %v2849
    %v2888 = vpack.c.b16 %v2854, %v2852
    %v2889 = vpack.c.b16 %v2855, %v2853
    %v2890 = vpack.c.b16 %v2858, %v2856
    %v2891 = vpack.c.b16 %v2859, %v2857
    %2924 = vmatprep.subr.bf16.mxu0 %v2861
    %2925 = vmatpush1.bf16.msra.mxu0 %v2860
    %2926 = vmatprep.subr.bf16.mxu0 %v2863
    %2927 = vmatpush1.bf16.msra.mxu0 %v2862
    %2928 = vmatprep.subr.bf16.mxu0 %v2865
    %2929 = vmatpush1.bf16.msra.mxu0 %v2864
    %2930 = vmatprep.subr.bf16.mxu0 %v2867
    %2931 = vmatpush1.bf16.msra.mxu0 %v2866
    %2932 = vmatprep.subr.bf16.mxu0 %v2869
    %2933 = vmatpush1.bf16.msra.mxu0 %v2868
    %2934 = vmatprep.subr.bf16.mxu0 %v2871
    %2935 = vmatpush1.bf16.msra.mxu0 %v2870
    %2936 = vmatprep.subr.bf16.mxu0 %v2873
    %2937 = vmatpush1.bf16.msra.mxu0 %v2872
    %2938 = vmatprep.subr.bf16.mxu0 %v2875
    %2939 = vmatpush1.bf16.msra.mxu0 %v2874
    %2940 = vmatprep.subr.bf16.mxu0 %v2877
    %2941 = vmatpush1.bf16.msra.mxu0 %v2876
    %2942 = vmatprep.subr.bf16.mxu0 %v2879
    %2943 = vmatpush1.bf16.msra.mxu0 %v2878
    %2944 = vmatprep.subr.bf16.mxu0 %v2881
    %2945 = vmatpush1.bf16.msra.mxu0 %v2880
    %2946 = vmatprep.subr.bf16.mxu0 %v2883
    %2947 = vmatpush1.bf16.msra.mxu0 %v2882
    %2948 = vmatprep.subr.bf16.mxu0 %v2885
    %2949 = vmatpush1.bf16.msra.mxu0 %v2884
    %2950 = vmatprep.subr.bf16.mxu0 %v2887
    %2951 = vmatpush1.bf16.msra.mxu0 %v2886
    %2952 = vmatprep.subr.bf16.mxu0 %v2889
    %2953 = vmatpush1.bf16.msra.mxu0 %v2888
    %2954 = vmatprep.subr.bf16.mxu0 %v2891
    %2955 = vmatpush1.bf16.msra.mxu0 %v2890
    %2956 = vmatprep.mubr.bf16.mxu0 %v2703
    %2957 = vmatmul.mubr.bf16.gmra.mrb[0].mxu0 %v2702
    %v2958 = vpop.f32.mrb[0].mxu0
    %v2959 = vadd.f32 %v2757, %v2958
    %v2960 = vpop.f32.mrb[0].mxu0
    %v2961 = vadd.f32 %v2761, %v2960
    %v2962 = vpop.f32.mrb[0].mxu0
    %v2963 = vadd.f32 %v2757, %v2962
    %v2964 = vpop.f32.mrb[0].mxu0
    %v2965 = vadd.f32 %v2761, %v2964
    %2966 = vmatprep.mubr.bf16.mxu0 %v2705
    %2967 = vmatmul.mubr.bf16.gmra.mrb[0].mxu0 %v2704
    %v2968 = vpop.f32.mrb[0].mxu0
    %v2969 = vadd.f32 %v2757, %v2968
    %v2970 = vpop.f32.mrb[0].mxu0
    %v2971 = vadd.f32 %v2761, %v2970
    %v2972 = vpop.f32.mrb[0].mxu0
    %v2973 = vadd.f32 %v2757, %v2972
    %v2974 = vpop.f32.mrb[0].mxu0
    %v2975 = vadd.f32 %v2761, %v2974
    %2976 = vmatprep.mubr.bf16.mxu0 %v2707
    %2977 = vmatmul.mubr.bf16.gmra.mrb[0].mxu0 %v2706
    %v2978 = vpop.f32.mrb[0].mxu0
    %v2979 = vadd.f32 %v2757, %v2978
    %v2980 = vpop.f32.mrb[0].mxu0
    %v2981 = vadd.f32 %v2761, %v2980
    %v2982 = vpop.f32.mrb[0].mxu0
    %v2983 = vadd.f32 %v2757, %v2982
    %v2984 = vpop.f32.mrb[0].mxu0
    %v2985 = vadd.f32 %v2761, %v2984
    %2986 = vmatprep.mubr.bf16.mxu0 %v2709
    %2987 = vmatmul.mubr.bf16.gmra.mrb[0].mxu0 %v2708
    %v2988 = vpop.f32.mrb[0].mxu0
    %v2989 = vadd.f32 %v2757, %v2988
    %v2990 = vpop.f32.mrb[0].mxu0
    %v2991 = vadd.f32 %v2761, %v2990
    %v2992 = vpop.f32.mrb[0].mxu0
    %v2993 = vadd.f32 %v2757, %v2992
    %v2994 = vpop.f32.mrb[0].mxu0
    %v2995 = vadd.f32 %v2761, %v2994
    %2996 = vmatprep.mubr.bf16.mxu0 %v2711
    %2997 = vmatmul.mubr.bf16.gmra.mrb[0].mxu0 %v2710
    %v2998 = vpop.f32.mrb[0].mxu0
    %v2999 = vadd.f32 %v2757, %v2998
    %v3000 = vpop.f32.mrb[0].mxu0
    %v3001 = vadd.f32 %v2761, %v3000
    %v3002 = vpop.f32.mrb[0].mxu0
    %v3003 = vadd.f32 %v2757, %v3002
    %v3004 = vpop.f32.mrb[0].mxu0
    %v3005 = vadd.f32 %v2761, %v3004
    %3006 = vmatprep.mubr.bf16.mxu0 %v2713
    %3007 = vmatmul.mubr.bf16.gmra.mrb[0].mxu0 %v2712
    %v3008 = vpop.f32.mrb[0].mxu0
    %v3009 = vadd.f32 %v2757, %v3008
    %v3010 = vpop.f32.mrb[0].mxu0
    %v3011 = vadd.f32 %v2761, %v3010
    %v3012 = vpop.f32.mrb[0].mxu0
    %v3013 = vadd.f32 %v2757, %v3012
    %v3014 = vpop.f32.mrb[0].mxu0
    %v3015 = vadd.f32 %v2761, %v3014
    %3016 = vmatprep.mubr.bf16.mxu0 %v2715
    %3017 = vmatmul.mubr.bf16.gmra.mrb[0].mxu0 %v2714
    %v3018 = vpop.f32.mrb[0].mxu0
    %v3019 = vadd.f32 %v2757, %v3018
    %v3020 = vpop.f32.mrb[0].mxu0
    %v3021 = vadd.f32 %v2761, %v3020
    %v3022 = vpop.f32.mrb[0].mxu0
    %v3023 = vadd.f32 %v2757, %v3022
    %v3024 = vpop.f32.mrb[0].mxu0
    %v3025 = vadd.f32 %v2761, %v3024
    %3026 = vmatprep.mubr.bf16.mxu0 %v2717
    %3027 = vmatmul.mubr.bf16.gmra.mrb[0].mxu0 %v2716
    %v3028 = vpop.f32.mrb[0].mxu0
    %v3029 = vadd.f32 %v2757, %v3028
    %v3030 = vpop.f32.mrb[0].mxu0
    %v3031 = vadd.f32 %v2761, %v3030
    %v3032 = vpop.f32.mrb[0].mxu0
    %v3033 = vadd.f32 %v2757, %v3032
    %v3034 = vpop.f32.mrb[0].mxu0
    %v3035 = vadd.f32 %v2761, %v3034
    %3036 = vdwg.mxu0
    %v3037 = vmax.f32 %v2959, 0.0
    %v3038 = vmax.f32 %v2961, 0.0
    %v3039 = vmax.f32 %v2963, 0.0
    %v3040 = vmax.f32 %v2965, 0.0
    %v3041 = vmax.f32 %v2969, 0.0
    %v3042 = vmax.f32 %v2971, 0.0
    %v3043 = vmax.f32 %v2973, 0.0
    %v3044 = vmax.f32 %v2975, 0.0
    %v3045 = vmax.f32 %v2979, 0.0
    %v3046 = vmax.f32 %v2981, 0.0
    %v3047 = vmax.f32 %v2983, 0.0
    %v3048 = vmax.f32 %v2985, 0.0
    %v3049 = vmax.f32 %v2989, 0.0
    %v3050 = vmax.f32 %v2991, 0.0
    %v3051 = vmax.f32 %v2993, 0.0
    %v3052 = vmax.f32 %v2995, 0.0
    %v3053 = vmax.f32 %v2999, 0.0
    %v3054 = vmax.f32 %v3001, 0.0
    %v3055 = vmax.f32 %v3003, 0.0
    %v3056 = vmax.f32 %v3005, 0.0
    %v3057 = vmax.f32 %v3009, 0.0
    %v3058 = vmax.f32 %v3011, 0.0
    %v3059 = vmax.f32 %v3013, 0.0
    %v3060 = vmax.f32 %v3015, 0.0
    %v3061 = vmax.f32 %v3019, 0.0
    %v3062 = vmax.f32 %v3021, 0.0
    %v3063 = vmax.f32 %v3023, 0.0
    %v3064 = vmax.f32 %v3025, 0.0
    %v3065 = vmax.f32 %v3029, 0.0
    %v3066 = vmax.f32 %v3031, 0.0
    %v3067 = vmax.f32 %v3033, 0.0
    %v3068 = vmax.f32 %v3035, 0.0
    %v3069 = vpack.c.bf16 %v3039, %v3037
    %v3070 = vpack.c.bf16 %v3040, %v3038
    %v3071 = vpack.c.bf16 %v3043, %v3041
    %v3072 = vpack.c.bf16 %v3044, %v3042
    %v3073 = vpack.c.bf16 %v3047, %v3045
    %v3074 = vpack.c.bf16 %v3048, %v3046
    %v3075 = vpack.c.bf16 %v3051, %v3049
    %v3076 = vpack.c.bf16 %v3052, %v3050
    %v3077 = vpack.c.bf16 %v3055, %v3053
    %v3078 = vpack.c.bf16 %v3056, %v3054
    %v3079 = vpack.c.bf16 %v3059, %v3057
    %v3080 = vpack.c.bf16 %v3060, %v3058
    %v3081 = vpack.c.bf16 %v3063, %v3061
    %v3082 = vpack.c.bf16 %v3064, %v3062
    %v3083 = vpack.c.bf16 %v3067, %v3065
    %v3084 = vpack.c.bf16 %v3068, %v3066
    %v3085 = vld [vmem:[%s4] sm:$0xf]
    %v3086 = vld [vmem:[%s4 + $0x4] sm:$0xf]
    %v3087 = vld [vmem:[%s4 + $0x8] sm:$0xf]
    %v3088 = vld [vmem:[%s4 + $0xc] sm:$0xf]
    %v3089 = vld [vmem:[%s4 + $0x10] sm:$0xf]
    %v3090 = vld [vmem:[%s4 + $0x14] sm:$0xf]
    %v3091 = vld [vmem:[%s4 + $0x18] sm:$0xf]
    %v3092 = vld [vmem:[%s4 + $0x1c] sm:$0xf]
    %v3093 = vld [vmem:[%s4 + $0x20] sm:$0xf]
    %v3094 = vld [vmem:[%s4 + $0x24] sm:$0xf]
    %v3095 = vld [vmem:[%s4 + $0x28] sm:$0xf]
    %v3096 = vld [vmem:[%s4 + $0x2c] sm:$0xf]
    %v3097 = vld [vmem:[%s4 + $0x30] sm:$0xf]
    %v3098 = vld [vmem:[%s4 + $0x34] sm:$0xf]
    %v3099 = vld [vmem:[%s4 + $0x38] sm:$0xf]
    %v3100 = vld [vmem:[%s4 + $0x3c] sm:$0xf]
    %v3101 = vld [vmem:[%s4 + $0x40] sm:$0xf]
    %v3102 = vld [vmem:[%s4 + $0x44] sm:$0xf]
    %v3103 = vld [vmem:[%s4 + $0x48] sm:$0xf]
    %v3104 = vld [vmem:[%s4 + $0x4c] sm:$0xf]
    %v3105 = vld [vmem:[%s4 + $0x50] sm:$0xf]
    %v3106 = vld [vmem:[%s4 + $0x54] sm:$0xf]
    %v3107 = vld [vmem:[%s4 + $0x58] sm:$0xf]
    %v3108 = vld [vmem:[%s4 + $0x5c] sm:$0xf]
    %v3109 = vld [vmem:[%s4 + $0x60] sm:$0xf]
    %v3110 = vld [vmem:[%s4 + $0x64] sm:$0xf]
    %v3111 = vld [vmem:[%s4 + $0x68] sm:$0xf]
    %v3112 = vld [vmem:[%s4 + $0x6c] sm:$0xf]
    %v3113 = vld [vmem:[%s4 + $0x70] sm:$0xf]
    %v3114 = vld [vmem:[%s4 + $0x74] sm:$0xf]
    %v3115 = vld [vmem:[%s4 + $0x78] sm:$0xf]
    %v3116 = vld [vmem:[%s4 + $0x7c] sm:$0xf]
    %v3117 = vld [vmem:[%s5] sm:$0x1]
    %v3119 = vlaneseq
    %v3120 = vshrl.u32 %v3119, 7
    %v3121 = vsub.s32 0, %v3120
    %v3122 = vrot.slane %v3117, %v3121
    %v3156 = vunpack.c.l.b16 %v3085
    %v3157 = vunpack.c.l.b16 %v3086
    %v3158 = vunpack.c.l.b16 %v3087
    %v3159 = vunpack.c.l.b16 %v3088
    %v3160 = vunpack.c.l.b16 %v3089
    %v3161 = vunpack.c.l.b16 %v3090
    %v3162 = vunpack.c.l.b16 %v3091
    %v3163 = vunpack.c.l.b16 %v3092
    %v3164 = vunpack.c.l.b16 %v3093
    %v3165 = vunpack.c.l.b16 %v3094
    %v3166 = vunpack.c.l.b16 %v3095
    %v3167 = vunpack.c.l.b16 %v3096
    %v3168 = vunpack.c.l.b16 %v3097
    %v3169 = vunpack.c.l.b16 %v3098
    %v3170 = vunpack.c.l.b16 %v3099
    %v3171 = vunpack.c.l.b16 %v3100
    %v3172 = vunpack.c.l.b16 %v3101
    %v3173 = vunpack.c.l.b16 %v3102
    %v3174 = vunpack.c.l.b16 %v3103
    %v3175 = vunpack.c.l.b16 %v3104
    %v3176 = vunpack.c.l.b16 %v3105
    %v3177 = vunpack.c.l.b16 %v3106
    %v3178 = vunpack.c.l.b16 %v3107
    %v3179 = vunpack.c.l.b16 %v3108
    %v3180 = vunpack.c.l.b16 %v3109
    %v3181 = vunpack.c.l.b16 %v3110
    %v3182 = vunpack.c.l.b16 %v3111
    %v3183 = vunpack.c.l.b16 %v3112
    %v3184 = vunpack.c.l.b16 %v3113
    %v3185 = vunpack.c.l.b16 %v3114
    %v3186 = vunpack.c.l.b16 %v3115
    %v3187 = vunpack.c.l.b16 %v3116
    %v3188 = vpack.c.b16 %v3157, %v3156
    %v3189 = vpack.c.b16 %v3159, %v3158
    %v3190 = vpack.c.b16 %v3161, %v3160
    %v3191 = vpack.c.b16 %v3163, %v3162
    %v3192 = vpack.c.b16 %v3165, %v3164
    %v3193 = vpack.c.b16 %v3167, %v3166
    %v3194 = vpack.c.b16 %v3169, %v3168
    %v3195 = vpack.c.b16 %v3171, %v3170
    %v3196 = vpack.c.b16 %v3173, %v3172
    %v3197 = vpack.c.b16 %v3175, %v3174
    %v3198 = vpack.c.b16 %v3177, %v3176
    %v3199 = vpack.c.b16 %v3179, %v3178
    %v3200 = vpack.c.b16 %v3181, %v3180
    %v3201 = vpack.c.b16 %v3183, %v3182
    %v3202 = vpack.c.b16 %v3185, %v3184
    %v3203 = vpack.c.b16 %v3187, %v3186
    %3220 = vmatprep.subr.bf16.mxu0 0
    %3221 = vmatpush1.bf16.msra.mxu0 %v3188
    %3222 = vmatprep.subr.bf16.mxu0 0
    %3223 = vmatpush1.bf16.msra.mxu0 %v3189
    %3224 = vmatprep.subr.bf16.mxu0 0
    %3225 = vmatpush1.bf16.msra.mxu0 %v3190
    %3226 = vmatprep.subr.bf16.mxu0 0
    %3227 = vmatpush1.bf16.msra.mxu0 %v3191
    %3228 = vmatprep.subr.bf16.mxu0 0
    %3229 = vmatpush1.bf16.msra.mxu0 %v3192
    %3230 = vmatprep.subr.bf16.mxu0 0
    %3231 = vmatpush1.bf16.msra.mxu0 %v3193
    %3232 = vmatprep.subr.bf16.mxu0 0
    %3233 = vmatpush1.bf16.msra.mxu0 %v3194
    %3234 = vmatprep.subr.bf16.mxu0 0
    %3235 = vmatpush1.bf16.msra.mxu0 %v3195
    %3236 = vmatprep.subr.bf16.mxu0 0
    %3237 = vmatpush1.bf16.msra.mxu0 %v3196
    %3238 = vmatprep.subr.bf16.mxu0 0
    %3239 = vmatpush1.bf16.msra.mxu0 %v3197
    %3240 = vmatprep.subr.bf16.mxu0 0
    %3241 = vmatpush1.bf16.msra.mxu0 %v3198
    %3242 = vmatprep.subr.bf16.mxu0 0
    %3243 = vmatpush1.bf16.msra.mxu0 %v3199
    %3244 = vmatprep.subr.bf16.mxu0 0
    %3245 = vmatpush1.bf16.msra.mxu0 %v3200
    %3246 = vmatprep.subr.bf16.mxu0 0
    %3247 = vmatpush1.bf16.msra.mxu0 %v3201
    %3248 = vmatprep.subr.bf16.mxu0 0
    %3249 = vmatpush1.bf16.msra.mxu0 %v3202
    %3250 = vmatprep.subr.bf16.mxu0 0
    %3251 = vmatpush1.bf16.msra.mxu0 %v3203
    %3252 = vmatprep.mubr.bf16.mxu0 %v3070
    %3253 = vmatmul.mubr.bf16.gmra.mrb[0].mxu0 %v3069
    %v3254 = vpop.f32.mrb[0].mxu0
    %v3255 = vadd.f32 %v3122, %v3254
    %v3256 = vpop.f32.mrb[0].mxu0
    %v3257 = vpop.f32.mrb[0].mxu0
    %v3258 = vadd.f32 %v3122, %v3257
    %v3259 = vpop.f32.mrb[0].mxu0
    %3260 = vmatprep.mubr.bf16.mxu0 %v3072
    %3261 = vmatmul.mubr.bf16.gmra.mrb[0].mxu0 %v3071
    %v3262 = vpop.f32.mrb[0].mxu0
    %v3263 = vadd.f32 %v3122, %v3262
    %v3264 = vpop.f32.mrb[0].mxu0
    %v3265 = vpop.f32.mrb[0].mxu0
    %v3266 = vadd.f32 %v3122, %v3265
    %v3267 = vpop.f32.mrb[0].mxu0
    %3268 = vmatprep.mubr.bf16.mxu0 %v3074
    %3269 = vmatmul.mubr.bf16.gmra.mrb[0].mxu0 %v3073
    %v3270 = vpop.f32.mrb[0].mxu0
    %v3271 = vadd.f32 %v3122, %v3270
    %v3272 = vpop.f32.mrb[0].mxu0
    %v3273 = vpop.f32.mrb[0].mxu0
    %v3274 = vadd.f32 %v3122, %v3273
    %v3275 = vpop.f32.mrb[0].mxu0
    %3276 = vmatprep.mubr.bf16.mxu0 %v3076
    %3277 = vmatmul.mubr.bf16.gmra.mrb[0].mxu0 %v3075
    %v3278 = vpop.f32.mrb[0].mxu0
    %v3279 = vadd.f32 %v3122, %v3278
    %v3280 = vpop.f32.mrb[0].mxu0
    %v3281 = vpop.f32.mrb[0].mxu0
    %v3282 = vadd.f32 %v3122, %v3281
    %v3283 = vpop.f32.mrb[0].mxu0
    %3284 = vmatprep.mubr.bf16.mxu0 %v3078
    %3285 = vmatmul.mubr.bf16.gmra.mrb[0].mxu0 %v3077
    %v3286 = vpop.f32.mrb[0].mxu0
    %v3287 = vadd.f32 %v3122, %v3286
    %v3288 = vpop.f32.mrb[0].mxu0
    %v3289 = vpop.f32.mrb[0].mxu0
    %v3290 = vadd.f32 %v3122, %v3289
    %v3291 = vpop.f32.mrb[0].mxu0
    %3292 = vmatprep.mubr.bf16.mxu0 %v3080
    %3293 = vmatmul.mubr.bf16.gmra.mrb[0].mxu0 %v3079
    %v3294 = vpop.f32.mrb[0].mxu0
    %v3295 = vadd.f32 %v3122, %v3294
    %v3296 = vpop.f32.mrb[0].mxu0
    %v3297 = vpop.f32.mrb[0].mxu0
    %v3298 = vadd.f32 %v3122, %v3297
    %v3299 = vpop.f32.mrb[0].mxu0
    %3300 = vmatprep.mubr.bf16.mxu0 %v3082
    %3301 = vmatmul.mubr.bf16.gmra.mrb[0].mxu0 %v3081
    %v3302 = vpop.f32.mrb[0].mxu0
    %v3303 = vadd.f32 %v3122, %v3302
    %v3304 = vpop.f32.mrb[0].mxu0
    %v3305 = vpop.f32.mrb[0].mxu0
    %v3306 = vadd.f32 %v3122, %v3305
    %v3307 = vpop.f32.mrb[0].mxu0
    %3308 = vmatprep.mubr.bf16.mxu0 %v3084
    %3309 = vmatmul.mubr.bf16.gmra.mrb[0].mxu0 %v3083
    %v3310 = vpop.f32.mrb[0].mxu0
    %v3311 = vadd.f32 %v3122, %v3310
    %v3312 = vpop.f32.mrb[0].mxu0
    %v3313 = vpop.f32.mrb[0].mxu0
    %v3314 = vadd.f32 %v3122, %v3313
    %v3315 = vpop.f32.mrb[0].mxu0
    %3316 = vdwg.mxu0
    %v3317 = vpack.c.bf16 %v3258, %v3255
    %v3318 = vpack.c.bf16 %v3266, %v3263
    %v3319 = vpack.c.bf16 %v3274, %v3271
    %v3320 = vpack.c.bf16 %v3282, %v3279
    %v3321 = vpack.c.bf16 %v3290, %v3287
    %v3322 = vpack.c.bf16 %v3298, %v3295
    %v3323 = vpack.c.bf16 %v3306, %v3303
    %v3324 = vpack.c.bf16 %v3314, %v3311
    %v3333 = vunpack.c.l.b16 %v3317
    %v3334 = vunpack.c.h.b16 %v3317
    %v3335 = vunpack.c.l.b16 %v3318
    %v3336 = vunpack.c.h.b16 %v3318
    %v3337 = vunpack.c.l.b16 %v3319
    %v3338 = vunpack.c.h.b16 %v3319
    %v3339 = vunpack.c.l.b16 %v3320
    %v3340 = vunpack.c.h.b16 %v3320
    %v3341 = vunpack.c.l.b16 %v3321
    %v3342 = vunpack.c.h.b16 %v3321
    %v3343 = vunpack.c.l.b16 %v3322
    %v3344 = vunpack.c.h.b16 %v3322
    %v3345 = vunpack.c.l.b16 %v3323
    %v3346 = vunpack.c.h.b16 %v3323
    %v3347 = vunpack.c.l.b16 %v3324
    %v3348 = vunpack.c.h.b16 %v3324
    %v3349 = vpack.c.b16 %v3333, %v3333
    %v3350 = vpack.c.b16 %v3334, %v3334
    %v3351 = vpack.c.b16 %v3335, %v3335
    %v3352 = vpack.c.b16 %v3336, %v3336
    %v3353 = vpack.c.b16 %v3337, %v3337
    %v3354 = vpack.c.b16 %v3338, %v3338
    %v3355 = vpack.c.b16 %v3339, %v3339
    %v3356 = vpack.c.b16 %v3340, %v3340
    %v3357 = vpack.c.b16 %v3341, %v3341
    %v3358 = vpack.c.b16 %v3342, %v3342
    %v3359 = vpack.c.b16 %v3343, %v3343
    %v3360 = vpack.c.b16 %v3344, %v3344
    %v3361 = vpack.c.b16 %v3345, %v3345
    %v3362 = vpack.c.b16 %v3346, %v3346
    %v3363 = vpack.c.b16 %v3347, %v3347
    %v3364 = vpack.c.b16 %v3348, %v3348
    %3381 = vst [vmem:[%s6] sm:$0xf] %v3349
    %3382 = vst [vmem:[%s6 + $0x4] sm:$0xf] %v3350
    %3383 = vst [vmem:[%s6 + $0x8] sm:$0xf] %v3351
    %3384 = vst [vmem:[%s6 + $0xc] sm:$0xf] %v3352
    %3385 = vst [vmem:[%s6 + $0x10] sm:$0xf] %v3353
    %3386 = vst [vmem:[%s6 + $0x14] sm:$0xf] %v3354
    %3387 = vst [vmem:[%s6 + $0x18] sm:$0xf] %v3355
    %3388 = vst [vmem:[%s6 + $0x1c] sm:$0xf] %v3356
    %3389 = vst [vmem:[%s6 + $0x20] sm:$0xf] %v3357
    %3390 = vst [vmem:[%s6 + $0x24] sm:$0xf] %v3358
    %3391 = vst [vmem:[%s6 + $0x28] sm:$0xf] %v3359
    %3392 = vst [vmem:[%s6 + $0x2c] sm:$0xf] %v3360
    %3393 = vst [vmem:[%s6 + $0x30] sm:$0xf] %v3361
    %3394 = vst [vmem:[%s6 + $0x34] sm:$0xf] %v3362
    %3395 = vst [vmem:[%s6 + $0x38] sm:$0xf] %v3363
    %3396 = vst [vmem:[%s6 + $0x3c] sm:$0xf] %v3364
    // Predicated region
    $region38: #{_query_time_pallas.1} parent=1 // pred_check
      _
    $region39: #{_query_time_pallas.1} parent=1 // pred_check_branch
      %3398 = sbr.rel (0) target = $region41
    $region40: #{_query_time_pallas.1} parent=1 // pred_region
      _
    $region41: #{_query_time_pallas.1} parent=1 // pred_fallthru
      _
    // Predicated region
    $region42: #{_query_time_pallas.1} parent=1 // pred_check
      _
    $region43: #{_query_time_pallas.1} parent=1 // pred_check_branch
      %3400 = sbr.rel (0) target = $region45
    $region44: #{_query_time_pallas.1} parent=1 // pred_region
      _
    $region45: #{_query_time_pallas.1} parent=1 // pred_fallthru
      _
    %3401 = vsyncpa [#allocation3], 1
    %3402 = vsyncpa [#allocation5], 1

</llo_original>
